<compile_context>
chip_gen: v7x
topology: tpu7x:2x2x1
jax: 0.10.0
libtpu: 0.0.40
codegen_flags: <defaults>
</compile_context>

<pallas_src>
import math

import jax
import jax.numpy as jnp
from jax.experimental import pallas as pl
from jax.experimental.pallas import tpu as pltpu  # noqa: F401  (TPU backend)

# -------------------- small, self-consistent configuration --------------------
BATCH   = 2
N_HEADS = 4
TGT_LEN = 4          # must equal N_HEADS (see note above)
SRC_LEN = 4          # must equal N_HEADS (see note above)
D_MODEL = 32
D_K     = 8
D_V     = 8
D_FF    = 64
HDK     = N_HEADS * D_K
HDV     = N_HEADS * D_V
SQRT_DK = math.sqrt(D_K)
LN_EPS  = 1e-5
NEG_INF = -1000000000.0


def _layer_norm(x):
    # LayerNorm(elementwise_affine=False): normalize over last dim, biased var.
    mu = jnp.mean(x, axis=-1, keepdims=True)
    xc = x - mu
    var = jnp.mean(xc * xc, axis=-1, keepdims=True)
    return xc / jnp.sqrt(var + LN_EPS)


# ------------------------------ Pallas kernel ---------------------------------
def decoder_layer_kernel(dec_ref, enc_ref, smask_ref, cmask_ref,
                         wq1_ref, wk1_ref, wv1_ref, wf1_ref,
                         wq2_ref, wk2_ref, wv2_ref, wf2_ref,
                         wff1_ref, wff2_ref,
                         out_ref, sattn_ref, cattn_ref):
    dec = dec_ref[...]      # (B*T, D)
    enc = enc_ref[...]      # (B*S, D)

    def attention(q_all, k_all, v_all, mask_add_ref, len_q, len_k):
        # q_all: (B*len_q, H*dk); k_all: (B*len_k, H*dk); v_all: (B*len_k, H*dv)
        # mask_add_ref: (B, len_q, len_k) additive f32 mask (0 / NEG_INF)
        ctx_rows, attn_rows = [], []
        for b in range(BATCH):                          # static unroll (B == 2)
            qb = q_all[b * len_q:(b + 1) * len_q, :].reshape(len_q, N_HEADS, D_K)
            kb = k_all[b * len_k:(b + 1) * len_k, :].reshape(len_k, N_HEADS, D_K)
            # Exact reproduction of the no-op transpose(V, 1, 1): the value
            # matrix for head h is ROW h of the V projection split into n_heads
            # chunks of d_v (valid because len_k == len_v == n_heads).
            vmats = v_all[b * len_k:(b + 1) * len_k, :].reshape(len_k, N_HEADS, D_V)

            # one batched contraction over all heads: (H, len_q, len_k)
            scores = jnp.einsum('qhd,khd->hqk', qb, kb,
                                preferred_element_type=jnp.float32) / SQRT_DK
            scores = scores + mask_add_ref[b]           # additive mask, bcast over H

            m = jnp.max(scores, axis=-1, keepdims=True)
            e = jnp.exp(scores - m)
            denom = jnp.sum(e, axis=-1, keepdims=True)
            attn = e * pl.reciprocal(denom, approx=True)          # (H, lq, lk)

            # batched context: (lq, H, dv) -> (lq, H*dv)
            ctx = jnp.einsum('hqk,hkd->qhd', attn, vmats,
                             preferred_element_type=jnp.float32)
            ctx_rows.append(ctx.reshape(len_q, N_HEADS * D_V))
            # lane-dense attention rows: (lq, H*len_k)
            attn_rows.append(jnp.transpose(attn, (1, 0, 2))
                             .reshape(len_q, N_HEADS * len_k))
        return (jnp.concatenate(ctx_rows, axis=0),      # (B*lq, H*dv)
                jnp.concatenate(attn_rows, axis=0))     # (B*lq, H*len_k)

    # ---- decoder self-attention (unfused, head-aligned projections) --------
    q1 = jnp.dot(dec, wq1_ref[...], preferred_element_type=jnp.float32)
    k1 = jnp.dot(dec, wk1_ref[...], preferred_element_type=jnp.float32)
    v1 = jnp.dot(dec, wv1_ref[...], preferred_element_type=jnp.float32)
    ctx1, sattn = attention(q1, k1, v1, smask_ref, TGT_LEN, TGT_LEN)
    sattn_ref[...] = sattn                               # one lane-dense store
    y = _layer_norm(jnp.dot(ctx1, wf1_ref[...],
                            preferred_element_type=jnp.float32) + dec)

    # ---- decoder-encoder cross-attention ------------------------------------
    q2 = jnp.dot(y, wq2_ref[...], preferred_element_type=jnp.float32)
    k2 = jnp.dot(enc, wk2_ref[...], preferred_element_type=jnp.float32)
    v2 = jnp.dot(enc, wv2_ref[...], preferred_element_type=jnp.float32)
    ctx2, cattn = attention(q2, k2, v2, cmask_ref, TGT_LEN, SRC_LEN)
    cattn_ref[...] = cattn                               # one lane-dense store
    y = _layer_norm(jnp.dot(ctx2, wf2_ref[...],
                            preferred_element_type=jnp.float32) + y)

    # ---- position-wise feed-forward + residual + layernorm ------------------
    h1 = jnp.maximum(jnp.dot(y, wff1_ref[...],
                             preferred_element_type=jnp.float32), 0.0)
    ff = jnp.dot(h1, wff2_ref[...], preferred_element_type=jnp.float32)
    out_ref[...] = _layer_norm(ff + y)                   # single lane-dense store


# ------------------------------- wrapper ---------------------------------------
def decoder_layer(dec_inputs, enc_outputs, dec_self_attn_mask, dec_enc_attn_mask, params):
    B, T, D = dec_inputs.shape
    S = enc_outputs.shape[1]
    assert T == N_HEADS and S == N_HEADS, \
        "original torch code only runs when len_k == len_v == n_heads"

    # fold batch into the sublane dim: one (B*T, D) = (8, 32) slab, no grid.
    dec_flat = dec_inputs.reshape(B * T, D)
    enc_flat = enc_outputs.reshape(B * S, D)

    # additive float masks precomputed outside the kernel (0 / NEG_INF)
    smask_add = jnp.where(dec_self_attn_mask, NEG_INF, 0.0).astype(jnp.float32)
    cmask_add = jnp.where(dec_enc_attn_mask, NEG_INF, 0.0).astype(jnp.float32)

    out_flat, sattn_flat, cattn_flat = pl.pallas_call(
        decoder_layer_kernel,
        out_shape=(
            jax.ShapeDtypeStruct((B * T, D), jnp.float32),
            jax.ShapeDtypeStruct((B * T, N_HEADS * T), jnp.float32),   # lane-dense
            jax.ShapeDtypeStruct((B * T, N_HEADS * S), jnp.float32),   # lane-dense
        ),
    )(dec_flat, enc_flat, smask_add, cmask_add,
      params["wq1"], params["wk1"], params["wv1"], params["wf1"],
      params["wq2"], params["wk2"], params["wv2"], params["wf2"],
      params["wff1"], params["wff2"])

    # unpack lane-dense attention slabs back to (B, H, T, len_k)
    sattn = sattn_flat.reshape(B, T, N_HEADS, T).transpose(0, 2, 1, 3)
    cattn = cattn_flat.reshape(B, T, N_HEADS, S).transpose(0, 2, 1, 3)
    return out_flat.reshape(B, T, D), sattn, cattn


# --------------------------- pure-JAX reference ---------------------------------
def _mha_ref(x_q, x_k, x_v, mask, wq, wk, wv, wfc):
    B, lq, _ = x_q.shape
    lk = x_k.shape[1]
    q = (x_q @ wq).reshape(B, lq, N_HEADS, D_K).transpose(0, 2, 1, 3)
    k = (x_k @ wk).reshape(B, lk, N_HEADS, D_K).transpose(0, 2, 1, 3)
    v = (x_v @ wv).reshape(B, lk, N_HEADS, D_V)          # no-op transpose(V, 1, 1)
    scores = jnp.einsum('bhqd,bhkd->bhqk', q, k) / SQRT_DK
    scores = jnp.where(mask[:, None, :, :], NEG_INF, scores)
    attn = jax.nn.softmax(scores, axis=-1)
    qkv = jnp.einsum('bhqk,bhkd->bhqd', attn, v)         # v axes: (b, lv==h, head==k, d)
    qkv = qkv.transpose(0, 2, 1, 3).reshape(B, lq, N_HEADS * D_V)
    return _layer_norm(qkv @ wfc + x_q), attn


def decoder_layer_ref(dec_inputs, enc_outputs, smask, cmask, p):
    y, sattn = _mha_ref(dec_inputs, dec_inputs, dec_inputs, smask,
                        p["wq1"], p["wk1"], p["wv1"], p["wf1"])
    y, cattn = _mha_ref(y, enc_outputs, enc_outputs, cmask,
                        p["wq2"], p["wk2"], p["wv2"], p["wf2"])
    ff = jnp.maximum(y @ p["wff1"], 0.0) @ p["wff2"]
    return _layer_norm(ff + y), sattn, cattn


# ------------------------------ params / main -----------------------------------
def init_params(key):
    ks = jax.random.split(key, 10)

    def lin(k, fin, fout):
        bound = 1.0 / math.sqrt(fin)      # torch Linear default init, stored (in, out)
        return jax.random.uniform(k, (fin, fout), jnp.float32, -bound, bound)

    return {
        "wq1": lin(ks[0], D_MODEL, N_HEADS * D_K),
        "wk1": lin(ks[1], D_MODEL, N_HEADS * D_K),
        "wv1": lin(ks[2], D_MODEL, N_HEADS * D_V),
        "wf1": lin(ks[3], N_HEADS * D_V, D_MODEL),
        "wq2": lin(ks[4], D_MODEL, N_HEADS * D_K),
        "wk2": lin(ks[5], D_MODEL, N_HEADS * D_K),
        "wv2": lin(ks[6], D_MODEL, N_HEADS * D_V),
        "wf2": lin(ks[7], N_HEADS * D_V, D_MODEL),
        "wff1": lin(ks[8], D_MODEL, D_FF),
        "wff2": lin(ks[9], D_FF, D_MODEL),
    }


if __name__ == "__main__":
    key = jax.random.PRNGKey(0)
    kp, kd, ke = jax.random.split(key, 3)
    params = init_params(kp)

    dec_inputs = jax.random.normal(kd, (BATCH, TGT_LEN, D_MODEL), jnp.float32)
    enc_outputs = jax.random.normal(ke, (BATCH, SRC_LEN, D_MODEL), jnp.float32)
    causal = jnp.triu(jnp.ones((TGT_LEN, TGT_LEN), jnp.bool_), k=1)
    dec_self_attn_mask = jnp.broadcast_to(causal, (BATCH, TGT_LEN, TGT_LEN))
    dec_enc_attn_mask = jnp.zeros((BATCH, TGT_LEN, SRC_LEN), jnp.bool_)

    out, sattn, cattn = decoder_layer(dec_inputs, enc_outputs,
                                      dec_self_attn_mask, dec_enc_attn_mask, params)
    jax.block_until_ready((out, sattn, cattn))

    ro, rs, rc = decoder_layer_ref(dec_inputs, enc_outputs,
                                   dec_self_attn_mask, dec_enc_attn_mask, params)
    # 2e-3 tolerance accommodates the EUP approximate reciprocal (approx=True)
    # used for the softmax normalization; everything else is exact f32.
    assert jnp.allclose(out, ro, atol=2e-3, rtol=2e-3)
    assert jnp.allclose(sattn, rs, atol=2e-3, rtol=2e-3)
    assert jnp.allclose(cattn, rc, atol=2e-3, rtol=2e-3)

    print("KERNEL_OK")
</pallas_src>

<mosaic_0001>
module attributes {stable_mosaic.version = 11 : i64} {
  func.func @decoder_layer_kernel(%arg0: memref<8x32xf32, #tpu.memory_space<vmem>>, %arg1: memref<8x32xf32, #tpu.memory_space<vmem>>, %arg2: memref<2x4x4xf32, #tpu.memory_space<vmem>>, %arg3: memref<2x4x4xf32, #tpu.memory_space<vmem>>, %arg4: memref<32x32xf32, #tpu.memory_space<vmem>>, %arg5: memref<32x32xf32, #tpu.memory_space<vmem>>, %arg6: memref<32x32xf32, #tpu.memory_space<vmem>>, %arg7: memref<32x32xf32, #tpu.memory_space<vmem>>, %arg8: memref<32x32xf32, #tpu.memory_space<vmem>>, %arg9: memref<32x32xf32, #tpu.memory_space<vmem>>, %arg10: memref<32x32xf32, #tpu.memory_space<vmem>>, %arg11: memref<32x32xf32, #tpu.memory_space<vmem>>, %arg12: memref<32x64xf32, #tpu.memory_space<vmem>>, %arg13: memref<64x32xf32, #tpu.memory_space<vmem>>, %arg14: memref<8x32xf32, #tpu.memory_space<vmem>>, %arg15: memref<8x16xf32, #tpu.memory_space<vmem>>, %arg16: memref<8x16xf32, #tpu.memory_space<vmem>>) attributes {dimension_semantics = [], scalar_prefetch = 0 : i64, scratch_operands = 0 : i64, tpu.core_type = #tpu.core_type<tc>} {
    %c0 = arith.constant 0 : index
    %c0_0 = arith.constant 0 : index
    %0 = vector.load %arg0[%c0, %c0_0] : memref<8x32xf32, #tpu.memory_space<vmem>>, vector<8x32xf32>
    %c0_1 = arith.constant 0 : index
    %c0_2 = arith.constant 0 : index
    %1 = vector.load %arg1[%c0_1, %c0_2] : memref<8x32xf32, #tpu.memory_space<vmem>>, vector<8x32xf32>
    %c0_3 = arith.constant 0 : index
    %c0_4 = arith.constant 0 : index
    %2 = vector.load %arg4[%c0_3, %c0_4] : memref<32x32xf32, #tpu.memory_space<vmem>>, vector<32x32xf32>
    %cst = arith.constant dense<0.000000e+00> : vector<8x32xf32>
    %3 = tpu.matmul %0, %2, %cst {dimension_numbers = #tpu.dot_dimension_numbers<[1], [0], [0], [1], [0, 0, 1, 1], [], []>} : vector<8x32xf32>, vector<32x32xf32>, vector<8x32xf32> -> vector<8x32xf32>
    %c0_5 = arith.constant 0 : index
    %c0_6 = arith.constant 0 : index
    %4 = vector.load %arg5[%c0_5, %c0_6] : memref<32x32xf32, #tpu.memory_space<vmem>>, vector<32x32xf32>
    %cst_7 = arith.constant dense<0.000000e+00> : vector<8x32xf32>
    %5 = tpu.matmul %0, %4, %cst_7 {dimension_numbers = #tpu.dot_dimension_numbers<[1], [0], [0], [1], [0, 0, 1, 1], [], []>} : vector<8x32xf32>, vector<32x32xf32>, vector<8x32xf32> -> vector<8x32xf32>
    %c0_8 = arith.constant 0 : index
    %c0_9 = arith.constant 0 : index
    %6 = vector.load %arg6[%c0_8, %c0_9] : memref<32x32xf32, #tpu.memory_space<vmem>>, vector<32x32xf32>
    %cst_10 = arith.constant dense<0.000000e+00> : vector<8x32xf32>
    %7 = tpu.matmul %0, %6, %cst_10 {dimension_numbers = #tpu.dot_dimension_numbers<[1], [0], [0], [1], [0, 0, 1, 1], [], []>} : vector<8x32xf32>, vector<32x32xf32>, vector<8x32xf32> -> vector<8x32xf32>
    %8 = vector.extract_strided_slice %3 {offsets = [0, 0], sizes = [4, 32], strides = [1, 1]} : vector<8x32xf32> to vector<4x32xf32>
    %9 = vector.shape_cast %8 : vector<4x32xf32> to vector<4x4x8xf32>
    %10 = vector.extract_strided_slice %5 {offsets = [0, 0], sizes = [4, 32], strides = [1, 1]} : vector<8x32xf32> to vector<4x32xf32>
    %11 = vector.shape_cast %10 : vector<4x32xf32> to vector<4x4x8xf32>
    %12 = vector.extract_strided_slice %7 {offsets = [0, 0], sizes = [4, 32], strides = [1, 1]} : vector<8x32xf32> to vector<4x32xf32>
    %13 = vector.shape_cast %12 : vector<4x32xf32> to vector<4x4x8xf32>
    "tpu.trace_start"() <{level = 10 : i32, message = "qhd,khd->hqk"}> : () -> ()
    %cst_11 = arith.constant dense<0.000000e+00> : vector<4x4x4xf32>
    %14 = tpu.matmul %9, %11, %cst_11 {dimension_numbers = #tpu.dot_dimension_numbers<[2], [2], [0], [0], [0, 1, 0, 0, 1, 0], [1], [1]>} : vector<4x4x8xf32>, vector<4x4x8xf32>, vector<4x4x4xf32> -> vector<4x4x4xf32>
    "tpu.trace_stop"() : () -> ()
    %cst_12 = arith.constant 2.82842708 : f32
    %15 = vector.broadcast %cst_12 : f32 to vector<4x4x4xf32>
    %16 = arith.divf %14, %15 : vector<4x4x4xf32>
    %c0_13 = arith.constant 0 : index
    %c0_14 = arith.constant 0 : index
    %c0_15 = arith.constant 0 : index
    %17 = vector.load %arg2[%c0_13, %c0_14, %c0_15] : memref<2x4x4xf32, #tpu.memory_space<vmem>>, vector<1x4x4xf32>
    %18 = vector.shape_cast %17 : vector<1x4x4xf32> to vector<4x4xf32>
    %19 = vector.shape_cast %18 : vector<4x4xf32> to vector<1x4x4xf32>
    %20 = vector.broadcast %19 : vector<1x4x4xf32> to vector<4x4x4xf32>
    %21 = arith.addf %16, %20 : vector<4x4x4xf32>
    %cst_16 = arith.constant dense<0xFF800000> : vector<4x4xf32>
    %22 = vector.multi_reduction <maximumf>, %21, %cst_16 [2] : vector<4x4x4xf32> to vector<4x4xf32>
    %23 = vector.shape_cast %22 : vector<4x4xf32> to vector<4x4x1xf32>
    %24 = vector.broadcast %23 : vector<4x4x1xf32> to vector<4x4x4xf32>
    %25 = arith.subf %21, %24 : vector<4x4x4xf32>
    %26 = math.exp %25 : vector<4x4x4xf32>
    %cst_17 = arith.constant dense<0.000000e+00> : vector<4x4xf32>
    %27 = vector.multi_reduction <add>, %26, %cst_17 [2] : vector<4x4x4xf32> to vector<4x4xf32>
    %28 = vector.shape_cast %27 : vector<4x4xf32> to vector<4x4x1xf32>
    %29 = tpu.reciprocal %28 {approx = true} : vector<4x4x1xf32> -> vector<4x4x1xf32>
    %30 = vector.broadcast %29 : vector<4x4x1xf32> to vector<4x4x4xf32>
    %31 = arith.mulf %26, %30 : vector<4x4x4xf32>
    "tpu.trace_start"() <{level = 10 : i32, message = "hqk,hkd->qhd"}> : () -> ()
    %cst_18 = arith.constant dense<0.000000e+00> : vector<4x8x4xf32>
    %32 = tpu.matmul %13, %31, %cst_18 {dimension_numbers = #tpu.dot_dimension_numbers<[1], [2], [2], [1], [0, 0, 0, 2, 1, 1], [0], [0]>} : vector<4x4x8xf32>, vector<4x4x4xf32>, vector<4x8x4xf32> -> vector<4x8x4xf32>
    %33 = tpu.transpose %32, [2, 0, 1] : vector<4x8x4xf32> -> vector<4x4x8xf32>
    "tpu.trace_stop"() : () -> ()
    %34 = vector.shape_cast %33 : vector<4x4x8xf32> to vector<4x32xf32>
    %35 = tpu.transpose %31, [1, 0, 2] : vector<4x4x4xf32> -> vector<4x4x4xf32>
    %36 = vector.shape_cast %35 : vector<4x4x4xf32> to vector<4x16xf32>
    %37 = vector.extract_strided_slice %3 {offsets = [4, 0], sizes = [4, 32], strides = [1, 1]} : vector<8x32xf32> to vector<4x32xf32>
    %38 = vector.shape_cast %37 : vector<4x32xf32> to vector<4x4x8xf32>
    %39 = vector.extract_strided_slice %5 {offsets = [4, 0], sizes = [4, 32], strides = [1, 1]} : vector<8x32xf32> to vector<4x32xf32>
    %40 = vector.shape_cast %39 : vector<4x32xf32> to vector<4x4x8xf32>
    %41 = vector.extract_strided_slice %7 {offsets = [4, 0], sizes = [4, 32], strides = [1, 1]} : vector<8x32xf32> to vector<4x32xf32>
    %42 = vector.shape_cast %41 : vector<4x32xf32> to vector<4x4x8xf32>
    "tpu.trace_start"() <{level = 10 : i32, message = "qhd,khd->hqk"}> : () -> ()
    %cst_19 = arith.constant dense<0.000000e+00> : vector<4x4x4xf32>
    %43 = tpu.matmul %38, %40, %cst_19 {dimension_numbers = #tpu.dot_dimension_numbers<[2], [2], [0], [0], [0, 1, 0, 0, 1, 0], [1], [1]>} : vector<4x4x8xf32>, vector<4x4x8xf32>, vector<4x4x4xf32> -> vector<4x4x4xf32>
    "tpu.trace_stop"() : () -> ()
    %cst_20 = arith.constant 2.82842708 : f32
    %44 = vector.broadcast %cst_20 : f32 to vector<4x4x4xf32>
    %45 = arith.divf %43, %44 : vector<4x4x4xf32>
    %c1 = arith.constant 1 : index
    %c0_21 = arith.constant 0 : index
    %c0_22 = arith.constant 0 : index
    %46 = vector.load %arg2[%c1, %c0_21, %c0_22] : memref<2x4x4xf32, #tpu.memory_space<vmem>>, vector<1x4x4xf32>
    %47 = vector.shape_cast %46 : vector<1x4x4xf32> to vector<4x4xf32>
    %48 = vector.shape_cast %47 : vector<4x4xf32> to vector<1x4x4xf32>
    %49 = vector.broadcast %48 : vector<1x4x4xf32> to vector<4x4x4xf32>
    %50 = arith.addf %45, %49 : vector<4x4x4xf32>
    %cst_23 = arith.constant dense<0xFF800000> : vector<4x4xf32>
    %51 = vector.multi_reduction <maximumf>, %50, %cst_23 [2] : vector<4x4x4xf32> to vector<4x4xf32>
    %52 = vector.shape_cast %51 : vector<4x4xf32> to vector<4x4x1xf32>
    %53 = vector.broadcast %52 : vector<4x4x1xf32> to vector<4x4x4xf32>
    %54 = arith.subf %50, %53 : vector<4x4x4xf32>
    %55 = math.exp %54 : vector<4x4x4xf32>
    %cst_24 = arith.constant dense<0.000000e+00> : vector<4x4xf32>
    %56 = vector.multi_reduction <add>, %55, %cst_24 [2] : vector<4x4x4xf32> to vector<4x4xf32>
    %57 = vector.shape_cast %56 : vector<4x4xf32> to vector<4x4x1xf32>
    %58 = tpu.reciprocal %57 {approx = true} : vector<4x4x1xf32> -> vector<4x4x1xf32>
    %59 = vector.broadcast %58 : vector<4x4x1xf32> to vector<4x4x4xf32>
    %60 = arith.mulf %55, %59 : vector<4x4x4xf32>
    "tpu.trace_start"() <{level = 10 : i32, message = "hqk,hkd->qhd"}> : () -> ()
    %cst_25 = arith.constant dense<0.000000e+00> : vector<4x8x4xf32>
    %61 = tpu.matmul %42, %60, %cst_25 {dimension_numbers = #tpu.dot_dimension_numbers<[1], [2], [2], [1], [0, 0, 0, 2, 1, 1], [0], [0]>} : vector<4x4x8xf32>, vector<4x4x4xf32>, vector<4x8x4xf32> -> vector<4x8x4xf32>
    %62 = tpu.transpose %61, [2, 0, 1] : vector<4x8x4xf32> -> vector<4x4x8xf32>
    "tpu.trace_stop"() : () -> ()
    %63 = vector.shape_cast %62 : vector<4x4x8xf32> to vector<4x32xf32>
    %64 = tpu.transpose %60, [1, 0, 2] : vector<4x4x4xf32> -> vector<4x4x4xf32>
    %65 = vector.shape_cast %64 : vector<4x4x4xf32> to vector<4x16xf32>
    %66 = tpu.concatenate %34, %63 in 0 : vector<4x32xf32>, vector<4x32xf32> -> vector<8x32xf32>
    %67 = tpu.concatenate %36, %65 in 0 : vector<4x16xf32>, vector<4x16xf32> -> vector<8x16xf32>
    %c0_26 = arith.constant 0 : index
    %c0_27 = arith.constant 0 : index
    %68 = vector.load %arg15[%c0_26, %c0_27] : memref<8x16xf32, #tpu.memory_space<vmem>>, vector<8x16xf32>
    tpu.vector_store %arg15[%c0_26, %c0_27], %67 {strides = array<i32>} : memref<8x16xf32, #tpu.memory_space<vmem>>, vector<8x16xf32>,
    %c0_28 = arith.constant 0 : index
    %c0_29 = arith.constant 0 : index
    %69 = vector.load %arg7[%c0_28, %c0_29] : memref<32x32xf32, #tpu.memory_space<vmem>>, vector<32x32xf32>
    %cst_30 = arith.constant dense<0.000000e+00> : vector<8x32xf32>
    %70 = tpu.matmul %66, %69, %cst_30 {dimension_numbers = #tpu.dot_dimension_numbers<[1], [0], [0], [1], [0, 0, 1, 1], [], []>} : vector<8x32xf32>, vector<32x32xf32>, vector<8x32xf32> -> vector<8x32xf32>
    %71 = arith.addf %70, %0 : vector<8x32xf32>
    %cst_31 = arith.constant dense<0.000000e+00> : vector<8xf32>
    %72 = vector.multi_reduction <add>, %71, %cst_31 [1] : vector<8x32xf32> to vector<8xf32>
    %73 = vector.shape_cast %72 : vector<8xf32> to vector<8x1xf32>
    %cst_32 = arith.constant 3.200000e+01 : f32
    %74 = vector.broadcast %cst_32 : f32 to vector<8x1xf32>
    %75 = arith.divf %73, %74 : vector<8x1xf32>
    %76 = vector.broadcast %75 : vector<8x1xf32> to vector<8x32xf32>
    %77 = arith.subf %71, %76 : vector<8x32xf32>
    %78 = arith.mulf %77, %77 : vector<8x32xf32>
    %cst_33 = arith.constant dense<0.000000e+00> : vector<8xf32>
    %79 = vector.multi_reduction <add>, %78, %cst_33 [1] : vector<8x32xf32> to vector<8xf32>
    %80 = vector.shape_cast %79 : vector<8xf32> to vector<8x1xf32>
    %cst_34 = arith.constant 3.200000e+01 : f32
    %81 = vector.broadcast %cst_34 : f32 to vector<8x1xf32>
    %82 = arith.divf %80, %81 : vector<8x1xf32>
    %cst_35 = arith.constant 9.99999974E-6 : f32
    %83 = vector.broadcast %cst_35 : f32 to vector<8x1xf32>
    %84 = arith.addf %82, %83 : vector<8x1xf32>
    %85 = math.sqrt %84 : vector<8x1xf32>
    %86 = vector.broadcast %85 : vector<8x1xf32> to vector<8x32xf32>
    %87 = arith.divf %77, %86 : vector<8x32xf32>
    %c0_36 = arith.constant 0 : index
    %c0_37 = arith.constant 0 : index
    %88 = vector.load %arg8[%c0_36, %c0_37] : memref<32x32xf32, #tpu.memory_space<vmem>>, vector<32x32xf32>
    %cst_38 = arith.constant dense<0.000000e+00> : vector<8x32xf32>
    %89 = tpu.matmul %87, %88, %cst_38 {dimension_numbers = #tpu.dot_dimension_numbers<[1], [0], [0], [1], [0, 0, 1, 1], [], []>} : vector<8x32xf32>, vector<32x32xf32>, vector<8x32xf32> -> vector<8x32xf32>
    %c0_39 = arith.constant 0 : index
    %c0_40 = arith.constant 0 : index
    %90 = vector.load %arg9[%c0_39, %c0_40] : memref<32x32xf32, #tpu.memory_space<vmem>>, vector<32x32xf32>
    %cst_41 = arith.constant dense<0.000000e+00> : vector<8x32xf32>
    %91 = tpu.matmul %1, %90, %cst_41 {dimension_numbers = #tpu.dot_dimension_numbers<[1], [0], [0], [1], [0, 0, 1, 1], [], []>} : vector<8x32xf32>, vector<32x32xf32>, vector<8x32xf32> -> vector<8x32xf32>
    %c0_42 = arith.constant 0 : index
    %c0_43 = arith.constant 0 : index
    %92 = vector.load %arg10[%c0_42, %c0_43] : memref<32x32xf32, #tpu.memory_space<vmem>>, vector<32x32xf32>
    %cst_44 = arith.constant dense<0.000000e+00> : vector<8x32xf32>
    %93 = tpu.matmul %1, %92, %cst_44 {dimension_numbers = #tpu.dot_dimension_numbers<[1], [0], [0], [1], [0, 0, 1, 1], [], []>} : vector<8x32xf32>, vector<32x32xf32>, vector<8x32xf32> -> vector<8x32xf32>
    %94 = vector.extract_strided_slice %89 {offsets = [0, 0], sizes = [4, 32], strides = [1, 1]} : vector<8x32xf32> to vector<4x32xf32>
    %95 = vector.shape_cast %94 : vector<4x32xf32> to vector<4x4x8xf32>
    %96 = vector.extract_strided_slice %91 {offsets = [0, 0], sizes = [4, 32], strides = [1, 1]} : vector<8x32xf32> to vector<4x32xf32>
    %97 = vector.shape_cast %96 : vector<4x32xf32> to vector<4x4x8xf32>
    %98 = vector.extract_strided_slice %93 {offsets = [0, 0], sizes = [4, 32], strides = [1, 1]} : vector<8x32xf32> to vector<4x32xf32>
    %99 = vector.shape_cast %98 : vector<4x32xf32> to vector<4x4x8xf32>
    "tpu.trace_start"() <{level = 10 : i32, message = "qhd,khd->hqk"}> : () -> ()
    %cst_45 = arith.constant dense<0.000000e+00> : vector<4x4x4xf32>
    %100 = tpu.matmul %95, %97, %cst_45 {dimension_numbers = #tpu.dot_dimension_numbers<[2], [2], [0], [0], [0, 1, 0, 0, 1, 0], [1], [1]>} : vector<4x4x8xf32>, vector<4x4x8xf32>, vector<4x4x4xf32> -> vector<4x4x4xf32>
    "tpu.trace_stop"() : () -> ()
    %cst_46 = arith.constant 2.82842708 : f32
    %101 = vector.broadcast %cst_46 : f32 to vector<4x4x4xf32>
    %102 = arith.divf %100, %101 : vector<4x4x4xf32>
    %c0_47 = arith.constant 0 : index
    %c0_48 = arith.constant 0 : index
    %c0_49 = arith.constant 0 : index
    %103 = vector.load %arg3[%c0_47, %c0_48, %c0_49] : memref<2x4x4xf32, #tpu.memory_space<vmem>>, vector<1x4x4xf32>
    %104 = vector.shape_cast %103 : vector<1x4x4xf32> to vector<4x4xf32>
    %105 = vector.shape_cast %104 : vector<4x4xf32> to vector<1x4x4xf32>
    %106 = vector.broadcast %105 : vector<1x4x4xf32> to vector<4x4x4xf32>
    %107 = arith.addf %102, %106 : vector<4x4x4xf32>
    %cst_50 = arith.constant dense<0xFF800000> : vector<4x4xf32>
    %108 = vector.multi_reduction <maximumf>, %107, %cst_50 [2] : vector<4x4x4xf32> to vector<4x4xf32>
    %109 = vector.shape_cast %108 : vector<4x4xf32> to vector<4x4x1xf32>
    %110 = vector.broadcast %109 : vector<4x4x1xf32> to vector<4x4x4xf32>
    %111 = arith.subf %107, %110 : vector<4x4x4xf32>
    %112 = math.exp %111 : vector<4x4x4xf32>
    %cst_51 = arith.constant dense<0.000000e+00> : vector<4x4xf32>
    %113 = vector.multi_reduction <add>, %112, %cst_51 [2] : vector<4x4x4xf32> to vector<4x4xf32>
    %114 = vector.shape_cast %113 : vector<4x4xf32> to vector<4x4x1xf32>
    %115 = tpu.reciprocal %114 {approx = true} : vector<4x4x1xf32> -> vector<4x4x1xf32>
    %116 = vector.broadcast %115 : vector<4x4x1xf32> to vector<4x4x4xf32>
    %117 = arith.mulf %112, %116 : vector<4x4x4xf32>
    "tpu.trace_start"() <{level = 10 : i32, message = "hqk,hkd->qhd"}> : () -> ()
    %cst_52 = arith.constant dense<0.000000e+00> : vector<4x8x4xf32>
    %118 = tpu.matmul %99, %117, %cst_52 {dimension_numbers = #tpu.dot_dimension_numbers<[1], [2], [2], [1], [0, 0, 0, 2, 1, 1], [0], [0]>} : vector<4x4x8xf32>, vector<4x4x4xf32>, vector<4x8x4xf32> -> vector<4x8x4xf32>
    %119 = tpu.transpose %118, [2, 0, 1] : vector<4x8x4xf32> -> vector<4x4x8xf32>
    "tpu.trace_stop"() : () -> ()
    %120 = vector.shape_cast %119 : vector<4x4x8xf32> to vector<4x32xf32>
    %121 = tpu.transpose %117, [1, 0, 2] : vector<4x4x4xf32> -> vector<4x4x4xf32>
    %122 = vector.shape_cast %121 : vector<4x4x4xf32> to vector<4x16xf32>
    %123 = vector.extract_strided_slice %89 {offsets = [4, 0], sizes = [4, 32], strides = [1, 1]} : vector<8x32xf32> to vector<4x32xf32>
    %124 = vector.shape_cast %123 : vector<4x32xf32> to vector<4x4x8xf32>
    %125 = vector.extract_strided_slice %91 {offsets = [4, 0], sizes = [4, 32], strides = [1, 1]} : vector<8x32xf32> to vector<4x32xf32>
    %126 = vector.shape_cast %125 : vector<4x32xf32> to vector<4x4x8xf32>
    %127 = vector.extract_strided_slice %93 {offsets = [4, 0], sizes = [4, 32], strides = [1, 1]} : vector<8x32xf32> to vector<4x32xf32>
    %128 = vector.shape_cast %127 : vector<4x32xf32> to vector<4x4x8xf32>
    "tpu.trace_start"() <{level = 10 : i32, message = "qhd,khd->hqk"}> : () -> ()
    %cst_53 = arith.constant dense<0.000000e+00> : vector<4x4x4xf32>
    %129 = tpu.matmul %124, %126, %cst_53 {dimension_numbers = #tpu.dot_dimension_numbers<[2], [2], [0], [0], [0, 1, 0, 0, 1, 0], [1], [1]>} : vector<4x4x8xf32>, vector<4x4x8xf32>, vector<4x4x4xf32> -> vector<4x4x4xf32>
    "tpu.trace_stop"() : () -> ()
    %cst_54 = arith.constant 2.82842708 : f32
    %130 = vector.broadcast %cst_54 : f32 to vector<4x4x4xf32>
    %131 = arith.divf %129, %130 : vector<4x4x4xf32>
    %c1_55 = arith.constant 1 : index
    %c0_56 = arith.constant 0 : index
    %c0_57 = arith.constant 0 : index
    %132 = vector.load %arg3[%c1_55, %c0_56, %c0_57] : memref<2x4x4xf32, #tpu.memory_space<vmem>>, vector<1x4x4xf32>
    %133 = vector.shape_cast %132 : vector<1x4x4xf32> to vector<4x4xf32>
    %134 = vector.shape_cast %133 : vector<4x4xf32> to vector<1x4x4xf32>
    %135 = vector.broadcast %134 : vector<1x4x4xf32> to vector<4x4x4xf32>
    %136 = arith.addf %131, %135 : vector<4x4x4xf32>
    %cst_58 = arith.constant dense<0xFF800000> : vector<4x4xf32>
    %137 = vector.multi_reduction <maximumf>, %136, %cst_58 [2] : vector<4x4x4xf32> to vector<4x4xf32>
    %138 = vector.shape_cast %137 : vector<4x4xf32> to vector<4x4x1xf32>
    %139 = vector.broadcast %138 : vector<4x4x1xf32> to vector<4x4x4xf32>
    %140 = arith.subf %136, %139 : vector<4x4x4xf32>
    %141 = math.exp %140 : vector<4x4x4xf32>
    %cst_59 = arith.constant dense<0.000000e+00> : vector<4x4xf32>
    %142 = vector.multi_reduction <add>, %141, %cst_59 [2] : vector<4x4x4xf32> to vector<4x4xf32>
    %143 = vector.shape_cast %142 : vector<4x4xf32> to vector<4x4x1xf32>
    %144 = tpu.reciprocal %143 {approx = true} : vector<4x4x1xf32> -> vector<4x4x1xf32>
    %145 = vector.broadcast %144 : vector<4x4x1xf32> to vector<4x4x4xf32>
    %146 = arith.mulf %141, %145 : vector<4x4x4xf32>
    "tpu.trace_start"() <{level = 10 : i32, message = "hqk,hkd->qhd"}> : () -> ()
    %cst_60 = arith.constant dense<0.000000e+00> : vector<4x8x4xf32>
    %147 = tpu.matmul %128, %146, %cst_60 {dimension_numbers = #tpu.dot_dimension_numbers<[1], [2], [2], [1], [0, 0, 0, 2, 1, 1], [0], [0]>} : vector<4x4x8xf32>, vector<4x4x4xf32>, vector<4x8x4xf32> -> vector<4x8x4xf32>
    %148 = tpu.transpose %147, [2, 0, 1] : vector<4x8x4xf32> -> vector<4x4x8xf32>
    "tpu.trace_stop"() : () -> ()
    %149 = vector.shape_cast %148 : vector<4x4x8xf32> to vector<4x32xf32>
    %150 = tpu.transpose %146, [1, 0, 2] : vector<4x4x4xf32> -> vector<4x4x4xf32>
    %151 = vector.shape_cast %150 : vector<4x4x4xf32> to vector<4x16xf32>
    %152 = tpu.concatenate %120, %149 in 0 : vector<4x32xf32>, vector<4x32xf32> -> vector<8x32xf32>
    %153 = tpu.concatenate %122, %151 in 0 : vector<4x16xf32>, vector<4x16xf32> -> vector<8x16xf32>
    %c0_61 = arith.constant 0 : index
    %c0_62 = arith.constant 0 : index
    %154 = vector.load %arg16[%c0_61, %c0_62] : memref<8x16xf32, #tpu.memory_space<vmem>>, vector<8x16xf32>
    tpu.vector_store %arg16[%c0_61, %c0_62], %153 {strides = array<i32>} : memref<8x16xf32, #tpu.memory_space<vmem>>, vector<8x16xf32>,
    %c0_63 = arith.constant 0 : index
    %c0_64 = arith.constant 0 : index
    %155 = vector.load %arg11[%c0_63, %c0_64] : memref<32x32xf32, #tpu.memory_space<vmem>>, vector<32x32xf32>
    %cst_65 = arith.constant dense<0.000000e+00> : vector<8x32xf32>
    %156 = tpu.matmul %152, %155, %cst_65 {dimension_numbers = #tpu.dot_dimension_numbers<[1], [0], [0], [1], [0, 0, 1, 1], [], []>} : vector<8x32xf32>, vector<32x32xf32>, vector<8x32xf32> -> vector<8x32xf32>
    %157 = arith.addf %156, %87 : vector<8x32xf32>
    %cst_66 = arith.constant dense<0.000000e+00> : vector<8xf32>
    %158 = vector.multi_reduction <add>, %157, %cst_66 [1] : vector<8x32xf32> to vector<8xf32>
    %159 = vector.shape_cast %158 : vector<8xf32> to vector<8x1xf32>
    %cst_67 = arith.constant 3.200000e+01 : f32
    %160 = vector.broadcast %cst_67 : f32 to vector<8x1xf32>
    %161 = arith.divf %159, %160 : vector<8x1xf32>
    %162 = vector.broadcast %161 : vector<8x1xf32> to vector<8x32xf32>
    %163 = arith.subf %157, %162 : vector<8x32xf32>
    %164 = arith.mulf %163, %163 : vector<8x32xf32>
    %cst_68 = arith.constant dense<0.000000e+00> : vector<8xf32>
    %165 = vector.multi_reduction <add>, %164, %cst_68 [1] : vector<8x32xf32> to vector<8xf32>
    %166 = vector.shape_cast %165 : vector<8xf32> to vector<8x1xf32>
    %cst_69 = arith.constant 3.200000e+01 : f32
    %167 = vector.broadcast %cst_69 : f32 to vector<8x1xf32>
    %168 = arith.divf %166, %167 : vector<8x1xf32>
    %cst_70 = arith.constant 9.99999974E-6 : f32
    %169 = vector.broadcast %cst_70 : f32 to vector<8x1xf32>
    %170 = arith.addf %168, %169 : vector<8x1xf32>
    %171 = math.sqrt %170 : vector<8x1xf32>
    %172 = vector.broadcast %171 : vector<8x1xf32> to vector<8x32xf32>
    %173 = arith.divf %163, %172 : vector<8x32xf32>
    %c0_71 = arith.constant 0 : index
    %c0_72 = arith.constant 0 : index
    %174 = vector.load %arg12[%c0_71, %c0_72] : memref<32x64xf32, #tpu.memory_space<vmem>>, vector<32x64xf32>
    %cst_73 = arith.constant dense<0.000000e+00> : vector<8x64xf32>
    %175 = tpu.matmul %173, %174, %cst_73 {dimension_numbers = #tpu.dot_dimension_numbers<[1], [0], [0], [1], [0, 0, 1, 1], [], []>} : vector<8x32xf32>, vector<32x64xf32>, vector<8x64xf32> -> vector<8x64xf32>
    %cst_74 = arith.constant 0.000000e+00 : f32
    %176 = vector.broadcast %cst_74 : f32 to vector<8x64xf32>
    %177 = arith.maximumf %175, %176 : vector<8x64xf32>
    %c0_75 = arith.constant 0 : index
    %c0_76 = arith.constant 0 : index
    %178 = vector.load %arg13[%c0_75, %c0_76] : memref<64x32xf32, #tpu.memory_space<vmem>>, vector<64x32xf32>
    %cst_77 = arith.constant dense<0.000000e+00> : vector<8x32xf32>
    %179 = tpu.matmul %177, %178, %cst_77 {dimension_numbers = #tpu.dot_dimension_numbers<[1], [0], [0], [1], [0, 0, 1, 1], [], []>} : vector<8x64xf32>, vector<64x32xf32>, vector<8x32xf32> -> vector<8x32xf32>
    %180 = arith.addf %179, %173 : vector<8x32xf32>
    %cst_78 = arith.constant dense<0.000000e+00> : vector<8xf32>
    %181 = vector.multi_reduction <add>, %180, %cst_78 [1] : vector<8x32xf32> to vector<8xf32>
    %182 = vector.shape_cast %181 : vector<8xf32> to vector<8x1xf32>
    %cst_79 = arith.constant 3.200000e+01 : f32
    %183 = vector.broadcast %cst_79 : f32 to vector<8x1xf32>
    %184 = arith.divf %182, %183 : vector<8x1xf32>
    %185 = vector.broadcast %184 : vector<8x1xf32> to vector<8x32xf32>
    %186 = arith.subf %180, %185 : vector<8x32xf32>
    %187 = arith.mulf %186, %186 : vector<8x32xf32>
    %cst_80 = arith.constant dense<0.000000e+00> : vector<8xf32>
    %188 = vector.multi_reduction <add>, %187, %cst_80 [1] : vector<8x32xf32> to vector<8xf32>
    %189 = vector.shape_cast %188 : vector<8xf32> to vector<8x1xf32>
    %cst_81 = arith.constant 3.200000e+01 : f32
    %190 = vector.broadcast %cst_81 : f32 to vector<8x1xf32>
    %191 = arith.divf %189, %190 : vector<8x1xf32>
    %cst_82 = arith.constant 9.99999974E-6 : f32
    %192 = vector.broadcast %cst_82 : f32 to vector<8x1xf32>
    %193 = arith.addf %191, %192 : vector<8x1xf32>
    %194 = math.sqrt %193 : vector<8x1xf32>
    %195 = vector.broadcast %194 : vector<8x1xf32> to vector<8x32xf32>
    %196 = arith.divf %186, %195 : vector<8x32xf32>
    %c0_83 = arith.constant 0 : index
    %c0_84 = arith.constant 0 : index
    %197 = vector.load %arg14[%c0_83, %c0_84] : memref<8x32xf32, #tpu.memory_space<vmem>>, vector<8x32xf32>
    tpu.vector_store %arg14[%c0_83, %c0_84], %196 {strides = array<i32>} : memref<8x32xf32, #tpu.memory_space<vmem>>, vector<8x32xf32>,
    return
  }
}

</mosaic_0001>

<llo_original>
// kernel: tpu_custom_call.1
$region0: #{tpu_custom_call.1}
  #allocation0 [shape = 'u32[]', space=smem, size = 0x4, offset = 0x4, fixed_abs, tag = 'smem constant byte address 0x4 - core index']
  #allocation1 [shape = 'u32[144,128]{1,0:T(1,128)}', space=vmem, size = 0x12000, scoped, tag = 'internal scratch']
  %s0 = inlined_call_operand.hbm [shape: f32[8,32], index: 0, kind: input, shape index: {}]
  %s1 = inlined_call_operand.hbm [shape: f32[8,32], index: 1, kind: input, shape index: {}]
  %s2 = inlined_call_operand.hbm [shape: f32[2,4,4], index: 2, kind: input, shape index: {}]
  %s3 = inlined_call_operand.vmem [shape: f32[2,4,4], index: 3, kind: input, shape index: {}]
  %s4 = inlined_call_operand.vmem [shape: f32[32,32], index: 4, kind: input, shape index: {}]
  %s5 = inlined_call_operand.vmem [shape: f32[32,32], index: 5, kind: input, shape index: {}]
  %s6 = inlined_call_operand.vmem [shape: f32[32,32], index: 6, kind: input, shape index: {}]
  %s7 = inlined_call_operand.hbm [shape: f32[32,32], index: 7, kind: input, shape index: {}]
  %s8 = inlined_call_operand.hbm [shape: f32[32,32], index: 8, kind: input, shape index: {}]
  %s9 = inlined_call_operand.hbm [shape: f32[32,32], index: 9, kind: input, shape index: {}]
  %s10 = inlined_call_operand.hbm [shape: f32[32,32], index: 10, kind: input, shape index: {}]
  %s11 = inlined_call_operand.hbm [shape: f32[32,32], index: 11, kind: input, shape index: {}]
  %s12 = inlined_call_operand.hbm [shape: f32[32,64], index: 12, kind: input, shape index: {}]
  %s13 = inlined_call_operand.vmem [shape: f32[64,32], index: 13, kind: input, shape index: {}]
  %s14 = inlined_call_operand.hbm [shape: f32[8,32], index: 14, kind: output, shape index: {0}]
  %s15 = inlined_call_operand.hbm [shape: f32[8,16], index: 15, kind: output, shape index: {1}]
  %s16 = inlined_call_operand.hbm [shape: f32[8,16], index: 16, kind: output, shape index: {2}]
  %17 = xla_tuple %s14, %s15, %s16
  %s18 = sld [smem:[#allocation0]]
  $region118: #{tpu_custom_call.1} parent=0
    _
  %s20 = ssub.s32 1, %s18
  %s21 = scalar_select 0, %s20, %s18
  $region1: #{tpu_custom_call.1} parent=0
    #allocation2 [shape = 'u8[4096]{0}', space=vmem, size = 0x1000, scoped, tag = 'input window, operand 0, single buffered']
    #allocation3 [shape = 's32[1]{0}', space=sflag, size = 0x4, scoped, tag = 'scoped memory for tpu_custom_call.1']
    #allocation4 [shape = 's32[1]{0}', space=sflag, size = 0x4, scoped, tag = 'scoped memory for tpu_custom_call.1']
    #allocation5 [shape = 'u8[4096]{0}', space=vmem, size = 0x1000, scoped, tag = 'input window, operand 1, single buffered']
    #allocation6 [shape = 's32[1]{0}', space=sflag, size = 0x4, scoped, tag = 'scoped memory for tpu_custom_call.1']
    #allocation7 [shape = 'u8[4096]{0}', space=vmem, size = 0x1000, scoped, tag = 'input window, operand 2, single buffered']
    #allocation8 [shape = 'u8[16384]{0}', space=vmem, size = 0x4000, scoped, tag = 'input window, operand 7, single buffered']
    #allocation9 [shape = 's32[1]{0}', space=sflag, size = 0x4, scoped, tag = 'scoped memory for tpu_custom_call.1']
    #allocation10 [shape = 'u8[16384]{0}', space=vmem, size = 0x4000, scoped, tag = 'input window, operand 8, single buffered']
    #allocation11 [shape = 'u8[16384]{0}', space=vmem, size = 0x4000, scoped, tag = 'input window, operand 9, single buffered']
    #allocation12 [shape = 's32[1]{0}', space=sflag, size = 0x4, scoped, tag = 'scoped memory for tpu_custom_call.1']
    #allocation13 [shape = 'u8[16384]{0}', space=vmem, size = 0x4000, scoped, tag = 'input window, operand 10, single buffered']
    #allocation14 [shape = 'u8[16384]{0}', space=vmem, size = 0x4000, scoped, tag = 'input window, operand 11, single buffered']
    #allocation15 [shape = 's32[1]{0}', space=sflag, size = 0x4, scoped, tag = 'scoped memory for tpu_custom_call.1']
    #allocation16 [shape = 'u8[16384]{0}', space=vmem, size = 0x4000, scoped, tag = 'input window, operand 12, single buffered']
    #allocation17 [shape = 'u8[4096]{0}', space=vmem, size = 0x1000, scoped, tag = 'output window, operand 0, single buffered']
    #allocation18 [shape = 'u8[4096]{0}', space=vmem, size = 0x1000, scoped, tag = 'output window, operand 1, single buffered']
    #allocation19 [shape = 's32[1]{0}', space=sflag, size = 0x4, scoped, tag = 'scoped memory for tpu_custom_call.1']
    #allocation20 [shape = 'u8[4096]{0}', space=vmem, size = 0x1000, scoped, tag = 'output window, operand 2, single buffered']
    %22 = vsyncpa [#allocation3], 0
    %23 = vsyncpa [#allocation6], 0
    %24 = vsyncpa [#allocation9], 0
    %25 = vsyncpa [#allocation12], 0
    %26 = vsyncpa [#allocation15], 0
    %27 = vsyncpa [#allocation4], 0
    %28 = vsyncpa [#allocation19], 0
    // Predicated region
    $region2: #{tpu_custom_call.1} parent=1 // pred_check
      _
    $region3: #{tpu_custom_call.1} parent=1 // pred_check_branch
      %30 = sbr.rel (0) target = $region5
    $region4: #{tpu_custom_call.1} parent=1 // pred_region
      %s32 = ssub.s32 128, 128
      %33 = vsyncadd [#allocation3], %s32
      %s35 = sshll.u32 [#allocation2], 4
      %s36 = int_to_ptr.vmem [resolvable:$true] %s35
      %38 = dma.hbm_to_vmem [thread:$0]  %s0, 128, %s36, [#allocation3]
    $region5: #{tpu_custom_call.1} parent=1 // pred_fallthru
      _
    // Predicated region
    $region6: #{tpu_custom_call.1} parent=1 // pred_check
      _
    $region7: #{tpu_custom_call.1} parent=1 // pred_check_branch
      %40 = sbr.rel (0) target = $region9
    $region8: #{tpu_custom_call.1} parent=1 // pred_region
      %s42 = ssub.s32 128, 128
      %43 = vsyncadd [#allocation6], %s42
      %s45 = sshll.u32 [#allocation5], 4
      %s46 = int_to_ptr.vmem [resolvable:$true] %s45
      %48 = dma.hbm_to_vmem [thread:$0]  %s1, 128, %s46, [#allocation6]
    $region9: #{tpu_custom_call.1} parent=1 // pred_fallthru
      _
    // Predicated region
    $region10: #{tpu_custom_call.1} parent=1 // pred_check
      _
    $region11: #{tpu_custom_call.1} parent=1 // pred_check_branch
      %50 = sbr.rel (0) target = $region13
    $region12: #{tpu_custom_call.1} parent=1 // pred_region
      %s52 = ssub.s32 128, 128
      %53 = vsyncadd [#allocation6], %s52
      %s54 = sshll.u32 [#allocation7], 4
      %s55 = int_to_ptr.vmem [resolvable:$true] %s54
      %60 = dma.hbm_to_vmem [thread:$0]  %s2, 128, %s55, [#allocation6], 64, 64, 4
    $region13: #{tpu_custom_call.1} parent=1 // pred_fallthru
      _
    // Predicated region
    $region14: #{tpu_custom_call.1} parent=1 // pred_check
      _
    $region15: #{tpu_custom_call.1} parent=1 // pred_check_branch
      %62 = sbr.rel (0) target = $region17
    $region16: #{tpu_custom_call.1} parent=1 // pred_region
      _
    $region17: #{tpu_custom_call.1} parent=1 // pred_fallthru
      _
    // Predicated region
    $region18: #{tpu_custom_call.1} parent=1 // pred_check
      _
    $region19: #{tpu_custom_call.1} parent=1 // pred_check_branch
      %64 = sbr.rel (0) target = $region21
    $region20: #{tpu_custom_call.1} parent=1 // pred_region
      _
    $region21: #{tpu_custom_call.1} parent=1 // pred_fallthru
      _
    // Predicated region
    $region22: #{tpu_custom_call.1} parent=1 // pred_check
      _
    $region23: #{tpu_custom_call.1} parent=1 // pred_check_branch
      %66 = sbr.rel (0) target = $region25
    $region24: #{tpu_custom_call.1} parent=1 // pred_region
      _
    $region25: #{tpu_custom_call.1} parent=1 // pred_fallthru
      _
    // Predicated region
    $region26: #{tpu_custom_call.1} parent=1 // pred_check
      _
    $region27: #{tpu_custom_call.1} parent=1 // pred_check_branch
      %68 = sbr.rel (0) target = $region29
    $region28: #{tpu_custom_call.1} parent=1 // pred_region
      _
    $region29: #{tpu_custom_call.1} parent=1 // pred_fallthru
      _
    // Predicated region
    $region30: #{tpu_custom_call.1} parent=1 // pred_check
      _
    $region31: #{tpu_custom_call.1} parent=1 // pred_check_branch
      %70 = sbr.rel (0) target = $region33
    $region32: #{tpu_custom_call.1} parent=1 // pred_region
      %s72 = ssub.s32 512, 512
      %73 = vsyncadd [#allocation9], %s72
      %s74 = sshll.u32 [#allocation8], 4
      %s75 = int_to_ptr.vmem [resolvable:$true] %s74
      %80 = dma.hbm_to_vmem [thread:$0]  %s7, 512, %s75, [#allocation9], 128, 128, 8
    $region33: #{tpu_custom_call.1} parent=1 // pred_fallthru
      _
    // Predicated region
    $region34: #{tpu_custom_call.1} parent=1 // pred_check
      _
    $region35: #{tpu_custom_call.1} parent=1 // pred_check_branch
      %82 = sbr.rel (0) target = $region37
    $region36: #{tpu_custom_call.1} parent=1 // pred_region
      %s84 = ssub.s32 512, 512
      %85 = vsyncadd [#allocation9], %s84
      %s86 = sshll.u32 [#allocation10], 4
      %s87 = int_to_ptr.vmem [resolvable:$true] %s86
      %92 = dma.hbm_to_vmem [thread:$0]  %s8, 512, %s87, [#allocation9], 128, 128, 8
    $region37: #{tpu_custom_call.1} parent=1 // pred_fallthru
      _
    // Predicated region
    $region38: #{tpu_custom_call.1} parent=1 // pred_check
      _
    $region39: #{tpu_custom_call.1} parent=1 // pred_check_branch
      %94 = sbr.rel (0) target = $region41
    $region40: #{tpu_custom_call.1} parent=1 // pred_region
      %s96 = ssub.s32 512, 512
      %97 = vsyncadd [#allocation12], %s96
      %s98 = sshll.u32 [#allocation11], 4
      %s99 = int_to_ptr.vmem [resolvable:$true] %s98
      %104 = dma.hbm_to_vmem [thread:$0]  %s9, 512, %s99, [#allocation12], 128, 128, 8
    $region41: #{tpu_custom_call.1} parent=1 // pred_fallthru
      _
    // Predicated region
    $region42: #{tpu_custom_call.1} parent=1 // pred_check
      _
    $region43: #{tpu_custom_call.1} parent=1 // pred_check_branch
      %106 = sbr.rel (0) target = $region45
    $region44: #{tpu_custom_call.1} parent=1 // pred_region
      %s108 = ssub.s32 512, 512
      %109 = vsyncadd [#allocation12], %s108
      %s110 = sshll.u32 [#allocation13], 4
      %s111 = int_to_ptr.vmem [resolvable:$true] %s110
      %116 = dma.hbm_to_vmem [thread:$0]  %s10, 512, %s111, [#allocation12], 128, 128, 8
    $region45: #{tpu_custom_call.1} parent=1 // pred_fallthru
      _
    // Predicated region
    $region46: #{tpu_custom_call.1} parent=1 // pred_check
      _
    $region47: #{tpu_custom_call.1} parent=1 // pred_check_branch
      %118 = sbr.rel (0) target = $region49
    $region48: #{tpu_custom_call.1} parent=1 // pred_region
      %s120 = ssub.s32 512, 512
      %121 = vsyncadd [#allocation15], %s120
      %s122 = sshll.u32 [#allocation14], 4
      %s123 = int_to_ptr.vmem [resolvable:$true] %s122
      %128 = dma.hbm_to_vmem [thread:$0]  %s11, 512, %s123, [#allocation15], 128, 128, 8
    $region49: #{tpu_custom_call.1} parent=1 // pred_fallthru
      _
    // Predicated region
    $region50: #{tpu_custom_call.1} parent=1 // pred_check
      _
    $region51: #{tpu_custom_call.1} parent=1 // pred_check_branch
      %130 = sbr.rel (0) target = $region53
    $region52: #{tpu_custom_call.1} parent=1 // pred_region
      %s132 = ssub.s32 512, 512
      %133 = vsyncadd [#allocation15], %s132
      %s134 = sshll.u32 [#allocation16], 4
      %s135 = int_to_ptr.vmem [resolvable:$true] %s134
      %140 = dma.hbm_to_vmem [thread:$0]  %s12, 512, %s135, [#allocation15], 128, 128, 8
    $region53: #{tpu_custom_call.1} parent=1 // pred_fallthru
      _
    // Predicated region
    $region54: #{tpu_custom_call.1} parent=1 // pred_check
      _
    $region55: #{tpu_custom_call.1} parent=1 // pred_check_branch
      %142 = sbr.rel (0) target = $region57
    $region56: #{tpu_custom_call.1} parent=1 // pred_region
      _
    $region57: #{tpu_custom_call.1} parent=1 // pred_fallthru
      _
    // Predicated region
    $region58: #{tpu_custom_call.1} parent=1 // pred_check
      _
    $region59: #{tpu_custom_call.1} parent=1 // pred_check_branch
      %144 = sbr.rel (0) target = $region61
    $region60: #{tpu_custom_call.1} parent=1 // pred_region
      %145 = dma.done [#allocation3], 128
    $region61: #{tpu_custom_call.1} parent=1 // pred_fallthru
      _
    // Predicated region
    $region62: #{tpu_custom_call.1} parent=1 // pred_check
      _
    $region63: #{tpu_custom_call.1} parent=1 // pred_check_branch
      %147 = sbr.rel (0) target = $region65
    $region64: #{tpu_custom_call.1} parent=1 // pred_region
      %148 = dma.done [#allocation6], 128
    $region65: #{tpu_custom_call.1} parent=1 // pred_fallthru
      _
    // Predicated region
    $region66: #{tpu_custom_call.1} parent=1 // pred_check
      _
    $region67: #{tpu_custom_call.1} parent=1 // pred_check_branch
      %150 = sbr.rel (0) target = $region69
    $region68: #{tpu_custom_call.1} parent=1 // pred_region
      %151 = dma.done [#allocation6], 128
    $region69: #{tpu_custom_call.1} parent=1 // pred_fallthru
      _
    // Predicated region
    $region70: #{tpu_custom_call.1} parent=1 // pred_check
      _
    $region71: #{tpu_custom_call.1} parent=1 // pred_check_branch
      %153 = sbr.rel (0) target = $region73
    $region72: #{tpu_custom_call.1} parent=1 // pred_region
      %154 = dma.done [#allocation9], 512
    $region73: #{tpu_custom_call.1} parent=1 // pred_fallthru
      _
    // Predicated region
    $region74: #{tpu_custom_call.1} parent=1 // pred_check
      _
    $region75: #{tpu_custom_call.1} parent=1 // pred_check_branch
      %156 = sbr.rel (0) target = $region77
    $region76: #{tpu_custom_call.1} parent=1 // pred_region
      %157 = dma.done [#allocation9], 512
    $region77: #{tpu_custom_call.1} parent=1 // pred_fallthru
      _
    // Predicated region
    $region78: #{tpu_custom_call.1} parent=1 // pred_check
      _
    $region79: #{tpu_custom_call.1} parent=1 // pred_check_branch
      %159 = sbr.rel (0) target = $region81
    $region80: #{tpu_custom_call.1} parent=1 // pred_region
      %160 = dma.done [#allocation12], 512
    $region81: #{tpu_custom_call.1} parent=1 // pred_fallthru
      _
    // Predicated region
    $region82: #{tpu_custom_call.1} parent=1 // pred_check
      _
    $region83: #{tpu_custom_call.1} parent=1 // pred_check_branch
      %162 = sbr.rel (0) target = $region85
    $region84: #{tpu_custom_call.1} parent=1 // pred_region
      %163 = dma.done [#allocation12], 512
    $region85: #{tpu_custom_call.1} parent=1 // pred_fallthru
      _
    // Predicated region
    $region86: #{tpu_custom_call.1} parent=1 // pred_check
      _
    $region87: #{tpu_custom_call.1} parent=1 // pred_check_branch
      %165 = sbr.rel (0) target = $region89
    $region88: #{tpu_custom_call.1} parent=1 // pred_region
      %166 = dma.done [#allocation15], 512
    $region89: #{tpu_custom_call.1} parent=1 // pred_fallthru
      _
    // Predicated region
    $region90: #{tpu_custom_call.1} parent=1 // pred_check
      _
    $region91: #{tpu_custom_call.1} parent=1 // pred_check_branch
      %168 = sbr.rel (0) target = $region93
    $region92: #{tpu_custom_call.1} parent=1 // pred_region
      %169 = dma.done [#allocation15], 512
    $region93: #{tpu_custom_call.1} parent=1 // pred_fallthru
      _
    %v170 = vld [vmem:[#allocation2] sm:$0xff]
    %v171 = vld [vmem:[#allocation5] sm:$0xff]
    %v172 = vld [vmem:[%s4] sm:$0xff]
    %v173 = vld [vmem:[%s4 + $0x8] sm:$0xff]
    %v174 = vld [vmem:[%s4 + $0x10] sm:$0xff]
    %v175 = vld [vmem:[%s4 + $0x18] sm:$0xff]
    %vm176 = vcmask 261120
    %v178 = vsel %vm176, %v170, 0
    %180 = vmatprep.subr.mxu0 0.0
    %181 = vmatpush1.msra.mxu0 %v172
    %182 = vmatprep.subr.mxu0 0.0
    %183 = vmatpush1.msra.mxu0 %v173
    %184 = vmatprep.subr.mxu0 0.0
    %185 = vmatpush1.msra.mxu0 %v174
    %186 = vmatprep.subr.mxu0 0.0
    %187 = vmatpush1.msra.mxu0 %v175
    %188 = vmatprep.subr.mxu0 0.0
    %189 = vmatpush1.msra.mxu0 0.0
    %190 = vmatprep.subr.mxu0 0.0
    %191 = vmatpush1.msra.mxu0 0.0
    %192 = vmatprep.subr.mxu0 0.0
    %193 = vmatpush1.msra.mxu0 0.0
    %194 = vmatprep.subr.mxu0 0.0
    %195 = vmatpush1.msra.mxu0 0.0
    %196 = vmatprep.subr.mxu0 0.0
    %197 = vmatpush1.msra.mxu0 0.0
    %198 = vmatprep.subr.mxu0 0.0
    %199 = vmatpush1.msra.mxu0 0.0
    %200 = vmatprep.subr.mxu0 0.0
    %201 = vmatpush1.msra.mxu0 0.0
    %202 = vmatprep.subr.mxu0 0.0
    %203 = vmatpush1.msra.mxu0 0.0
    %204 = vmatprep.subr.mxu0 0.0
    %205 = vmatpush1.msra.mxu0 0.0
    %206 = vmatprep.subr.mxu0 0.0
    %207 = vmatpush1.msra.mxu0 0.0
    %208 = vmatprep.subr.mxu0 0.0
    %209 = vmatpush1.msra.mxu0 0.0
    %210 = vmatprep.subr.mxu0 0.0
    %211 = vmatpush1.msra.mxu0 0.0
    %212 = vmatprep.subr.mxu0 0.0
    %213 = vmatpush1.msra.mxu0 0.0
    %214 = vmatprep.subr.mxu0 0.0
    %215 = vmatpush1.msra.mxu0 0.0
    %216 = vmatprep.subr.mxu0 0.0
    %217 = vmatpush1.msra.mxu0 0.0
    %218 = vmatprep.subr.mxu0 0.0
    %219 = vmatpush1.msra.mxu0 0.0
    %220 = vmatprep.subr.mxu0 0.0
    %221 = vmatpush1.msra.mxu0 0.0
    %222 = vmatprep.subr.mxu0 0.0
    %223 = vmatpush1.msra.mxu0 0.0
    %224 = vmatprep.subr.mxu0 0.0
    %225 = vmatpush1.msra.mxu0 0.0
    %226 = vmatprep.subr.mxu0 0.0
    %227 = vmatpush1.msra.mxu0 0.0
    %228 = vmatprep.subr.mxu0 0.0
    %229 = vmatpush1.msra.mxu0 0.0
    %230 = vmatprep.subr.mxu0 0.0
    %231 = vmatpush1.msra.mxu0 0.0
    %232 = vmatprep.subr.mxu0 0.0
    %233 = vmatpush1.msra.mxu0 0.0
    %234 = vmatprep.subr.mxu0 0.0
    %235 = vmatpush1.msra.mxu0 0.0
    %236 = vmatprep.subr.mxu0 0.0
    %237 = vmatpush1.msra.mxu0 0.0
    %238 = vmatprep.subr.mxu0 0.0
    %239 = vmatpush1.msra.mxu0 0.0
    %240 = vmatprep.subr.mxu0 0.0
    %241 = vmatpush1.msra.mxu0 0.0
    %242 = vmatprep.subr.mxu0 0.0
    %243 = vmatpush1.msra.mxu0 0.0
    %244 = vmatprep.mubr.f32.mxu0 0.0
    %245 = vmatmul.mubr.f32.gmra.mrb[0].mxu0 %v178
    %v246 = vpop.f32.mrb[0].mxu0
    %v247 = vadd.f32 0.0, %v246
    %v248 = vpop.f32.mrb[0].mxu0
    %249 = vdwg.mxu0
    %v250 = vld [vmem:[%s5] sm:$0xff]
    %v251 = vld [vmem:[%s5 + $0x8] sm:$0xff]
    %v252 = vld [vmem:[%s5 + $0x10] sm:$0xff]
    %v253 = vld [vmem:[%s5 + $0x18] sm:$0xff]
    %254 = vmatprep.subr.mxu0 0.0
    %255 = vmatpush1.msra.mxu0 %v250
    %256 = vmatprep.subr.mxu0 0.0
    %257 = vmatpush1.msra.mxu0 %v251
    %258 = vmatprep.subr.mxu0 0.0
    %259 = vmatpush1.msra.mxu0 %v252
    %260 = vmatprep.subr.mxu0 0.0
    %261 = vmatpush1.msra.mxu0 %v253
    %262 = vmatprep.subr.mxu0 0.0
    %263 = vmatpush1.msra.mxu0 0.0
    %264 = vmatprep.subr.mxu0 0.0
    %265 = vmatpush1.msra.mxu0 0.0
    %266 = vmatprep.subr.mxu0 0.0
    %267 = vmatpush1.msra.mxu0 0.0
    %268 = vmatprep.subr.mxu0 0.0
    %269 = vmatpush1.msra.mxu0 0.0
    %270 = vmatprep.subr.mxu0 0.0
    %271 = vmatpush1.msra.mxu0 0.0
    %272 = vmatprep.subr.mxu0 0.0
    %273 = vmatpush1.msra.mxu0 0.0
    %274 = vmatprep.subr.mxu0 0.0
    %275 = vmatpush1.msra.mxu0 0.0
    %276 = vmatprep.subr.mxu0 0.0
    %277 = vmatpush1.msra.mxu0 0.0
    %278 = vmatprep.subr.mxu0 0.0
    %279 = vmatpush1.msra.mxu0 0.0
    %280 = vmatprep.subr.mxu0 0.0
    %281 = vmatpush1.msra.mxu0 0.0
    %282 = vmatprep.subr.mxu0 0.0
    %283 = vmatpush1.msra.mxu0 0.0
    %284 = vmatprep.subr.mxu0 0.0
    %285 = vmatpush1.msra.mxu0 0.0
    %286 = vmatprep.subr.mxu0 0.0
    %287 = vmatpush1.msra.mxu0 0.0
    %288 = vmatprep.subr.mxu0 0.0
    %289 = vmatpush1.msra.mxu0 0.0
    %290 = vmatprep.subr.mxu0 0.0
    %291 = vmatpush1.msra.mxu0 0.0
    %292 = vmatprep.subr.mxu0 0.0
    %293 = vmatpush1.msra.mxu0 0.0
    %294 = vmatprep.subr.mxu0 0.0
    %295 = vmatpush1.msra.mxu0 0.0
    %296 = vmatprep.subr.mxu0 0.0
    %297 = vmatpush1.msra.mxu0 0.0
    %298 = vmatprep.subr.mxu0 0.0
    %299 = vmatpush1.msra.mxu0 0.0
    %300 = vmatprep.subr.mxu0 0.0
    %301 = vmatpush1.msra.mxu0 0.0
    %302 = vmatprep.subr.mxu0 0.0
    %303 = vmatpush1.msra.mxu0 0.0
    %304 = vmatprep.subr.mxu0 0.0
    %305 = vmatpush1.msra.mxu0 0.0
    %306 = vmatprep.subr.mxu0 0.0
    %307 = vmatpush1.msra.mxu0 0.0
    %308 = vmatprep.subr.mxu0 0.0
    %309 = vmatpush1.msra.mxu0 0.0
    %310 = vmatprep.subr.mxu0 0.0
    %311 = vmatpush1.msra.mxu0 0.0
    %312 = vmatprep.subr.mxu0 0.0
    %313 = vmatpush1.msra.mxu0 0.0
    %314 = vmatprep.subr.mxu0 0.0
    %315 = vmatpush1.msra.mxu0 0.0
    %316 = vmatprep.subr.mxu0 0.0
    %317 = vmatpush1.msra.mxu0 0.0
    %318 = vmatprep.mubr.f32.mxu0 0.0
    %319 = vmatmul.mubr.f32.gmra.mrb[0].mxu0 %v178
    %v320 = vpop.f32.mrb[0].mxu0
    %v321 = vadd.f32 0.0, %v320
    %v322 = vpop.f32.mrb[0].mxu0
    %323 = vdwg.mxu0
    %v324 = vld [vmem:[%s6] sm:$0xff]
    %v325 = vld [vmem:[%s6 + $0x8] sm:$0xff]
    %v326 = vld [vmem:[%s6 + $0x10] sm:$0xff]
    %v327 = vld [vmem:[%s6 + $0x18] sm:$0xff]
    %328 = vmatprep.subr.mxu0 0.0
    %329 = vmatpush1.msra.mxu0 %v324
    %330 = vmatprep.subr.mxu0 0.0
    %331 = vmatpush1.msra.mxu0 %v325
    %332 = vmatprep.subr.mxu0 0.0
    %333 = vmatpush1.msra.mxu0 %v326
    %334 = vmatprep.subr.mxu0 0.0
    %335 = vmatpush1.msra.mxu0 %v327
    %336 = vmatprep.subr.mxu0 0.0
    %337 = vmatpush1.msra.mxu0 0.0
    %338 = vmatprep.subr.mxu0 0.0
    %339 = vmatpush1.msra.mxu0 0.0
    %340 = vmatprep.subr.mxu0 0.0
    %341 = vmatpush1.msra.mxu0 0.0
    %342 = vmatprep.subr.mxu0 0.0
    %343 = vmatpush1.msra.mxu0 0.0
    %344 = vmatprep.subr.mxu0 0.0
    %345 = vmatpush1.msra.mxu0 0.0
    %346 = vmatprep.subr.mxu0 0.0
    %347 = vmatpush1.msra.mxu0 0.0
    %348 = vmatprep.subr.mxu0 0.0
    %349 = vmatpush1.msra.mxu0 0.0
    %350 = vmatprep.subr.mxu0 0.0
    %351 = vmatpush1.msra.mxu0 0.0
    %352 = vmatprep.subr.mxu0 0.0
    %353 = vmatpush1.msra.mxu0 0.0
    %354 = vmatprep.subr.mxu0 0.0
    %355 = vmatpush1.msra.mxu0 0.0
    %356 = vmatprep.subr.mxu0 0.0
    %357 = vmatpush1.msra.mxu0 0.0
    %358 = vmatprep.subr.mxu0 0.0
    %359 = vmatpush1.msra.mxu0 0.0
    %360 = vmatprep.subr.mxu0 0.0
    %361 = vmatpush1.msra.mxu0 0.0
    %362 = vmatprep.subr.mxu0 0.0
    %363 = vmatpush1.msra.mxu0 0.0
    %364 = vmatprep.subr.mxu0 0.0
    %365 = vmatpush1.msra.mxu0 0.0
    %366 = vmatprep.subr.mxu0 0.0
    %367 = vmatpush1.msra.mxu0 0.0
    %368 = vmatprep.subr.mxu0 0.0
    %369 = vmatpush1.msra.mxu0 0.0
    %370 = vmatprep.subr.mxu0 0.0
    %371 = vmatpush1.msra.mxu0 0.0
    %372 = vmatprep.subr.mxu0 0.0
    %373 = vmatpush1.msra.mxu0 0.0
    %374 = vmatprep.subr.mxu0 0.0
    %375 = vmatpush1.msra.mxu0 0.0
    %376 = vmatprep.subr.mxu0 0.0
    %377 = vmatpush1.msra.mxu0 0.0
    %378 = vmatprep.subr.mxu0 0.0
    %379 = vmatpush1.msra.mxu0 0.0
    %380 = vmatprep.subr.mxu0 0.0
    %381 = vmatpush1.msra.mxu0 0.0
    %382 = vmatprep.subr.mxu0 0.0
    %383 = vmatpush1.msra.mxu0 0.0
    %384 = vmatprep.subr.mxu0 0.0
    %385 = vmatpush1.msra.mxu0 0.0
    %386 = vmatprep.subr.mxu0 0.0
    %387 = vmatpush1.msra.mxu0 0.0
    %388 = vmatprep.subr.mxu0 0.0
    %389 = vmatpush1.msra.mxu0 0.0
    %390 = vmatprep.subr.mxu0 0.0
    %391 = vmatpush1.msra.mxu0 0.0
    %392 = vmatprep.mubr.f32.mxu0 0.0
    %393 = vmatmul.mubr.f32.gmra.mrb[0].mxu0 %v178
    %v394 = vpop.f32.mrb[0].mxu0
    %v395 = vadd.f32 0.0, %v394
    %v396 = vpop.f32.mrb[0].mxu0
    %397 = vdwg.mxu0
    %399 = vrot.lane.b32.xlu0 %v247, 120
    %v400 = vpop.permute.xlu0 %399
    %401 = vrot.lane.b32.xlu0 %v247, 112
    %v402 = vpop.permute.xlu0 %401
    %403 = vrot.lane.b32.xlu0 %v247, 104
    %v404 = vpop.permute.xlu0 %403
    %406 = vrot.lane.b32.xlu0 %v321, 120
    %v407 = vpop.permute.xlu0 %406
    %409 = vrot.lane.b32.xlu0 %v321, 112
    %v410 = vpop.permute.xlu0 %409
    %412 = vrot.lane.b32.xlu0 %v321, 104
    %v413 = vpop.permute.xlu0 %412
    %416 = vrot.lane.b32.xlu0 %v395, 120
    %v417 = vpop.permute.xlu0 %416
    %419 = vrot.lane.b32.xlu0 %v395, 112
    %v420 = vpop.permute.xlu0 %419
    %422 = vrot.lane.b32.xlu0 %v395, 104
    %v423 = vpop.permute.xlu0 %422
    %v425 = vcombine.low %v395, %v420
    %v427 = vunpack.c.l.s4 1983009808
    %v428 = vunpack.c.0.s8 %v427
    %v429 = vlaneseq
    %v430 = vshrl.u32 %v429, 7
    %v431 = vsub.s32 %v428, %v430
    %v432 = vrot.slane %v425, %v431
    %v433 = vcombine.low %v417, %v423
    %v435 = vunpack.c.l.s4 1983009808
    %v436 = vunpack.c.0.s8 %v435
    %v437 = vlaneseq
    %v438 = vshrl.u32 %v437, 7
    %v439 = vsub.s32 %v436, %v438
    %v440 = vrot.slane %v433, %v439
    %v441 = vcombine.low %v432, %v440
    %v442 = vcombine.high %v432, %v440
    %v444 = vunpack.c.l.s4 1934713408
    %v445 = vunpack.c.0.s8 %v444
    %v446 = vlaneseq
    %v447 = vshrl.u32 %v446, 7
    %v448 = vsub.s32 %v445, %v447
    %v449 = vrot.slane %v441, %v448
    %v451 = vunpack.c.l.s4 1934713408
    %v452 = vunpack.c.0.s8 %v451
    %v453 = vlaneseq
    %v454 = vshrl.u32 %v453, 7
    %v455 = vsub.s32 %v452, %v454
    %v456 = vrot.slane %v442, %v455
    %v457 = vcombine.high %v449, 0.0
    %v458 = vcombine.high %v456, 0.0
    %459 = vxpose.xlu0.b32.start [1/16] %v321, 128
    %460 = vxpose.xlu0.b32.cont [2/16] 0.0, 128
    %461 = vxpose.xlu0.b32.cont [3/16] 0.0, 128
    %462 = vxpose.xlu0.b32.cont [4/16] 0.0, 128
    %463 = vxpose.xlu0.b32.cont [5/16] 0.0, 128
    %464 = vxpose.xlu0.b32.cont [6/16] 0.0, 128
    %465 = vxpose.xlu0.b32.cont [7/16] 0.0, 128
    %466 = vxpose.xlu0.b32.cont [8/16] 0.0, 128
    %467 = vxpose.xlu0.b32.cont [9/16] 0.0, 128
    %468 = vxpose.xlu0.b32.cont [10/16] 0.0, 128
    %469 = vxpose.xlu0.b32.cont [11/16] 0.0, 128
    %470 = vxpose.xlu0.b32.cont [12/16] 0.0, 128
    %471 = vxpose.xlu0.b32.cont [13/16] 0.0, 128
    %472 = vxpose.xlu0.b32.cont [14/16] 0.0, 128
    %473 = vxpose.xlu0.b32.cont [15/16] 0.0, 128
    %474 = vxpose.xlu0.b32.end [16/16] 0.0, 128
    %v475 = vpop.trf.xlu0
    %v476 = vpop.trf.xlu0
    %v477 = vpop.trf.xlu0
    %v478 = vpop.trf.xlu0
    %v479 = vpop.trf.xlu0
    %v480 = vpop.trf.xlu0
    %v481 = vpop.trf.xlu0
    %v482 = vpop.trf.xlu0
    %v483 = vpop.trf.xlu0
    %v484 = vpop.trf.xlu0
    %v485 = vpop.trf.xlu0
    %v486 = vpop.trf.xlu0
    %v487 = vpop.trf.xlu0
    %v488 = vpop.trf.xlu0
    %v489 = vpop.trf.xlu0
    %v490 = vpop.trf.xlu0
    %491 = vxpose.xlu0.b32.start [1/16] %v407, 128
    %492 = vxpose.xlu0.b32.cont [2/16] 0.0, 128
    %493 = vxpose.xlu0.b32.cont [3/16] 0.0, 128
    %494 = vxpose.xlu0.b32.cont [4/16] 0.0, 128
    %495 = vxpose.xlu0.b32.cont [5/16] 0.0, 128
    %496 = vxpose.xlu0.b32.cont [6/16] 0.0, 128
    %497 = vxpose.xlu0.b32.cont [7/16] 0.0, 128
    %498 = vxpose.xlu0.b32.cont [8/16] 0.0, 128
    %499 = vxpose.xlu0.b32.cont [9/16] 0.0, 128
    %500 = vxpose.xlu0.b32.cont [10/16] 0.0, 128
    %501 = vxpose.xlu0.b32.cont [11/16] 0.0, 128
    %502 = vxpose.xlu0.b32.cont [12/16] 0.0, 128
    %503 = vxpose.xlu0.b32.cont [13/16] 0.0, 128
    %504 = vxpose.xlu0.b32.cont [14/16] 0.0, 128
    %505 = vxpose.xlu0.b32.cont [15/16] 0.0, 128
    %506 = vxpose.xlu0.b32.end [16/16] 0.0, 128
    %v507 = vpop.trf.xlu0
    %v508 = vpop.trf.xlu0
    %v509 = vpop.trf.xlu0
    %v510 = vpop.trf.xlu0
    %v511 = vpop.trf.xlu0
    %v512 = vpop.trf.xlu0
    %v513 = vpop.trf.xlu0
    %v514 = vpop.trf.xlu0
    %v515 = vpop.trf.xlu0
    %v516 = vpop.trf.xlu0
    %v517 = vpop.trf.xlu0
    %v518 = vpop.trf.xlu0
    %v519 = vpop.trf.xlu0
    %v520 = vpop.trf.xlu0
    %v521 = vpop.trf.xlu0
    %v522 = vpop.trf.xlu0
    %523 = vxpose.xlu0.b32.start [1/16] %v410, 128
    %524 = vxpose.xlu0.b32.cont [2/16] 0.0, 128
    %525 = vxpose.xlu0.b32.cont [3/16] 0.0, 128
    %526 = vxpose.xlu0.b32.cont [4/16] 0.0, 128
    %527 = vxpose.xlu0.b32.cont [5/16] 0.0, 128
    %528 = vxpose.xlu0.b32.cont [6/16] 0.0, 128
    %529 = vxpose.xlu0.b32.cont [7/16] 0.0, 128
    %530 = vxpose.xlu0.b32.cont [8/16] 0.0, 128
    %531 = vxpose.xlu0.b32.cont [9/16] 0.0, 128
    %532 = vxpose.xlu0.b32.cont [10/16] 0.0, 128
    %533 = vxpose.xlu0.b32.cont [11/16] 0.0, 128
    %534 = vxpose.xlu0.b32.cont [12/16] 0.0, 128
    %535 = vxpose.xlu0.b32.cont [13/16] 0.0, 128
    %536 = vxpose.xlu0.b32.cont [14/16] 0.0, 128
    %537 = vxpose.xlu0.b32.cont [15/16] 0.0, 128
    %538 = vxpose.xlu0.b32.end [16/16] 0.0, 128
    %v539 = vpop.trf.xlu0
    %v540 = vpop.trf.xlu0
    %v541 = vpop.trf.xlu0
    %v542 = vpop.trf.xlu0
    %v543 = vpop.trf.xlu0
    %v544 = vpop.trf.xlu0
    %v545 = vpop.trf.xlu0
    %v546 = vpop.trf.xlu0
    %v547 = vpop.trf.xlu0
    %v548 = vpop.trf.xlu0
    %v549 = vpop.trf.xlu0
    %v550 = vpop.trf.xlu0
    %v551 = vpop.trf.xlu0
    %v552 = vpop.trf.xlu0
    %v553 = vpop.trf.xlu0
    %v554 = vpop.trf.xlu0
    %555 = vxpose.xlu0.b32.start [1/16] %v413, 128
    %556 = vxpose.xlu0.b32.cont [2/16] 0.0, 128
    %557 = vxpose.xlu0.b32.cont [3/16] 0.0, 128
    %558 = vxpose.xlu0.b32.cont [4/16] 0.0, 128
    %559 = vxpose.xlu0.b32.cont [5/16] 0.0, 128
    %560 = vxpose.xlu0.b32.cont [6/16] 0.0, 128
    %561 = vxpose.xlu0.b32.cont [7/16] 0.0, 128
    %562 = vxpose.xlu0.b32.cont [8/16] 0.0, 128
    %563 = vxpose.xlu0.b32.cont [9/16] 0.0, 128
    %564 = vxpose.xlu0.b32.cont [10/16] 0.0, 128
    %565 = vxpose.xlu0.b32.cont [11/16] 0.0, 128
    %566 = vxpose.xlu0.b32.cont [12/16] 0.0, 128
    %567 = vxpose.xlu0.b32.cont [13/16] 0.0, 128
    %568 = vxpose.xlu0.b32.cont [14/16] 0.0, 128
    %569 = vxpose.xlu0.b32.cont [15/16] 0.0, 128
    %570 = vxpose.xlu0.b32.end [16/16] 0.0, 128
    %v571 = vpop.trf.xlu0
    %v572 = vpop.trf.xlu0
    %v573 = vpop.trf.xlu0
    %v574 = vpop.trf.xlu0
    %v575 = vpop.trf.xlu0
    %v576 = vpop.trf.xlu0
    %v577 = vpop.trf.xlu0
    %v578 = vpop.trf.xlu0
    %v579 = vpop.trf.xlu0
    %v580 = vpop.trf.xlu0
    %v581 = vpop.trf.xlu0
    %v582 = vpop.trf.xlu0
    %v583 = vpop.trf.xlu0
    %v584 = vpop.trf.xlu0
    %v585 = vpop.trf.xlu0
    %v586 = vpop.trf.xlu0
    %vm587 = vcmask 64512
    %v588 = vsel %vm587, %v247, 0
    %590 = vmatprep.subr.mxu0 0.0
    %591 = vmatpush1.msra.mxu0 %v475
    %592 = vmatprep.subr.mxu0 0.0
    %593 = vmatpush1.msra.mxu0 0.0
    %594 = vmatprep.subr.mxu0 0.0
    %595 = vmatpush1.msra.mxu0 0.0
    %596 = vmatprep.subr.mxu0 0.0
    %597 = vmatpush1.msra.mxu0 0.0
    %598 = vmatprep.subr.mxu0 0.0
    %599 = vmatpush1.msra.mxu0 0.0
    %600 = vmatprep.subr.mxu0 0.0
    %601 = vmatpush1.msra.mxu0 0.0
    %602 = vmatprep.subr.mxu0 0.0
    %603 = vmatpush1.msra.mxu0 0.0
    %604 = vmatprep.subr.mxu0 0.0
    %605 = vmatpush1.msra.mxu0 0.0
    %606 = vmatprep.subr.mxu0 0.0
    %607 = vmatpush1.msra.mxu0 0.0
    %608 = vmatprep.subr.mxu0 0.0
    %609 = vmatpush1.msra.mxu0 0.0
    %610 = vmatprep.subr.mxu0 0.0
    %611 = vmatpush1.msra.mxu0 0.0
    %612 = vmatprep.subr.mxu0 0.0
    %613 = vmatpush1.msra.mxu0 0.0
    %614 = vmatprep.subr.mxu0 0.0
    %615 = vmatpush1.msra.mxu0 0.0
    %616 = vmatprep.subr.mxu0 0.0
    %617 = vmatpush1.msra.mxu0 0.0
    %618 = vmatprep.subr.mxu0 0.0
    %619 = vmatpush1.msra.mxu0 0.0
    %620 = vmatprep.subr.mxu0 0.0
    %621 = vmatpush1.msra.mxu0 0.0
    %622 = vmatprep.subr.mxu0 0.0
    %623 = vmatpush1.msra.mxu0 0.0
    %624 = vmatprep.subr.mxu0 0.0
    %625 = vmatpush1.msra.mxu0 0.0
    %626 = vmatprep.subr.mxu0 0.0
    %627 = vmatpush1.msra.mxu0 0.0
    %628 = vmatprep.subr.mxu0 0.0
    %629 = vmatpush1.msra.mxu0 0.0
    %630 = vmatprep.subr.mxu0 0.0
    %631 = vmatpush1.msra.mxu0 0.0
    %632 = vmatprep.subr.mxu0 0.0
    %633 = vmatpush1.msra.mxu0 0.0
    %634 = vmatprep.subr.mxu0 0.0
    %635 = vmatpush1.msra.mxu0 0.0
    %636 = vmatprep.subr.mxu0 0.0
    %637 = vmatpush1.msra.mxu0 0.0
    %638 = vmatprep.subr.mxu0 0.0
    %639 = vmatpush1.msra.mxu0 0.0
    %640 = vmatprep.subr.mxu0 0.0
    %641 = vmatpush1.msra.mxu0 0.0
    %642 = vmatprep.subr.mxu0 0.0
    %643 = vmatpush1.msra.mxu0 0.0
    %644 = vmatprep.subr.mxu0 0.0
    %645 = vmatpush1.msra.mxu0 0.0
    %646 = vmatprep.subr.mxu0 0.0
    %647 = vmatpush1.msra.mxu0 0.0
    %648 = vmatprep.subr.mxu0 0.0
    %649 = vmatpush1.msra.mxu0 0.0
    %650 = vmatprep.subr.mxu0 0.0
    %651 = vmatpush1.msra.mxu0 0.0
    %652 = vmatprep.subr.mxu0 0.0
    %653 = vmatpush1.msra.mxu0 0.0
    %654 = vmatprep.mubr.f32.mxu0 0.0
    %655 = vmatmul.mubr.f32.gmra.mrb[0].mxu0 %v588
    %v656 = vpop.f32.mrb[0].mxu0
    %v657 = vadd.f32 0.0, %v656
    %v658 = vpop.f32.mrb[0].mxu0
    %659 = vdwg.mxu0
    %v660 = vsel %vm587, %v400, 0
    %662 = vmatprep.subr.mxu0 0.0
    %663 = vmatpush1.msra.mxu0 %v507
    %664 = vmatprep.subr.mxu0 0.0
    %665 = vmatpush1.msra.mxu0 0.0
    %666 = vmatprep.subr.mxu0 0.0
    %667 = vmatpush1.msra.mxu0 0.0
    %668 = vmatprep.subr.mxu0 0.0
    %669 = vmatpush1.msra.mxu0 0.0
    %670 = vmatprep.subr.mxu0 0.0
    %671 = vmatpush1.msra.mxu0 0.0
    %672 = vmatprep.subr.mxu0 0.0
    %673 = vmatpush1.msra.mxu0 0.0
    %674 = vmatprep.subr.mxu0 0.0
    %675 = vmatpush1.msra.mxu0 0.0
    %676 = vmatprep.subr.mxu0 0.0
    %677 = vmatpush1.msra.mxu0 0.0
    %678 = vmatprep.subr.mxu0 0.0
    %679 = vmatpush1.msra.mxu0 0.0
    %680 = vmatprep.subr.mxu0 0.0
    %681 = vmatpush1.msra.mxu0 0.0
    %682 = vmatprep.subr.mxu0 0.0
    %683 = vmatpush1.msra.mxu0 0.0
    %684 = vmatprep.subr.mxu0 0.0
    %685 = vmatpush1.msra.mxu0 0.0
    %686 = vmatprep.subr.mxu0 0.0
    %687 = vmatpush1.msra.mxu0 0.0
    %688 = vmatprep.subr.mxu0 0.0
    %689 = vmatpush1.msra.mxu0 0.0
    %690 = vmatprep.subr.mxu0 0.0
    %691 = vmatpush1.msra.mxu0 0.0
    %692 = vmatprep.subr.mxu0 0.0
    %693 = vmatpush1.msra.mxu0 0.0
    %694 = vmatprep.subr.mxu0 0.0
    %695 = vmatpush1.msra.mxu0 0.0
    %696 = vmatprep.subr.mxu0 0.0
    %697 = vmatpush1.msra.mxu0 0.0
    %698 = vmatprep.subr.mxu0 0.0
    %699 = vmatpush1.msra.mxu0 0.0
    %700 = vmatprep.subr.mxu0 0.0
    %701 = vmatpush1.msra.mxu0 0.0
    %702 = vmatprep.subr.mxu0 0.0
    %703 = vmatpush1.msra.mxu0 0.0
    %704 = vmatprep.subr.mxu0 0.0
    %705 = vmatpush1.msra.mxu0 0.0
    %706 = vmatprep.subr.mxu0 0.0
    %707 = vmatpush1.msra.mxu0 0.0
    %708 = vmatprep.subr.mxu0 0.0
    %709 = vmatpush1.msra.mxu0 0.0
    %710 = vmatprep.subr.mxu0 0.0
    %711 = vmatpush1.msra.mxu0 0.0
    %712 = vmatprep.subr.mxu0 0.0
    %713 = vmatpush1.msra.mxu0 0.0
    %714 = vmatprep.subr.mxu0 0.0
    %715 = vmatpush1.msra.mxu0 0.0
    %716 = vmatprep.subr.mxu0 0.0
    %717 = vmatpush1.msra.mxu0 0.0
    %718 = vmatprep.subr.mxu0 0.0
    %719 = vmatpush1.msra.mxu0 0.0
    %720 = vmatprep.subr.mxu0 0.0
    %721 = vmatpush1.msra.mxu0 0.0
    %722 = vmatprep.subr.mxu0 0.0
    %723 = vmatpush1.msra.mxu0 0.0
    %724 = vmatprep.subr.mxu0 0.0
    %725 = vmatpush1.msra.mxu0 0.0
    %726 = vmatprep.mubr.f32.mxu0 0.0
    %727 = vmatmul.mubr.f32.gmra.mrb[0].mxu0 %v660
    %v728 = vpop.f32.mrb[0].mxu0
    %v729 = vadd.f32 0.0, %v728
    %v730 = vpop.f32.mrb[0].mxu0
    %731 = vdwg.mxu0
    %v732 = vsel %vm587, %v402, 0
    %734 = vmatprep.subr.mxu0 0.0
    %735 = vmatpush1.msra.mxu0 %v539
    %736 = vmatprep.subr.mxu0 0.0
    %737 = vmatpush1.msra.mxu0 0.0
    %738 = vmatprep.subr.mxu0 0.0
    %739 = vmatpush1.msra.mxu0 0.0
    %740 = vmatprep.subr.mxu0 0.0
    %741 = vmatpush1.msra.mxu0 0.0
    %742 = vmatprep.subr.mxu0 0.0
    %743 = vmatpush1.msra.mxu0 0.0
    %744 = vmatprep.subr.mxu0 0.0
    %745 = vmatpush1.msra.mxu0 0.0
    %746 = vmatprep.subr.mxu0 0.0
    %747 = vmatpush1.msra.mxu0 0.0
    %748 = vmatprep.subr.mxu0 0.0
    %749 = vmatpush1.msra.mxu0 0.0
    %750 = vmatprep.subr.mxu0 0.0
    %751 = vmatpush1.msra.mxu0 0.0
    %752 = vmatprep.subr.mxu0 0.0
    %753 = vmatpush1.msra.mxu0 0.0
    %754 = vmatprep.subr.mxu0 0.0
    %755 = vmatpush1.msra.mxu0 0.0
    %756 = vmatprep.subr.mxu0 0.0
    %757 = vmatpush1.msra.mxu0 0.0
    %758 = vmatprep.subr.mxu0 0.0
    %759 = vmatpush1.msra.mxu0 0.0
    %760 = vmatprep.subr.mxu0 0.0
    %761 = vmatpush1.msra.mxu0 0.0
    %762 = vmatprep.subr.mxu0 0.0
    %763 = vmatpush1.msra.mxu0 0.0
    %764 = vmatprep.subr.mxu0 0.0
    %765 = vmatpush1.msra.mxu0 0.0
    %766 = vmatprep.subr.mxu0 0.0
    %767 = vmatpush1.msra.mxu0 0.0
    %768 = vmatprep.subr.mxu0 0.0
    %769 = vmatpush1.msra.mxu0 0.0
    %770 = vmatprep.subr.mxu0 0.0
    %771 = vmatpush1.msra.mxu0 0.0
    %772 = vmatprep.subr.mxu0 0.0
    %773 = vmatpush1.msra.mxu0 0.0
    %774 = vmatprep.subr.mxu0 0.0
    %775 = vmatpush1.msra.mxu0 0.0
    %776 = vmatprep.subr.mxu0 0.0
    %777 = vmatpush1.msra.mxu0 0.0
    %778 = vmatprep.subr.mxu0 0.0
    %779 = vmatpush1.msra.mxu0 0.0
    %780 = vmatprep.subr.mxu0 0.0
    %781 = vmatpush1.msra.mxu0 0.0
    %782 = vmatprep.subr.mxu0 0.0
    %783 = vmatpush1.msra.mxu0 0.0
    %784 = vmatprep.subr.mxu0 0.0
    %785 = vmatpush1.msra.mxu0 0.0
    %786 = vmatprep.subr.mxu0 0.0
    %787 = vmatpush1.msra.mxu0 0.0
    %788 = vmatprep.subr.mxu0 0.0
    %789 = vmatpush1.msra.mxu0 0.0
    %790 = vmatprep.subr.mxu0 0.0
    %791 = vmatpush1.msra.mxu0 0.0
    %792 = vmatprep.subr.mxu0 0.0
    %793 = vmatpush1.msra.mxu0 0.0
    %794 = vmatprep.subr.mxu0 0.0
    %795 = vmatpush1.msra.mxu0 0.0
    %796 = vmatprep.subr.mxu0 0.0
    %797 = vmatpush1.msra.mxu0 0.0
    %798 = vmatprep.mubr.f32.mxu0 0.0
    %799 = vmatmul.mubr.f32.gmra.mrb[0].mxu0 %v732
    %v800 = vpop.f32.mrb[0].mxu0
    %v801 = vadd.f32 0.0, %v800
    %v802 = vpop.f32.mrb[0].mxu0
    %803 = vdwg.mxu0
    %v804 = vsel %vm587, %v404, 0
    %806 = vmatprep.subr.mxu0 0.0
    %807 = vmatpush1.msra.mxu0 %v571
    %808 = vmatprep.subr.mxu0 0.0
    %809 = vmatpush1.msra.mxu0 0.0
    %810 = vmatprep.subr.mxu0 0.0
    %811 = vmatpush1.msra.mxu0 0.0
    %812 = vmatprep.subr.mxu0 0.0
    %813 = vmatpush1.msra.mxu0 0.0
    %814 = vmatprep.subr.mxu0 0.0
    %815 = vmatpush1.msra.mxu0 0.0
    %816 = vmatprep.subr.mxu0 0.0
    %817 = vmatpush1.msra.mxu0 0.0
    %818 = vmatprep.subr.mxu0 0.0
    %819 = vmatpush1.msra.mxu0 0.0
    %820 = vmatprep.subr.mxu0 0.0
    %821 = vmatpush1.msra.mxu0 0.0
    %822 = vmatprep.subr.mxu0 0.0
    %823 = vmatpush1.msra.mxu0 0.0
    %824 = vmatprep.subr.mxu0 0.0
    %825 = vmatpush1.msra.mxu0 0.0
    %826 = vmatprep.subr.mxu0 0.0
    %827 = vmatpush1.msra.mxu0 0.0
    %828 = vmatprep.subr.mxu0 0.0
    %829 = vmatpush1.msra.mxu0 0.0
    %830 = vmatprep.subr.mxu0 0.0
    %831 = vmatpush1.msra.mxu0 0.0
    %832 = vmatprep.subr.mxu0 0.0
    %833 = vmatpush1.msra.mxu0 0.0
    %834 = vmatprep.subr.mxu0 0.0
    %835 = vmatpush1.msra.mxu0 0.0
    %836 = vmatprep.subr.mxu0 0.0
    %837 = vmatpush1.msra.mxu0 0.0
    %838 = vmatprep.subr.mxu0 0.0
    %839 = vmatpush1.msra.mxu0 0.0
    %840 = vmatprep.subr.mxu0 0.0
    %841 = vmatpush1.msra.mxu0 0.0
    %842 = vmatprep.subr.mxu0 0.0
    %843 = vmatpush1.msra.mxu0 0.0
    %844 = vmatprep.subr.mxu0 0.0
    %845 = vmatpush1.msra.mxu0 0.0
    %846 = vmatprep.subr.mxu0 0.0
    %847 = vmatpush1.msra.mxu0 0.0
    %848 = vmatprep.subr.mxu0 0.0
    %849 = vmatpush1.msra.mxu0 0.0
    %850 = vmatprep.subr.mxu0 0.0
    %851 = vmatpush1.msra.mxu0 0.0
    %852 = vmatprep.subr.mxu0 0.0
    %853 = vmatpush1.msra.mxu0 0.0
    %854 = vmatprep.subr.mxu0 0.0
    %855 = vmatpush1.msra.mxu0 0.0
    %856 = vmatprep.subr.mxu0 0.0
    %857 = vmatpush1.msra.mxu0 0.0
    %858 = vmatprep.subr.mxu0 0.0
    %859 = vmatpush1.msra.mxu0 0.0
    %860 = vmatprep.subr.mxu0 0.0
    %861 = vmatpush1.msra.mxu0 0.0
    %862 = vmatprep.subr.mxu0 0.0
    %863 = vmatpush1.msra.mxu0 0.0
    %864 = vmatprep.subr.mxu0 0.0
    %865 = vmatpush1.msra.mxu0 0.0
    %866 = vmatprep.subr.mxu0 0.0
    %867 = vmatpush1.msra.mxu0 0.0
    %868 = vmatprep.subr.mxu0 0.0
    %869 = vmatpush1.msra.mxu0 0.0
    %870 = vmatprep.mubr.f32.mxu0 0.0
    %871 = vmatmul.mubr.f32.gmra.mrb[0].mxu0 %v804
    %v872 = vpop.f32.mrb[0].mxu0
    %v873 = vadd.f32 0.0, %v872
    %v874 = vpop.f32.mrb[0].mxu0
    %875 = vdwg.mxu0
    %v876 = vrcp.pop 2.828427
    %v877 = vmul.f32 %v657, %v876
    %v878 = vmul.f32 %v729, %v876
    %v879 = vmul.f32 %v801, %v876
    %v880 = vmul.f32 %v873, %v876
    %v881 = vld [vmem:[#allocation7] sm:$0xf]
    %v882 = vadd.f32 %v877, %v881
    %v883 = vadd.f32 %v878, %v881
    %v884 = vadd.f32 %v879, %v881
    %v885 = vadd.f32 %v880, %v881
    %vm886 = vcmask 27648
    %v887 = vsel %vm886, %v882, -inf
    %888 = vmax.xlane.f32.xlu0 %v887
    %v889 = vpop.xlane.xlu0 %888
    %v890 = vsel %vm886, %v883, -inf
    %891 = vmax.xlane.f32.xlu0 %v890
    %v892 = vpop.xlane.xlu0 %891
    %v893 = vsel %vm886, %v884, -inf
    %894 = vmax.xlane.f32.xlu0 %v893
    %v895 = vpop.xlane.xlu0 %894
    %v896 = vsel %vm886, %v885, -inf
    %897 = vmax.xlane.f32.xlu0 %v896
    %v898 = vpop.xlane.xlu0 %897
    %v899 = vsub.f32 %v882, %v889
    %v900 = vsub.f32 %v883, %v892
    %v901 = vsub.f32 %v884, %v895
    %v902 = vsub.f32 %v885, %v898
    %v903 = vmul.f32 %v899, 1.442695
    %v904 = vpow.pop %v903
    %v905 = vmul.f32 %v900, 1.442695
    %v906 = vpow.pop %v905
    %v907 = vmul.f32 %v901, 1.442695
    %v908 = vpow.pop %v907
    %v909 = vmul.f32 %v902, 1.442695
    %v910 = vpow.pop %v909
    %v911 = vsel %vm886, %v904, 0.0
    %912 = vadd.xlane.f32.xlu0 %v911
    %v913 = vpop.xlane.xlu0 %912
    %v914 = vsel %vm886, %v906, 0.0
    %915 = vadd.xlane.f32.xlu0 %v914
    %v916 = vpop.xlane.xlu0 %915
    %v917 = vsel %vm886, %v908, 0.0
    %918 = vadd.xlane.f32.xlu0 %v917
    %v919 = vpop.xlane.xlu0 %918
    %v920 = vsel %vm886, %v910, 0.0
    %921 = vadd.xlane.f32.xlu0 %v920
    %v922 = vpop.xlane.xlu0 %921
    %v923 = vrcp.pop %v913
    %v924 = vrcp.pop %v916
    %v925 = vrcp.pop %v919
    %v926 = vrcp.pop %v922
    %v927 = vmul.f32 %v904, %v923
    %v928 = vmul.f32 %v906, %v924
    %v929 = vmul.f32 %v908, %v925
    %v930 = vmul.f32 %v910, %v926
    %931 = vxpose.xlu0.b32.start [1/16] %v449, 128
    %932 = vxpose.xlu0.b32.cont [2/16] 0.0, 128
    %933 = vxpose.xlu0.b32.cont [3/16] 0.0, 128
    %934 = vxpose.xlu0.b32.cont [4/16] 0.0, 128
    %935 = vxpose.xlu0.b32.cont [5/16] 0.0, 128
    %936 = vxpose.xlu0.b32.cont [6/16] 0.0, 128
    %937 = vxpose.xlu0.b32.cont [7/16] 0.0, 128
    %938 = vxpose.xlu0.b32.cont [8/16] 0.0, 128
    %939 = vxpose.xlu0.b32.cont [9/16] 0.0, 128
    %940 = vxpose.xlu0.b32.cont [10/16] 0.0, 128
    %941 = vxpose.xlu0.b32.cont [11/16] 0.0, 128
    %942 = vxpose.xlu0.b32.cont [12/16] 0.0, 128
    %943 = vxpose.xlu0.b32.cont [13/16] 0.0, 128
    %944 = vxpose.xlu0.b32.cont [14/16] 0.0, 128
    %945 = vxpose.xlu0.b32.cont [15/16] 0.0, 128
    %946 = vxpose.xlu0.b32.end [16/16] 0.0, 128
    %v947 = vpop.trf.xlu0
    %v948 = vpop.trf.xlu0
    %v949 = vpop.trf.xlu0
    %v950 = vpop.trf.xlu0
    %v951 = vpop.trf.xlu0
    %v952 = vpop.trf.xlu0
    %v953 = vpop.trf.xlu0
    %v954 = vpop.trf.xlu0
    %v955 = vpop.trf.xlu0
    %v956 = vpop.trf.xlu0
    %v957 = vpop.trf.xlu0
    %v958 = vpop.trf.xlu0
    %v959 = vpop.trf.xlu0
    %v960 = vpop.trf.xlu0
    %v961 = vpop.trf.xlu0
    %v962 = vpop.trf.xlu0
    %vm963 = vcmask 31744
    %v965 = vsel %vm963, %v947, 0
    %v968 = vsel %vm963, %v927, 0
    %970 = vmatprep.subr.mxu0 0.0
    %971 = vmatpush1.xpose.msra.mxu0 %v968
    %972 = vmatprep.subr.mxu0 0.0
    %973 = vmatpush1.xpose.msra.mxu0 0.0
    %974 = vmatprep.subr.mxu0 0.0
    %975 = vmatpush1.xpose.msra.mxu0 0.0
    %976 = vmatprep.subr.mxu0 0.0
    %977 = vmatpush1.xpose.msra.mxu0 0.0
    %978 = vmatprep.subr.mxu0 0.0
    %979 = vmatpush1.xpose.msra.mxu0 0.0
    %980 = vmatprep.subr.mxu0 0.0
    %981 = vmatpush1.xpose.msra.mxu0 0.0
    %982 = vmatprep.subr.mxu0 0.0
    %983 = vmatpush1.xpose.msra.mxu0 0.0
    %984 = vmatprep.subr.mxu0 0.0
    %985 = vmatpush1.xpose.msra.mxu0 0.0
    %986 = vmatprep.subr.mxu0 0.0
    %987 = vmatpush1.xpose.msra.mxu0 0.0
    %988 = vmatprep.subr.mxu0 0.0
    %989 = vmatpush1.xpose.msra.mxu0 0.0
    %990 = vmatprep.subr.mxu0 0.0
    %991 = vmatpush1.xpose.msra.mxu0 0.0
    %992 = vmatprep.subr.mxu0 0.0
    %993 = vmatpush1.xpose.msra.mxu0 0.0
    %994 = vmatprep.subr.mxu0 0.0
    %995 = vmatpush1.xpose.msra.mxu0 0.0
    %996 = vmatprep.subr.mxu0 0.0
    %997 = vmatpush1.xpose.msra.mxu0 0.0
    %998 = vmatprep.subr.mxu0 0.0
    %999 = vmatpush1.xpose.msra.mxu0 0.0
    %1000 = vmatprep.subr.mxu0 0.0
    %1001 = vmatpush1.xpose.msra.mxu0 0.0
    %1002 = vmatprep.subr.mxu0 0.0
    %1003 = vmatpush1.xpose.msra.mxu0 0.0
    %1004 = vmatprep.subr.mxu0 0.0
    %1005 = vmatpush1.xpose.msra.mxu0 0.0
    %1006 = vmatprep.subr.mxu0 0.0
    %1007 = vmatpush1.xpose.msra.mxu0 0.0
    %1008 = vmatprep.subr.mxu0 0.0
    %1009 = vmatpush1.xpose.msra.mxu0 0.0
    %1010 = vmatprep.subr.mxu0 0.0
    %1011 = vmatpush1.xpose.msra.mxu0 0.0
    %1012 = vmatprep.subr.mxu0 0.0
    %1013 = vmatpush1.xpose.msra.mxu0 0.0
    %1014 = vmatprep.subr.mxu0 0.0
    %1015 = vmatpush1.xpose.msra.mxu0 0.0
    %1016 = vmatprep.subr.mxu0 0.0
    %1017 = vmatpush1.xpose.msra.mxu0 0.0
    %1018 = vmatprep.subr.mxu0 0.0
    %1019 = vmatpush1.xpose.msra.mxu0 0.0
    %1020 = vmatprep.subr.mxu0 0.0
    %1021 = vmatpush1.xpose.msra.mxu0 0.0
    %1022 = vmatprep.subr.mxu0 0.0
    %1023 = vmatpush1.xpose.msra.mxu0 0.0
    %1024 = vmatprep.subr.mxu0 0.0
    %1025 = vmatpush1.xpose.msra.mxu0 0.0
    %1026 = vmatprep.subr.mxu0 0.0
    %1027 = vmatpush1.xpose.msra.mxu0 0.0
    %1028 = vmatprep.subr.mxu0 0.0
    %1029 = vmatpush1.xpose.msra.mxu0 0.0
    %1030 = vmatprep.subr.mxu0 0.0
    %1031 = vmatpush1.xpose.msra.mxu0 0.0
    %1032 = vmatprep.subr.mxu0 0.0
    %1033 = vmatpush1.xpose.msra.mxu0 0.0
    %1034 = vmatprep.mubr.f32.mxu0 0.0
    %1035 = vmatmul.mubr.f32.gmra.mrb[0].mxu0 %v965
    %v1036 = vpop.f32.mrb[0].mxu0
    %v1037 = vadd.f32 0.0, %v1036
    %v1038 = vpop.f32.mrb[0].mxu0
    %1039 = vdwg.mxu0
    %1040 = vxpose.xlu0.b32.start [1/16] %v457, 128
    %1041 = vxpose.xlu0.b32.cont [2/16] 0.0, 128
    %1042 = vxpose.xlu0.b32.cont [3/16] 0.0, 128
    %1043 = vxpose.xlu0.b32.cont [4/16] 0.0, 128
    %1044 = vxpose.xlu0.b32.cont [5/16] 0.0, 128
    %1045 = vxpose.xlu0.b32.cont [6/16] 0.0, 128
    %1046 = vxpose.xlu0.b32.cont [7/16] 0.0, 128
    %1047 = vxpose.xlu0.b32.cont [8/16] 0.0, 128
    %1048 = vxpose.xlu0.b32.cont [9/16] 0.0, 128
    %1049 = vxpose.xlu0.b32.cont [10/16] 0.0, 128
    %1050 = vxpose.xlu0.b32.cont [11/16] 0.0, 128
    %1051 = vxpose.xlu0.b32.cont [12/16] 0.0, 128
    %1052 = vxpose.xlu0.b32.cont [13/16] 0.0, 128
    %1053 = vxpose.xlu0.b32.cont [14/16] 0.0, 128
    %1054 = vxpose.xlu0.b32.cont [15/16] 0.0, 128
    %1055 = vxpose.xlu0.b32.end [16/16] 0.0, 128
    %v1056 = vpop.trf.xlu0
    %v1057 = vpop.trf.xlu0
    %v1058 = vpop.trf.xlu0
    %v1059 = vpop.trf.xlu0
    %v1060 = vpop.trf.xlu0
    %v1061 = vpop.trf.xlu0
    %v1062 = vpop.trf.xlu0
    %v1063 = vpop.trf.xlu0
    %v1064 = vpop.trf.xlu0
    %v1065 = vpop.trf.xlu0
    %v1066 = vpop.trf.xlu0
    %v1067 = vpop.trf.xlu0
    %v1068 = vpop.trf.xlu0
    %v1069 = vpop.trf.xlu0
    %v1070 = vpop.trf.xlu0
    %v1071 = vpop.trf.xlu0
    %v1073 = vsel %vm963, %v1056, 0
    %v1076 = vsel %vm963, %v928, 0
    %1078 = vmatprep.subr.mxu0 0.0
    %1079 = vmatpush1.xpose.msra.mxu0 %v1076
    %1080 = vmatprep.subr.mxu0 0.0
    %1081 = vmatpush1.xpose.msra.mxu0 0.0
    %1082 = vmatprep.subr.mxu0 0.0
    %1083 = vmatpush1.xpose.msra.mxu0 0.0
    %1084 = vmatprep.subr.mxu0 0.0
    %1085 = vmatpush1.xpose.msra.mxu0 0.0
    %1086 = vmatprep.subr.mxu0 0.0
    %1087 = vmatpush1.xpose.msra.mxu0 0.0
    %1088 = vmatprep.subr.mxu0 0.0
    %1089 = vmatpush1.xpose.msra.mxu0 0.0
    %1090 = vmatprep.subr.mxu0 0.0
    %1091 = vmatpush1.xpose.msra.mxu0 0.0
    %1092 = vmatprep.subr.mxu0 0.0
    %1093 = vmatpush1.xpose.msra.mxu0 0.0
    %1094 = vmatprep.subr.mxu0 0.0
    %1095 = vmatpush1.xpose.msra.mxu0 0.0
    %1096 = vmatprep.subr.mxu0 0.0
    %1097 = vmatpush1.xpose.msra.mxu0 0.0
    %1098 = vmatprep.subr.mxu0 0.0
    %1099 = vmatpush1.xpose.msra.mxu0 0.0
    %1100 = vmatprep.subr.mxu0 0.0
    %1101 = vmatpush1.xpose.msra.mxu0 0.0
    %1102 = vmatprep.subr.mxu0 0.0
    %1103 = vmatpush1.xpose.msra.mxu0 0.0
    %1104 = vmatprep.subr.mxu0 0.0
    %1105 = vmatpush1.xpose.msra.mxu0 0.0
    %1106 = vmatprep.subr.mxu0 0.0
    %1107 = vmatpush1.xpose.msra.mxu0 0.0
    %1108 = vmatprep.subr.mxu0 0.0
    %1109 = vmatpush1.xpose.msra.mxu0 0.0
    %1110 = vmatprep.subr.mxu0 0.0
    %1111 = vmatpush1.xpose.msra.mxu0 0.0
    %1112 = vmatprep.subr.mxu0 0.0
    %1113 = vmatpush1.xpose.msra.mxu0 0.0
    %1114 = vmatprep.subr.mxu0 0.0
    %1115 = vmatpush1.xpose.msra.mxu0 0.0
    %1116 = vmatprep.subr.mxu0 0.0
    %1117 = vmatpush1.xpose.msra.mxu0 0.0
    %1118 = vmatprep.subr.mxu0 0.0
    %1119 = vmatpush1.xpose.msra.mxu0 0.0
    %1120 = vmatprep.subr.mxu0 0.0
    %1121 = vmatpush1.xpose.msra.mxu0 0.0
    %1122 = vmatprep.subr.mxu0 0.0
    %1123 = vmatpush1.xpose.msra.mxu0 0.0
    %1124 = vmatprep.subr.mxu0 0.0
    %1125 = vmatpush1.xpose.msra.mxu0 0.0
    %1126 = vmatprep.subr.mxu0 0.0
    %1127 = vmatpush1.xpose.msra.mxu0 0.0
    %1128 = vmatprep.subr.mxu0 0.0
    %1129 = vmatpush1.xpose.msra.mxu0 0.0
    %1130 = vmatprep.subr.mxu0 0.0
    %1131 = vmatpush1.xpose.msra.mxu0 0.0
    %1132 = vmatprep.subr.mxu0 0.0
    %1133 = vmatpush1.xpose.msra.mxu0 0.0
    %1134 = vmatprep.subr.mxu0 0.0
    %1135 = vmatpush1.xpose.msra.mxu0 0.0
    %1136 = vmatprep.subr.mxu0 0.0
    %1137 = vmatpush1.xpose.msra.mxu0 0.0
    %1138 = vmatprep.subr.mxu0 0.0
    %1139 = vmatpush1.xpose.msra.mxu0 0.0
    %1140 = vmatprep.subr.mxu0 0.0
    %1141 = vmatpush1.xpose.msra.mxu0 0.0
    %1142 = vmatprep.mubr.f32.mxu0 0.0
    %1143 = vmatmul.mubr.f32.gmra.mrb[0].mxu0 %v1073
    %v1144 = vpop.f32.mrb[0].mxu0
    %v1145 = vadd.f32 0.0, %v1144
    %v1146 = vpop.f32.mrb[0].mxu0
    %1147 = vdwg.mxu0
    %1148 = vxpose.xlu0.b32.start [1/16] %v456, 128
    %1149 = vxpose.xlu0.b32.cont [2/16] 0.0, 128
    %1150 = vxpose.xlu0.b32.cont [3/16] 0.0, 128
    %1151 = vxpose.xlu0.b32.cont [4/16] 0.0, 128
    %1152 = vxpose.xlu0.b32.cont [5/16] 0.0, 128
    %1153 = vxpose.xlu0.b32.cont [6/16] 0.0, 128
    %1154 = vxpose.xlu0.b32.cont [7/16] 0.0, 128
    %1155 = vxpose.xlu0.b32.cont [8/16] 0.0, 128
    %1156 = vxpose.xlu0.b32.cont [9/16] 0.0, 128
    %1157 = vxpose.xlu0.b32.cont [10/16] 0.0, 128
    %1158 = vxpose.xlu0.b32.cont [11/16] 0.0, 128
    %1159 = vxpose.xlu0.b32.cont [12/16] 0.0, 128
    %1160 = vxpose.xlu0.b32.cont [13/16] 0.0, 128
    %1161 = vxpose.xlu0.b32.cont [14/16] 0.0, 128
    %1162 = vxpose.xlu0.b32.cont [15/16] 0.0, 128
    %1163 = vxpose.xlu0.b32.end [16/16] 0.0, 128
    %v1164 = vpop.trf.xlu0
    %v1165 = vpop.trf.xlu0
    %v1166 = vpop.trf.xlu0
    %v1167 = vpop.trf.xlu0
    %v1168 = vpop.trf.xlu0
    %v1169 = vpop.trf.xlu0
    %v1170 = vpop.trf.xlu0
    %v1171 = vpop.trf.xlu0
    %v1172 = vpop.trf.xlu0
    %v1173 = vpop.trf.xlu0
    %v1174 = vpop.trf.xlu0
    %v1175 = vpop.trf.xlu0
    %v1176 = vpop.trf.xlu0
    %v1177 = vpop.trf.xlu0
    %v1178 = vpop.trf.xlu0
    %v1179 = vpop.trf.xlu0
    %v1181 = vsel %vm963, %v1164, 0
    %v1184 = vsel %vm963, %v929, 0
    %1186 = vmatprep.subr.mxu0 0.0
    %1187 = vmatpush1.xpose.msra.mxu0 %v1184
    %1188 = vmatprep.subr.mxu0 0.0
    %1189 = vmatpush1.xpose.msra.mxu0 0.0
    %1190 = vmatprep.subr.mxu0 0.0
    %1191 = vmatpush1.xpose.msra.mxu0 0.0
    %1192 = vmatprep.subr.mxu0 0.0
    %1193 = vmatpush1.xpose.msra.mxu0 0.0
    %1194 = vmatprep.subr.mxu0 0.0
    %1195 = vmatpush1.xpose.msra.mxu0 0.0
    %1196 = vmatprep.subr.mxu0 0.0
    %1197 = vmatpush1.xpose.msra.mxu0 0.0
    %1198 = vmatprep.subr.mxu0 0.0
    %1199 = vmatpush1.xpose.msra.mxu0 0.0
    %1200 = vmatprep.subr.mxu0 0.0
    %1201 = vmatpush1.xpose.msra.mxu0 0.0
    %1202 = vmatprep.subr.mxu0 0.0
    %1203 = vmatpush1.xpose.msra.mxu0 0.0
    %1204 = vmatprep.subr.mxu0 0.0
    %1205 = vmatpush1.xpose.msra.mxu0 0.0
    %1206 = vmatprep.subr.mxu0 0.0
    %1207 = vmatpush1.xpose.msra.mxu0 0.0
    %1208 = vmatprep.subr.mxu0 0.0
    %1209 = vmatpush1.xpose.msra.mxu0 0.0
    %1210 = vmatprep.subr.mxu0 0.0
    %1211 = vmatpush1.xpose.msra.mxu0 0.0
    %1212 = vmatprep.subr.mxu0 0.0
    %1213 = vmatpush1.xpose.msra.mxu0 0.0
    %1214 = vmatprep.subr.mxu0 0.0
    %1215 = vmatpush1.xpose.msra.mxu0 0.0
    %1216 = vmatprep.subr.mxu0 0.0
    %1217 = vmatpush1.xpose.msra.mxu0 0.0
    %1218 = vmatprep.subr.mxu0 0.0
    %1219 = vmatpush1.xpose.msra.mxu0 0.0
    %1220 = vmatprep.subr.mxu0 0.0
    %1221 = vmatpush1.xpose.msra.mxu0 0.0
    %1222 = vmatprep.subr.mxu0 0.0
    %1223 = vmatpush1.xpose.msra.mxu0 0.0
    %1224 = vmatprep.subr.mxu0 0.0
    %1225 = vmatpush1.xpose.msra.mxu0 0.0
    %1226 = vmatprep.subr.mxu0 0.0
    %1227 = vmatpush1.xpose.msra.mxu0 0.0
    %1228 = vmatprep.subr.mxu0 0.0
    %1229 = vmatpush1.xpose.msra.mxu0 0.0
    %1230 = vmatprep.subr.mxu0 0.0
    %1231 = vmatpush1.xpose.msra.mxu0 0.0
    %1232 = vmatprep.subr.mxu0 0.0
    %1233 = vmatpush1.xpose.msra.mxu0 0.0
    %1234 = vmatprep.subr.mxu0 0.0
    %1235 = vmatpush1.xpose.msra.mxu0 0.0
    %1236 = vmatprep.subr.mxu0 0.0
    %1237 = vmatpush1.xpose.msra.mxu0 0.0
    %1238 = vmatprep.subr.mxu0 0.0
    %1239 = vmatpush1.xpose.msra.mxu0 0.0
    %1240 = vmatprep.subr.mxu0 0.0
    %1241 = vmatpush1.xpose.msra.mxu0 0.0
    %1242 = vmatprep.subr.mxu0 0.0
    %1243 = vmatpush1.xpose.msra.mxu0 0.0
    %1244 = vmatprep.subr.mxu0 0.0
    %1245 = vmatpush1.xpose.msra.mxu0 0.0
    %1246 = vmatprep.subr.mxu0 0.0
    %1247 = vmatpush1.xpose.msra.mxu0 0.0
    %1248 = vmatprep.subr.mxu0 0.0
    %1249 = vmatpush1.xpose.msra.mxu0 0.0
    %1250 = vmatprep.mubr.f32.mxu0 0.0
    %1251 = vmatmul.mubr.f32.gmra.mrb[0].mxu0 %v1181
    %v1252 = vpop.f32.mrb[0].mxu0
    %v1253 = vadd.f32 0.0, %v1252
    %v1254 = vpop.f32.mrb[0].mxu0
    %1255 = vdwg.mxu0
    %1256 = vxpose.xlu0.b32.start [1/16] %v458, 128
    %1257 = vxpose.xlu0.b32.cont [2/16] 0.0, 128
    %1258 = vxpose.xlu0.b32.cont [3/16] 0.0, 128
    %1259 = vxpose.xlu0.b32.cont [4/16] 0.0, 128
    %1260 = vxpose.xlu0.b32.cont [5/16] 0.0, 128
    %1261 = vxpose.xlu0.b32.cont [6/16] 0.0, 128
    %1262 = vxpose.xlu0.b32.cont [7/16] 0.0, 128
    %1263 = vxpose.xlu0.b32.cont [8/16] 0.0, 128
    %1264 = vxpose.xlu0.b32.cont [9/16] 0.0, 128
    %1265 = vxpose.xlu0.b32.cont [10/16] 0.0, 128
    %1266 = vxpose.xlu0.b32.cont [11/16] 0.0, 128
    %1267 = vxpose.xlu0.b32.cont [12/16] 0.0, 128
    %1268 = vxpose.xlu0.b32.cont [13/16] 0.0, 128
    %1269 = vxpose.xlu0.b32.cont [14/16] 0.0, 128
    %1270 = vxpose.xlu0.b32.cont [15/16] 0.0, 128
    %1271 = vxpose.xlu0.b32.end [16/16] 0.0, 128
    %v1272 = vpop.trf.xlu0
    %v1273 = vpop.trf.xlu0
    %v1274 = vpop.trf.xlu0
    %v1275 = vpop.trf.xlu0
    %v1276 = vpop.trf.xlu0
    %v1277 = vpop.trf.xlu0
    %v1278 = vpop.trf.xlu0
    %v1279 = vpop.trf.xlu0
    %v1280 = vpop.trf.xlu0
    %v1281 = vpop.trf.xlu0
    %v1282 = vpop.trf.xlu0
    %v1283 = vpop.trf.xlu0
    %v1284 = vpop.trf.xlu0
    %v1285 = vpop.trf.xlu0
    %v1286 = vpop.trf.xlu0
    %v1287 = vpop.trf.xlu0
    %v1289 = vsel %vm963, %v1272, 0
    %v1292 = vsel %vm963, %v930, 0
    %1294 = vmatprep.subr.mxu0 0.0
    %1295 = vmatpush1.xpose.msra.mxu0 %v1292
    %1296 = vmatprep.subr.mxu0 0.0
    %1297 = vmatpush1.xpose.msra.mxu0 0.0
    %1298 = vmatprep.subr.mxu0 0.0
    %1299 = vmatpush1.xpose.msra.mxu0 0.0
    %1300 = vmatprep.subr.mxu0 0.0
    %1301 = vmatpush1.xpose.msra.mxu0 0.0
    %1302 = vmatprep.subr.mxu0 0.0
    %1303 = vmatpush1.xpose.msra.mxu0 0.0
    %1304 = vmatprep.subr.mxu0 0.0
    %1305 = vmatpush1.xpose.msra.mxu0 0.0
    %1306 = vmatprep.subr.mxu0 0.0
    %1307 = vmatpush1.xpose.msra.mxu0 0.0
    %1308 = vmatprep.subr.mxu0 0.0
    %1309 = vmatpush1.xpose.msra.mxu0 0.0
    %1310 = vmatprep.subr.mxu0 0.0
    %1311 = vmatpush1.xpose.msra.mxu0 0.0
    %1312 = vmatprep.subr.mxu0 0.0
    %1313 = vmatpush1.xpose.msra.mxu0 0.0
    %1314 = vmatprep.subr.mxu0 0.0
    %1315 = vmatpush1.xpose.msra.mxu0 0.0
    %1316 = vmatprep.subr.mxu0 0.0
    %1317 = vmatpush1.xpose.msra.mxu0 0.0
    %1318 = vmatprep.subr.mxu0 0.0
    %1319 = vmatpush1.xpose.msra.mxu0 0.0
    %1320 = vmatprep.subr.mxu0 0.0
    %1321 = vmatpush1.xpose.msra.mxu0 0.0
    %1322 = vmatprep.subr.mxu0 0.0
    %1323 = vmatpush1.xpose.msra.mxu0 0.0
    %1324 = vmatprep.subr.mxu0 0.0
    %1325 = vmatpush1.xpose.msra.mxu0 0.0
    %1326 = vmatprep.subr.mxu0 0.0
    %1327 = vmatpush1.xpose.msra.mxu0 0.0
    %1328 = vmatprep.subr.mxu0 0.0
    %1329 = vmatpush1.xpose.msra.mxu0 0.0
    %1330 = vmatprep.subr.mxu0 0.0
    %1331 = vmatpush1.xpose.msra.mxu0 0.0
    %1332 = vmatprep.subr.mxu0 0.0
    %1333 = vmatpush1.xpose.msra.mxu0 0.0
    %1334 = vmatprep.subr.mxu0 0.0
    %1335 = vmatpush1.xpose.msra.mxu0 0.0
    %1336 = vmatprep.subr.mxu0 0.0
    %1337 = vmatpush1.xpose.msra.mxu0 0.0
    %1338 = vmatprep.subr.mxu0 0.0
    %1339 = vmatpush1.xpose.msra.mxu0 0.0
    %1340 = vmatprep.subr.mxu0 0.0
    %1341 = vmatpush1.xpose.msra.mxu0 0.0
    %1342 = vmatprep.subr.mxu0 0.0
    %1343 = vmatpush1.xpose.msra.mxu0 0.0
    %1344 = vmatprep.subr.mxu0 0.0
    %1345 = vmatpush1.xpose.msra.mxu0 0.0
    %1346 = vmatprep.subr.mxu0 0.0
    %1347 = vmatpush1.xpose.msra.mxu0 0.0
    %1348 = vmatprep.subr.mxu0 0.0
    %1349 = vmatpush1.xpose.msra.mxu0 0.0
    %1350 = vmatprep.subr.mxu0 0.0
    %1351 = vmatpush1.xpose.msra.mxu0 0.0
    %1352 = vmatprep.subr.mxu0 0.0
    %1353 = vmatpush1.xpose.msra.mxu0 0.0
    %1354 = vmatprep.subr.mxu0 0.0
    %1355 = vmatpush1.xpose.msra.mxu0 0.0
    %1356 = vmatprep.subr.mxu0 0.0
    %1357 = vmatpush1.xpose.msra.mxu0 0.0
    %1358 = vmatprep.mubr.f32.mxu0 0.0
    %1359 = vmatmul.mubr.f32.gmra.mrb[0].mxu0 %v1289
    %v1360 = vpop.f32.mrb[0].mxu0
    %v1361 = vadd.f32 0.0, %v1360
    %v1362 = vpop.f32.mrb[0].mxu0
    %1363 = vdwg.mxu0
    %1364 = vxpose.xlu0.b32.start [1/16] %v1037, 128
    %1365 = vxpose.xlu0.b32.cont [2/16] 0.0, 128
    %1366 = vxpose.xlu0.b32.cont [3/16] 0.0, 128
    %1367 = vxpose.xlu0.b32.cont [4/16] 0.0, 128
    %1368 = vxpose.xlu0.b32.cont [5/16] 0.0, 128
    %1369 = vxpose.xlu0.b32.cont [6/16] 0.0, 128
    %1370 = vxpose.xlu0.b32.cont [7/16] 0.0, 128
    %1371 = vxpose.xlu0.b32.cont [8/16] 0.0, 128
    %1372 = vxpose.xlu0.b32.cont [9/16] 0.0, 128
    %1373 = vxpose.xlu0.b32.cont [10/16] 0.0, 128
    %1374 = vxpose.xlu0.b32.cont [11/16] 0.0, 128
    %1375 = vxpose.xlu0.b32.cont [12/16] 0.0, 128
    %1376 = vxpose.xlu0.b32.cont [13/16] 0.0, 128
    %1377 = vxpose.xlu0.b32.cont [14/16] 0.0, 128
    %1378 = vxpose.xlu0.b32.cont [15/16] 0.0, 128
    %1379 = vxpose.xlu0.b32.end [16/16] 0.0, 128
    %v1380 = vpop.trf.xlu0
    %v1381 = vpop.trf.xlu0
    %v1382 = vpop.trf.xlu0
    %v1383 = vpop.trf.xlu0
    %v1384 = vpop.trf.xlu0
    %v1385 = vpop.trf.xlu0
    %v1386 = vpop.trf.xlu0
    %v1387 = vpop.trf.xlu0
    %v1388 = vpop.trf.xlu0
    %v1389 = vpop.trf.xlu0
    %v1390 = vpop.trf.xlu0
    %v1391 = vpop.trf.xlu0
    %v1392 = vpop.trf.xlu0
    %v1393 = vpop.trf.xlu0
    %v1394 = vpop.trf.xlu0
    %v1395 = vpop.trf.xlu0
    %1396 = vxpose.xlu0.b32.start [1/16] %v1145, 128
    %1397 = vxpose.xlu0.b32.cont [2/16] 0.0, 128
    %1398 = vxpose.xlu0.b32.cont [3/16] 0.0, 128
    %1399 = vxpose.xlu0.b32.cont [4/16] 0.0, 128
    %1400 = vxpose.xlu0.b32.cont [5/16] 0.0, 128
    %1401 = vxpose.xlu0.b32.cont [6/16] 0.0, 128
    %1402 = vxpose.xlu0.b32.cont [7/16] 0.0, 128
    %1403 = vxpose.xlu0.b32.cont [8/16] 0.0, 128
    %1404 = vxpose.xlu0.b32.cont [9/16] 0.0, 128
    %1405 = vxpose.xlu0.b32.cont [10/16] 0.0, 128
    %1406 = vxpose.xlu0.b32.cont [11/16] 0.0, 128
    %1407 = vxpose.xlu0.b32.cont [12/16] 0.0, 128
    %1408 = vxpose.xlu0.b32.cont [13/16] 0.0, 128
    %1409 = vxpose.xlu0.b32.cont [14/16] 0.0, 128
    %1410 = vxpose.xlu0.b32.cont [15/16] 0.0, 128
    %1411 = vxpose.xlu0.b32.end [16/16] 0.0, 128
    %v1412 = vpop.trf.xlu0
    %v1413 = vpop.trf.xlu0
    %v1414 = vpop.trf.xlu0
    %v1415 = vpop.trf.xlu0
    %v1416 = vpop.trf.xlu0
    %v1417 = vpop.trf.xlu0
    %v1418 = vpop.trf.xlu0
    %v1419 = vpop.trf.xlu0
    %v1420 = vpop.trf.xlu0
    %v1421 = vpop.trf.xlu0
    %v1422 = vpop.trf.xlu0
    %v1423 = vpop.trf.xlu0
    %v1424 = vpop.trf.xlu0
    %v1425 = vpop.trf.xlu0
    %v1426 = vpop.trf.xlu0
    %v1427 = vpop.trf.xlu0
    %1428 = vxpose.xlu0.b32.start [1/16] %v1253, 128
    %1429 = vxpose.xlu0.b32.cont [2/16] 0.0, 128
    %1430 = vxpose.xlu0.b32.cont [3/16] 0.0, 128
    %1431 = vxpose.xlu0.b32.cont [4/16] 0.0, 128
    %1432 = vxpose.xlu0.b32.cont [5/16] 0.0, 128
    %1433 = vxpose.xlu0.b32.cont [6/16] 0.0, 128
    %1434 = vxpose.xlu0.b32.cont [7/16] 0.0, 128
    %1435 = vxpose.xlu0.b32.cont [8/16] 0.0, 128
    %1436 = vxpose.xlu0.b32.cont [9/16] 0.0, 128
    %1437 = vxpose.xlu0.b32.cont [10/16] 0.0, 128
    %1438 = vxpose.xlu0.b32.cont [11/16] 0.0, 128
    %1439 = vxpose.xlu0.b32.cont [12/16] 0.0, 128
    %1440 = vxpose.xlu0.b32.cont [13/16] 0.0, 128
    %1441 = vxpose.xlu0.b32.cont [14/16] 0.0, 128
    %1442 = vxpose.xlu0.b32.cont [15/16] 0.0, 128
    %1443 = vxpose.xlu0.b32.end [16/16] 0.0, 128
    %v1444 = vpop.trf.xlu0
    %v1445 = vpop.trf.xlu0
    %v1446 = vpop.trf.xlu0
    %v1447 = vpop.trf.xlu0
    %v1448 = vpop.trf.xlu0
    %v1449 = vpop.trf.xlu0
    %v1450 = vpop.trf.xlu0
    %v1451 = vpop.trf.xlu0
    %v1452 = vpop.trf.xlu0
    %v1453 = vpop.trf.xlu0
    %v1454 = vpop.trf.xlu0
    %v1455 = vpop.trf.xlu0
    %v1456 = vpop.trf.xlu0
    %v1457 = vpop.trf.xlu0
    %v1458 = vpop.trf.xlu0
    %v1459 = vpop.trf.xlu0
    %1460 = vxpose.xlu0.b32.start [1/16] %v1361, 128
    %1461 = vxpose.xlu0.b32.cont [2/16] 0.0, 128
    %1462 = vxpose.xlu0.b32.cont [3/16] 0.0, 128
    %1463 = vxpose.xlu0.b32.cont [4/16] 0.0, 128
    %1464 = vxpose.xlu0.b32.cont [5/16] 0.0, 128
    %1465 = vxpose.xlu0.b32.cont [6/16] 0.0, 128
    %1466 = vxpose.xlu0.b32.cont [7/16] 0.0, 128
    %1467 = vxpose.xlu0.b32.cont [8/16] 0.0, 128
    %1468 = vxpose.xlu0.b32.cont [9/16] 0.0, 128
    %1469 = vxpose.xlu0.b32.cont [10/16] 0.0, 128
    %1470 = vxpose.xlu0.b32.cont [11/16] 0.0, 128
    %1471 = vxpose.xlu0.b32.cont [12/16] 0.0, 128
    %1472 = vxpose.xlu0.b32.cont [13/16] 0.0, 128
    %1473 = vxpose.xlu0.b32.cont [14/16] 0.0, 128
    %1474 = vxpose.xlu0.b32.cont [15/16] 0.0, 128
    %1475 = vxpose.xlu0.b32.end [16/16] 0.0, 128
    %v1476 = vpop.trf.xlu0
    %v1477 = vpop.trf.xlu0
    %v1478 = vpop.trf.xlu0
    %v1479 = vpop.trf.xlu0
    %v1480 = vpop.trf.xlu0
    %v1481 = vpop.trf.xlu0
    %v1482 = vpop.trf.xlu0
    %v1483 = vpop.trf.xlu0
    %v1484 = vpop.trf.xlu0
    %v1485 = vpop.trf.xlu0
    %v1486 = vpop.trf.xlu0
    %v1487 = vpop.trf.xlu0
    %v1488 = vpop.trf.xlu0
    %v1489 = vpop.trf.xlu0
    %v1490 = vpop.trf.xlu0
    %v1491 = vpop.trf.xlu0
    %v1492 = vcombine.low %v1380, %v1444
    %v1494 = vunpack.c.l.s4 1983009808
    %v1495 = vunpack.c.0.s8 %v1494
    %v1496 = vlaneseq
    %v1497 = vshrl.u32 %v1496, 7
    %v1498 = vsub.s32 %v1495, %v1497
    %v1499 = vrot.slane %v1492, %v1498
    %v1500 = vcombine.low %v1412, %v1476
    %v1502 = vunpack.c.l.s4 1983009808
    %v1503 = vunpack.c.0.s8 %v1502
    %v1504 = vlaneseq
    %v1505 = vshrl.u32 %v1504, 7
    %v1506 = vsub.s32 %v1503, %v1505
    %v1507 = vrot.slane %v1500, %v1506
    %v1508 = vcombine.low %v1499, %v1507
    %v1509 = vcombine.high %v1499, %v1507
    %v1511 = vunpack.c.l.s4 1934713408
    %v1512 = vunpack.c.0.s8 %v1511
    %v1513 = vlaneseq
    %v1514 = vshrl.u32 %v1513, 7
    %v1515 = vsub.s32 %v1512, %v1514
    %v1516 = vrot.slane %v1508, %v1515
    %v1518 = vunpack.c.l.s4 1934713408
    %v1519 = vunpack.c.0.s8 %v1518
    %v1520 = vlaneseq
    %v1521 = vshrl.u32 %v1520, 7
    %v1522 = vsub.s32 %v1519, %v1521
    %v1523 = vrot.slane %v1509, %v1522
    %v1524 = vcombine.high %v1516, 0.0
    %v1525 = vcombine.high %v1523, 0.0
    %v1526 = vcombine.low %v1516, %v1523
    %v1528 = vunpack.c.l.s4 1983009808
    %v1529 = vunpack.c.0.s8 %v1528
    %v1530 = vlaneseq
    %v1531 = vshrl.u32 %v1530, 7
    %v1532 = vsub.s32 %v1529, %v1531
    %v1533 = vrot.slane %v1526, %v1532
    %v1534 = vcombine.low %v1524, %v1525
    %v1536 = vunpack.c.l.s4 1983009808
    %v1537 = vunpack.c.0.s8 %v1536
    %v1538 = vlaneseq
    %v1539 = vshrl.u32 %v1538, 7
    %v1540 = vsub.s32 %v1537, %v1539
    %v1541 = vrot.slane %v1534, %v1540
    %v1542 = vcombine.low %v1533, %v1541
    %v1543 = vcombine.high %v1533, %v1541
    %v1545 = vunpack.c.l.s4 1934713408
    %v1546 = vunpack.c.0.s8 %v1545
    %v1547 = vlaneseq
    %v1548 = vshrl.u32 %v1547, 7
    %v1549 = vsub.s32 %v1546, %v1548
    %v1550 = vrot.slane %v1542, %v1549
    %v1552 = vunpack.c.l.s4 1934713408
    %v1553 = vunpack.c.0.s8 %v1552
    %v1554 = vlaneseq
    %v1555 = vshrl.u32 %v1554, 7
    %v1556 = vsub.s32 %v1553, %v1555
    %v1557 = vrot.slane %v1543, %v1556
    %v1558 = vcombine.high %v1550, 0.0
    %v1559 = vcombine.high %v1557, 0.0
    %1561 = vrot.lane.b32.xlu0 %v1558, 8
    %v1562 = vpop.permute.xlu0 %1561
    %1565 = vrot.lane.b32.xlu0 %v1557, 16
    %v1566 = vpop.permute.xlu0 %1565
    %1569 = vrot.lane.b32.xlu0 %v1559, 24
    %v1570 = vpop.permute.xlu0 %1569
    %v1572 = vsel %vm587, %v1550, %v1562
    %vm1573 = vcmask 130048
    %v1574 = vsel %vm1573, %v1572, %v1566
    %vm1575 = vcmask 195584
    %v1576 = vsel %vm1575, %v1574, %v1570
    %v1577 = vcombine.low %v927, %v929
    %v1579 = vunpack.c.l.s4 1983009808
    %v1580 = vunpack.c.0.s8 %v1579
    %v1581 = vlaneseq
    %v1582 = vshrl.u32 %v1581, 7
    %v1583 = vsub.s32 %v1580, %v1582
    %v1584 = vrot.slane %v1577, %v1583
    %v1585 = vcombine.low %v928, %v930
    %v1587 = vunpack.c.l.s4 1983009808
    %v1588 = vunpack.c.0.s8 %v1587
    %v1589 = vlaneseq
    %v1590 = vshrl.u32 %v1589, 7
    %v1591 = vsub.s32 %v1588, %v1590
    %v1592 = vrot.slane %v1585, %v1591
    %v1593 = vcombine.low %v1584, %v1592
    %v1594 = vcombine.high %v1584, %v1592
    %v1596 = vunpack.c.l.s4 1934713408
    %v1597 = vunpack.c.0.s8 %v1596
    %v1598 = vlaneseq
    %v1599 = vshrl.u32 %v1598, 7
    %v1600 = vsub.s32 %v1597, %v1599
    %v1601 = vrot.slane %v1593, %v1600
    %v1603 = vunpack.c.l.s4 1934713408
    %v1604 = vunpack.c.0.s8 %v1603
    %v1605 = vlaneseq
    %v1606 = vshrl.u32 %v1605, 7
    %v1607 = vsub.s32 %v1604, %v1606
    %v1608 = vrot.slane %v1594, %v1607
    %v1609 = vcombine.high %v1601, 0.0
    %v1610 = vcombine.high %v1608, 0.0
    %v1611 = vcombine.low %v1601, %v1608
    %v1613 = vunpack.c.l.s4 1983009808
    %v1614 = vunpack.c.0.s8 %v1613
    %v1615 = vlaneseq
    %v1616 = vshrl.u32 %v1615, 7
    %v1617 = vsub.s32 %v1614, %v1616
    %v1618 = vrot.slane %v1611, %v1617
    %v1619 = vcombine.low %v1609, %v1610
    %v1621 = vunpack.c.l.s4 1983009808
    %v1622 = vunpack.c.0.s8 %v1621
    %v1623 = vlaneseq
    %v1624 = vshrl.u32 %v1623, 7
    %v1625 = vsub.s32 %v1622, %v1624
    %v1626 = vrot.slane %v1619, %v1625
    %v1627 = vcombine.low %v1618, %v1626
    %v1628 = vcombine.high %v1618, %v1626
    %v1630 = vunpack.c.l.s4 1934713408
    %v1631 = vunpack.c.0.s8 %v1630
    %v1632 = vlaneseq
    %v1633 = vshrl.u32 %v1632, 7
    %v1634 = vsub.s32 %v1631, %v1633
    %v1635 = vrot.slane %v1627, %v1634
    %v1637 = vunpack.c.l.s4 1934713408
    %v1638 = vunpack.c.0.s8 %v1637
    %v1639 = vlaneseq
    %v1640 = vshrl.u32 %v1639, 7
    %v1641 = vsub.s32 %v1638, %v1640
    %v1642 = vrot.slane %v1628, %v1641
    %v1643 = vcombine.high %v1635, 0.0
    %v1644 = vcombine.high %v1642, 0.0
    %1646 = vrot.lane.b32.xlu0 %v1643, 4
    %v1647 = vpop.permute.xlu0 %1646
    %1650 = vrot.lane.b32.xlu0 %v1642, 8
    %v1651 = vpop.permute.xlu0 %1650
    %1654 = vrot.lane.b32.xlu0 %v1644, 12
    %v1655 = vpop.permute.xlu0 %1654
    %v1657 = vsel %vm963, %v1635, %v1647
    %v1658 = vsel %vm587, %v1657, %v1651
    %vm1659 = vcmask 97280
    %v1660 = vsel %vm1659, %v1658, %v1655
    %v1661 = vrot.slane %v395, 4
    %v1662 = vrot.slane %v417, 4
    %v1663 = vrot.slane %v420, 4
    %v1664 = vrot.slane %v423, 4
    %v1669 = vcombine.low %v1661, %v1663
    %v1671 = vunpack.c.l.s4 1983009808
    %v1672 = vunpack.c.0.s8 %v1671
    %v1673 = vlaneseq
    %v1674 = vshrl.u32 %v1673, 7
    %v1675 = vsub.s32 %v1672, %v1674
    %v1676 = vrot.slane %v1669, %v1675
    %v1677 = vcombine.low %v1662, %v1664
    %v1679 = vunpack.c.l.s4 1983009808
    %v1680 = vunpack.c.0.s8 %v1679
    %v1681 = vlaneseq
    %v1682 = vshrl.u32 %v1681, 7
    %v1683 = vsub.s32 %v1680, %v1682
    %v1684 = vrot.slane %v1677, %v1683
    %v1685 = vcombine.low %v1676, %v1684
    %v1686 = vcombine.high %v1676, %v1684
    %v1688 = vunpack.c.l.s4 1934713408
    %v1689 = vunpack.c.0.s8 %v1688
    %v1690 = vlaneseq
    %v1691 = vshrl.u32 %v1690, 7
    %v1692 = vsub.s32 %v1689, %v1691
    %v1693 = vrot.slane %v1685, %v1692
    %v1695 = vunpack.c.l.s4 1934713408
    %v1696 = vunpack.c.0.s8 %v1695
    %v1697 = vlaneseq
    %v1698 = vshrl.u32 %v1697, 7
    %v1699 = vsub.s32 %v1696, %v1698
    %v1700 = vrot.slane %v1686, %v1699
    %v1701 = vcombine.high %v1693, 0.0
    %v1702 = vcombine.high %v1700, 0.0
    %v1703 = vrot.slane %v321, 4
    %v1704 = vrot.slane %v407, 4
    %v1705 = vrot.slane %v410, 4
    %v1706 = vrot.slane %v413, 4
    %1711 = vxpose.xlu0.b32.start [1/16] %v1703, 128
    %1712 = vxpose.xlu0.b32.cont [2/16] 0.0, 128
    %1713 = vxpose.xlu0.b32.cont [3/16] 0.0, 128
    %1714 = vxpose.xlu0.b32.cont [4/16] 0.0, 128
    %1715 = vxpose.xlu0.b32.cont [5/16] 0.0, 128
    %1716 = vxpose.xlu0.b32.cont [6/16] 0.0, 128
    %1717 = vxpose.xlu0.b32.cont [7/16] 0.0, 128
    %1718 = vxpose.xlu0.b32.cont [8/16] 0.0, 128
    %1719 = vxpose.xlu0.b32.cont [9/16] 0.0, 128
    %1720 = vxpose.xlu0.b32.cont [10/16] 0.0, 128
    %1721 = vxpose.xlu0.b32.cont [11/16] 0.0, 128
    %1722 = vxpose.xlu0.b32.cont [12/16] 0.0, 128
    %1723 = vxpose.xlu0.b32.cont [13/16] 0.0, 128
    %1724 = vxpose.xlu0.b32.cont [14/16] 0.0, 128
    %1725 = vxpose.xlu0.b32.cont [15/16] 0.0, 128
    %1726 = vxpose.xlu0.b32.end [16/16] 0.0, 128
    %v1727 = vpop.trf.xlu0
    %v1728 = vpop.trf.xlu0
    %v1729 = vpop.trf.xlu0
    %v1730 = vpop.trf.xlu0
    %v1731 = vpop.trf.xlu0
    %v1732 = vpop.trf.xlu0
    %v1733 = vpop.trf.xlu0
    %v1734 = vpop.trf.xlu0
    %v1735 = vpop.trf.xlu0
    %v1736 = vpop.trf.xlu0
    %v1737 = vpop.trf.xlu0
    %v1738 = vpop.trf.xlu0
    %v1739 = vpop.trf.xlu0
    %v1740 = vpop.trf.xlu0
    %v1741 = vpop.trf.xlu0
    %v1742 = vpop.trf.xlu0
    %1743 = vxpose.xlu0.b32.start [1/16] %v1704, 128
    %1744 = vxpose.xlu0.b32.cont [2/16] 0.0, 128
    %1745 = vxpose.xlu0.b32.cont [3/16] 0.0, 128
    %1746 = vxpose.xlu0.b32.cont [4/16] 0.0, 128
    %1747 = vxpose.xlu0.b32.cont [5/16] 0.0, 128
    %1748 = vxpose.xlu0.b32.cont [6/16] 0.0, 128
    %1749 = vxpose.xlu0.b32.cont [7/16] 0.0, 128
    %1750 = vxpose.xlu0.b32.cont [8/16] 0.0, 128
    %1751 = vxpose.xlu0.b32.cont [9/16] 0.0, 128
    %1752 = vxpose.xlu0.b32.cont [10/16] 0.0, 128
    %1753 = vxpose.xlu0.b32.cont [11/16] 0.0, 128
    %1754 = vxpose.xlu0.b32.cont [12/16] 0.0, 128
    %1755 = vxpose.xlu0.b32.cont [13/16] 0.0, 128
    %1756 = vxpose.xlu0.b32.cont [14/16] 0.0, 128
    %1757 = vxpose.xlu0.b32.cont [15/16] 0.0, 128
    %1758 = vxpose.xlu0.b32.end [16/16] 0.0, 128
    %v1759 = vpop.trf.xlu0
    %v1760 = vpop.trf.xlu0
    %v1761 = vpop.trf.xlu0
    %v1762 = vpop.trf.xlu0
    %v1763 = vpop.trf.xlu0
    %v1764 = vpop.trf.xlu0
    %v1765 = vpop.trf.xlu0
    %v1766 = vpop.trf.xlu0
    %v1767 = vpop.trf.xlu0
    %v1768 = vpop.trf.xlu0
    %v1769 = vpop.trf.xlu0
    %v1770 = vpop.trf.xlu0
    %v1771 = vpop.trf.xlu0
    %v1772 = vpop.trf.xlu0
    %v1773 = vpop.trf.xlu0
    %v1774 = vpop.trf.xlu0
    %1775 = vxpose.xlu0.b32.start [1/16] %v1705, 128
    %1776 = vxpose.xlu0.b32.cont [2/16] 0.0, 128
    %1777 = vxpose.xlu0.b32.cont [3/16] 0.0, 128
    %1778 = vxpose.xlu0.b32.cont [4/16] 0.0, 128
    %1779 = vxpose.xlu0.b32.cont [5/16] 0.0, 128
    %1780 = vxpose.xlu0.b32.cont [6/16] 0.0, 128
    %1781 = vxpose.xlu0.b32.cont [7/16] 0.0, 128
    %1782 = vxpose.xlu0.b32.cont [8/16] 0.0, 128
    %1783 = vxpose.xlu0.b32.cont [9/16] 0.0, 128
    %1784 = vxpose.xlu0.b32.cont [10/16] 0.0, 128
    %1785 = vxpose.xlu0.b32.cont [11/16] 0.0, 128
    %1786 = vxpose.xlu0.b32.cont [12/16] 0.0, 128
    %1787 = vxpose.xlu0.b32.cont [13/16] 0.0, 128
    %1788 = vxpose.xlu0.b32.cont [14/16] 0.0, 128
    %1789 = vxpose.xlu0.b32.cont [15/16] 0.0, 128
    %1790 = vxpose.xlu0.b32.end [16/16] 0.0, 128
    %v1791 = vpop.trf.xlu0
    %v1792 = vpop.trf.xlu0
    %v1793 = vpop.trf.xlu0
    %v1794 = vpop.trf.xlu0
    %v1795 = vpop.trf.xlu0
    %v1796 = vpop.trf.xlu0
    %v1797 = vpop.trf.xlu0
    %v1798 = vpop.trf.xlu0
    %v1799 = vpop.trf.xlu0
    %v1800 = vpop.trf.xlu0
    %v1801 = vpop.trf.xlu0
    %v1802 = vpop.trf.xlu0
    %v1803 = vpop.trf.xlu0
    %v1804 = vpop.trf.xlu0
    %v1805 = vpop.trf.xlu0
    %v1806 = vpop.trf.xlu0
    %1807 = vxpose.xlu0.b32.start [1/16] %v1706, 128
    %1808 = vxpose.xlu0.b32.cont [2/16] 0.0, 128
    %1809 = vxpose.xlu0.b32.cont [3/16] 0.0, 128
    %1810 = vxpose.xlu0.b32.cont [4/16] 0.0, 128
    %1811 = vxpose.xlu0.b32.cont [5/16] 0.0, 128
    %1812 = vxpose.xlu0.b32.cont [6/16] 0.0, 128
    %1813 = vxpose.xlu0.b32.cont [7/16] 0.0, 128
    %1814 = vxpose.xlu0.b32.cont [8/16] 0.0, 128
    %1815 = vxpose.xlu0.b32.cont [9/16] 0.0, 128
    %1816 = vxpose.xlu0.b32.cont [10/16] 0.0, 128
    %1817 = vxpose.xlu0.b32.cont [11/16] 0.0, 128
    %1818 = vxpose.xlu0.b32.cont [12/16] 0.0, 128
    %1819 = vxpose.xlu0.b32.cont [13/16] 0.0, 128
    %1820 = vxpose.xlu0.b32.cont [14/16] 0.0, 128
    %1821 = vxpose.xlu0.b32.cont [15/16] 0.0, 128
    %1822 = vxpose.xlu0.b32.end [16/16] 0.0, 128
    %v1823 = vpop.trf.xlu0
    %v1824 = vpop.trf.xlu0
    %v1825 = vpop.trf.xlu0
    %v1826 = vpop.trf.xlu0
    %v1827 = vpop.trf.xlu0
    %v1828 = vpop.trf.xlu0
    %v1829 = vpop.trf.xlu0
    %v1830 = vpop.trf.xlu0
    %v1831 = vpop.trf.xlu0
    %v1832 = vpop.trf.xlu0
    %v1833 = vpop.trf.xlu0
    %v1834 = vpop.trf.xlu0
    %v1835 = vpop.trf.xlu0
    %v1836 = vpop.trf.xlu0
    %v1837 = vpop.trf.xlu0
    %v1838 = vpop.trf.xlu0
    %v1839 = vrot.slane %v247, 4
    %v1840 = vsel %vm587, %v1839, 0
    %1842 = vmatprep.subr.mxu0 0.0
    %1843 = vmatpush1.msra.mxu0 %v1727
    %1844 = vmatprep.subr.mxu0 0.0
    %1845 = vmatpush1.msra.mxu0 0.0
    %1846 = vmatprep.subr.mxu0 0.0
    %1847 = vmatpush1.msra.mxu0 0.0
    %1848 = vmatprep.subr.mxu0 0.0
    %1849 = vmatpush1.msra.mxu0 0.0
    %1850 = vmatprep.subr.mxu0 0.0
    %1851 = vmatpush1.msra.mxu0 0.0
    %1852 = vmatprep.subr.mxu0 0.0
    %1853 = vmatpush1.msra.mxu0 0.0
    %1854 = vmatprep.subr.mxu0 0.0
    %1855 = vmatpush1.msra.mxu0 0.0
    %1856 = vmatprep.subr.mxu0 0.0
    %1857 = vmatpush1.msra.mxu0 0.0
    %1858 = vmatprep.subr.mxu0 0.0
    %1859 = vmatpush1.msra.mxu0 0.0
    %1860 = vmatprep.subr.mxu0 0.0
    %1861 = vmatpush1.msra.mxu0 0.0
    %1862 = vmatprep.subr.mxu0 0.0
    %1863 = vmatpush1.msra.mxu0 0.0
    %1864 = vmatprep.subr.mxu0 0.0
    %1865 = vmatpush1.msra.mxu0 0.0
    %1866 = vmatprep.subr.mxu0 0.0
    %1867 = vmatpush1.msra.mxu0 0.0
    %1868 = vmatprep.subr.mxu0 0.0
    %1869 = vmatpush1.msra.mxu0 0.0
    %1870 = vmatprep.subr.mxu0 0.0
    %1871 = vmatpush1.msra.mxu0 0.0
    %1872 = vmatprep.subr.mxu0 0.0
    %1873 = vmatpush1.msra.mxu0 0.0
    %1874 = vmatprep.subr.mxu0 0.0
    %1875 = vmatpush1.msra.mxu0 0.0
    %1876 = vmatprep.subr.mxu0 0.0
    %1877 = vmatpush1.msra.mxu0 0.0
    %1878 = vmatprep.subr.mxu0 0.0
    %1879 = vmatpush1.msra.mxu0 0.0
    %1880 = vmatprep.subr.mxu0 0.0
    %1881 = vmatpush1.msra.mxu0 0.0
    %1882 = vmatprep.subr.mxu0 0.0
    %1883 = vmatpush1.msra.mxu0 0.0
    %1884 = vmatprep.subr.mxu0 0.0
    %1885 = vmatpush1.msra.mxu0 0.0
    %1886 = vmatprep.subr.mxu0 0.0
    %1887 = vmatpush1.msra.mxu0 0.0
    %1888 = vmatprep.subr.mxu0 0.0
    %1889 = vmatpush1.msra.mxu0 0.0
    %1890 = vmatprep.subr.mxu0 0.0
    %1891 = vmatpush1.msra.mxu0 0.0
    %1892 = vmatprep.subr.mxu0 0.0
    %1893 = vmatpush1.msra.mxu0 0.0
    %1894 = vmatprep.subr.mxu0 0.0
    %1895 = vmatpush1.msra.mxu0 0.0
    %1896 = vmatprep.subr.mxu0 0.0
    %1897 = vmatpush1.msra.mxu0 0.0
    %1898 = vmatprep.subr.mxu0 0.0
    %1899 = vmatpush1.msra.mxu0 0.0
    %1900 = vmatprep.subr.mxu0 0.0
    %1901 = vmatpush1.msra.mxu0 0.0
    %1902 = vmatprep.subr.mxu0 0.0
    %1903 = vmatpush1.msra.mxu0 0.0
    %1904 = vmatprep.subr.mxu0 0.0
    %1905 = vmatpush1.msra.mxu0 0.0
    %1906 = vmatprep.mubr.f32.mxu0 0.0
    %1907 = vmatmul.mubr.f32.gmra.mrb[0].mxu0 %v1840
    %v1908 = vpop.f32.mrb[0].mxu0
    %v1909 = vadd.f32 0.0, %v1908
    %v1910 = vpop.f32.mrb[0].mxu0
    %1911 = vdwg.mxu0
    %v1912 = vrot.slane %v400, 4
    %v1913 = vsel %vm587, %v1912, 0
    %1915 = vmatprep.subr.mxu0 0.0
    %1916 = vmatpush1.msra.mxu0 %v1759
    %1917 = vmatprep.subr.mxu0 0.0
    %1918 = vmatpush1.msra.mxu0 0.0
    %1919 = vmatprep.subr.mxu0 0.0
    %1920 = vmatpush1.msra.mxu0 0.0
    %1921 = vmatprep.subr.mxu0 0.0
    %1922 = vmatpush1.msra.mxu0 0.0
    %1923 = vmatprep.subr.mxu0 0.0
    %1924 = vmatpush1.msra.mxu0 0.0
    %1925 = vmatprep.subr.mxu0 0.0
    %1926 = vmatpush1.msra.mxu0 0.0
    %1927 = vmatprep.subr.mxu0 0.0
    %1928 = vmatpush1.msra.mxu0 0.0
    %1929 = vmatprep.subr.mxu0 0.0
    %1930 = vmatpush1.msra.mxu0 0.0
    %1931 = vmatprep.subr.mxu0 0.0
    %1932 = vmatpush1.msra.mxu0 0.0
    %1933 = vmatprep.subr.mxu0 0.0
    %1934 = vmatpush1.msra.mxu0 0.0
    %1935 = vmatprep.subr.mxu0 0.0
    %1936 = vmatpush1.msra.mxu0 0.0
    %1937 = vmatprep.subr.mxu0 0.0
    %1938 = vmatpush1.msra.mxu0 0.0
    %1939 = vmatprep.subr.mxu0 0.0
    %1940 = vmatpush1.msra.mxu0 0.0
    %1941 = vmatprep.subr.mxu0 0.0
    %1942 = vmatpush1.msra.mxu0 0.0
    %1943 = vmatprep.subr.mxu0 0.0
    %1944 = vmatpush1.msra.mxu0 0.0
    %1945 = vmatprep.subr.mxu0 0.0
    %1946 = vmatpush1.msra.mxu0 0.0
    %1947 = vmatprep.subr.mxu0 0.0
    %1948 = vmatpush1.msra.mxu0 0.0
    %1949 = vmatprep.subr.mxu0 0.0
    %1950 = vmatpush1.msra.mxu0 0.0
    %1951 = vmatprep.subr.mxu0 0.0
    %1952 = vmatpush1.msra.mxu0 0.0
    %1953 = vmatprep.subr.mxu0 0.0
    %1954 = vmatpush1.msra.mxu0 0.0
    %1955 = vmatprep.subr.mxu0 0.0
    %1956 = vmatpush1.msra.mxu0 0.0
    %1957 = vmatprep.subr.mxu0 0.0
    %1958 = vmatpush1.msra.mxu0 0.0
    %1959 = vmatprep.subr.mxu0 0.0
    %1960 = vmatpush1.msra.mxu0 0.0
    %1961 = vmatprep.subr.mxu0 0.0
    %1962 = vmatpush1.msra.mxu0 0.0
    %1963 = vmatprep.subr.mxu0 0.0
    %1964 = vmatpush1.msra.mxu0 0.0
    %1965 = vmatprep.subr.mxu0 0.0
    %1966 = vmatpush1.msra.mxu0 0.0
    %1967 = vmatprep.subr.mxu0 0.0
    %1968 = vmatpush1.msra.mxu0 0.0
    %1969 = vmatprep.subr.mxu0 0.0
    %1970 = vmatpush1.msra.mxu0 0.0
    %1971 = vmatprep.subr.mxu0 0.0
    %1972 = vmatpush1.msra.mxu0 0.0
    %1973 = vmatprep.subr.mxu0 0.0
    %1974 = vmatpush1.msra.mxu0 0.0
    %1975 = vmatprep.subr.mxu0 0.0
    %1976 = vmatpush1.msra.mxu0 0.0
    %1977 = vmatprep.subr.mxu0 0.0
    %1978 = vmatpush1.msra.mxu0 0.0
    %1979 = vmatprep.mubr.f32.mxu0 0.0
    %1980 = vmatmul.mubr.f32.gmra.mrb[0].mxu0 %v1913
    %v1981 = vpop.f32.mrb[0].mxu0
    %v1982 = vadd.f32 0.0, %v1981
    %v1983 = vpop.f32.mrb[0].mxu0
    %1984 = vdwg.mxu0
    %v1985 = vrot.slane %v402, 4
    %v1986 = vsel %vm587, %v1985, 0
    %1988 = vmatprep.subr.mxu0 0.0
    %1989 = vmatpush1.msra.mxu0 %v1791
    %1990 = vmatprep.subr.mxu0 0.0
    %1991 = vmatpush1.msra.mxu0 0.0
    %1992 = vmatprep.subr.mxu0 0.0
    %1993 = vmatpush1.msra.mxu0 0.0
    %1994 = vmatprep.subr.mxu0 0.0
    %1995 = vmatpush1.msra.mxu0 0.0
    %1996 = vmatprep.subr.mxu0 0.0
    %1997 = vmatpush1.msra.mxu0 0.0
    %1998 = vmatprep.subr.mxu0 0.0
    %1999 = vmatpush1.msra.mxu0 0.0
    %2000 = vmatprep.subr.mxu0 0.0
    %2001 = vmatpush1.msra.mxu0 0.0
    %2002 = vmatprep.subr.mxu0 0.0
    %2003 = vmatpush1.msra.mxu0 0.0
    %2004 = vmatprep.subr.mxu0 0.0
    %2005 = vmatpush1.msra.mxu0 0.0
    %2006 = vmatprep.subr.mxu0 0.0
    %2007 = vmatpush1.msra.mxu0 0.0
    %2008 = vmatprep.subr.mxu0 0.0
    %2009 = vmatpush1.msra.mxu0 0.0
    %2010 = vmatprep.subr.mxu0 0.0
    %2011 = vmatpush1.msra.mxu0 0.0
    %2012 = vmatprep.subr.mxu0 0.0
    %2013 = vmatpush1.msra.mxu0 0.0
    %2014 = vmatprep.subr.mxu0 0.0
    %2015 = vmatpush1.msra.mxu0 0.0
    %2016 = vmatprep.subr.mxu0 0.0
    %2017 = vmatpush1.msra.mxu0 0.0
    %2018 = vmatprep.subr.mxu0 0.0
    %2019 = vmatpush1.msra.mxu0 0.0
    %2020 = vmatprep.subr.mxu0 0.0
    %2021 = vmatpush1.msra.mxu0 0.0
    %2022 = vmatprep.subr.mxu0 0.0
    %2023 = vmatpush1.msra.mxu0 0.0
    %2024 = vmatprep.subr.mxu0 0.0
    %2025 = vmatpush1.msra.mxu0 0.0
    %2026 = vmatprep.subr.mxu0 0.0
    %2027 = vmatpush1.msra.mxu0 0.0
    %2028 = vmatprep.subr.mxu0 0.0
    %2029 = vmatpush1.msra.mxu0 0.0
    %2030 = vmatprep.subr.mxu0 0.0
    %2031 = vmatpush1.msra.mxu0 0.0
    %2032 = vmatprep.subr.mxu0 0.0
    %2033 = vmatpush1.msra.mxu0 0.0
    %2034 = vmatprep.subr.mxu0 0.0
    %2035 = vmatpush1.msra.mxu0 0.0
    %2036 = vmatprep.subr.mxu0 0.0
    %2037 = vmatpush1.msra.mxu0 0.0
    %2038 = vmatprep.subr.mxu0 0.0
    %2039 = vmatpush1.msra.mxu0 0.0
    %2040 = vmatprep.subr.mxu0 0.0
    %2041 = vmatpush1.msra.mxu0 0.0
    %2042 = vmatprep.subr.mxu0 0.0
    %2043 = vmatpush1.msra.mxu0 0.0
    %2044 = vmatprep.subr.mxu0 0.0
    %2045 = vmatpush1.msra.mxu0 0.0
    %2046 = vmatprep.subr.mxu0 0.0
    %2047 = vmatpush1.msra.mxu0 0.0
    %2048 = vmatprep.subr.mxu0 0.0
    %2049 = vmatpush1.msra.mxu0 0.0
    %2050 = vmatprep.subr.mxu0 0.0
    %2051 = vmatpush1.msra.mxu0 0.0
    %2052 = vmatprep.mubr.f32.mxu0 0.0
    %2053 = vmatmul.mubr.f32.gmra.mrb[0].mxu0 %v1986
    %v2054 = vpop.f32.mrb[0].mxu0
    %v2055 = vadd.f32 0.0, %v2054
    %v2056 = vpop.f32.mrb[0].mxu0
    %2057 = vdwg.mxu0
    %v2058 = vrot.slane %v404, 4
    %v2059 = vsel %vm587, %v2058, 0
    %2061 = vmatprep.subr.mxu0 0.0
    %2062 = vmatpush1.msra.mxu0 %v1823
    %2063 = vmatprep.subr.mxu0 0.0
    %2064 = vmatpush1.msra.mxu0 0.0
    %2065 = vmatprep.subr.mxu0 0.0
    %2066 = vmatpush1.msra.mxu0 0.0
    %2067 = vmatprep.subr.mxu0 0.0
    %2068 = vmatpush1.msra.mxu0 0.0
    %2069 = vmatprep.subr.mxu0 0.0
    %2070 = vmatpush1.msra.mxu0 0.0
    %2071 = vmatprep.subr.mxu0 0.0
    %2072 = vmatpush1.msra.mxu0 0.0
    %2073 = vmatprep.subr.mxu0 0.0
    %2074 = vmatpush1.msra.mxu0 0.0
    %2075 = vmatprep.subr.mxu0 0.0
    %2076 = vmatpush1.msra.mxu0 0.0
    %2077 = vmatprep.subr.mxu0 0.0
    %2078 = vmatpush1.msra.mxu0 0.0
    %2079 = vmatprep.subr.mxu0 0.0
    %2080 = vmatpush1.msra.mxu0 0.0
    %2081 = vmatprep.subr.mxu0 0.0
    %2082 = vmatpush1.msra.mxu0 0.0
    %2083 = vmatprep.subr.mxu0 0.0
    %2084 = vmatpush1.msra.mxu0 0.0
    %2085 = vmatprep.subr.mxu0 0.0
    %2086 = vmatpush1.msra.mxu0 0.0
    %2087 = vmatprep.subr.mxu0 0.0
    %2088 = vmatpush1.msra.mxu0 0.0
    %2089 = vmatprep.subr.mxu0 0.0
    %2090 = vmatpush1.msra.mxu0 0.0
    %2091 = vmatprep.subr.mxu0 0.0
    %2092 = vmatpush1.msra.mxu0 0.0
    %2093 = vmatprep.subr.mxu0 0.0
    %2094 = vmatpush1.msra.mxu0 0.0
    %2095 = vmatprep.subr.mxu0 0.0
    %2096 = vmatpush1.msra.mxu0 0.0
    %2097 = vmatprep.subr.mxu0 0.0
    %2098 = vmatpush1.msra.mxu0 0.0
    %2099 = vmatprep.subr.mxu0 0.0
    %2100 = vmatpush1.msra.mxu0 0.0
    %2101 = vmatprep.subr.mxu0 0.0
    %2102 = vmatpush1.msra.mxu0 0.0
    %2103 = vmatprep.subr.mxu0 0.0
    %2104 = vmatpush1.msra.mxu0 0.0
    %2105 = vmatprep.subr.mxu0 0.0
    %2106 = vmatpush1.msra.mxu0 0.0
    %2107 = vmatprep.subr.mxu0 0.0
    %2108 = vmatpush1.msra.mxu0 0.0
    %2109 = vmatprep.subr.mxu0 0.0
    %2110 = vmatpush1.msra.mxu0 0.0
    %2111 = vmatprep.subr.mxu0 0.0
    %2112 = vmatpush1.msra.mxu0 0.0
    %2113 = vmatprep.subr.mxu0 0.0
    %2114 = vmatpush1.msra.mxu0 0.0
    %2115 = vmatprep.subr.mxu0 0.0
    %2116 = vmatpush1.msra.mxu0 0.0
    %2117 = vmatprep.subr.mxu0 0.0
    %2118 = vmatpush1.msra.mxu0 0.0
    %2119 = vmatprep.subr.mxu0 0.0
    %2120 = vmatpush1.msra.mxu0 0.0
    %2121 = vmatprep.subr.mxu0 0.0
    %2122 = vmatpush1.msra.mxu0 0.0
    %2123 = vmatprep.subr.mxu0 0.0
    %2124 = vmatpush1.msra.mxu0 0.0
    %2125 = vmatprep.mubr.f32.mxu0 0.0
    %2126 = vmatmul.mubr.f32.gmra.mrb[0].mxu0 %v2059
    %v2127 = vpop.f32.mrb[0].mxu0
    %v2128 = vadd.f32 0.0, %v2127
    %v2129 = vpop.f32.mrb[0].mxu0
    %2130 = vdwg.mxu0
    %v2131 = vmul.f32 %v1909, %v876
    %v2132 = vmul.f32 %v1982, %v876
    %v2133 = vmul.f32 %v2055, %v876
    %v2134 = vmul.f32 %v2128, %v876
    %s2135 = scalar_lea.vmem [#allocation7], 4
    %v2136 = vld [vmem:[%s2135] sm:$0xf]
    %v2137 = vadd.f32 %v2131, %v2136
    %v2138 = vadd.f32 %v2132, %v2136
    %v2139 = vadd.f32 %v2133, %v2136
    %v2140 = vadd.f32 %v2134, %v2136
    %v2141 = vsel %vm886, %v2137, -inf
    %2142 = vmax.xlane.f32.xlu0 %v2141
    %v2143 = vpop.xlane.xlu0 %2142
    %v2144 = vsel %vm886, %v2138, -inf
    %2145 = vmax.xlane.f32.xlu0 %v2144
    %v2146 = vpop.xlane.xlu0 %2145
    %v2147 = vsel %vm886, %v2139, -inf
    %2148 = vmax.xlane.f32.xlu0 %v2147
    %v2149 = vpop.xlane.xlu0 %2148
    %v2150 = vsel %vm886, %v2140, -inf
    %2151 = vmax.xlane.f32.xlu0 %v2150
    %v2152 = vpop.xlane.xlu0 %2151
    %v2153 = vsub.f32 %v2137, %v2143
    %v2154 = vsub.f32 %v2138, %v2146
    %v2155 = vsub.f32 %v2139, %v2149
    %v2156 = vsub.f32 %v2140, %v2152
    %v2157 = vmul.f32 %v2153, 1.442695
    %v2158 = vpow.pop %v2157
    %v2159 = vmul.f32 %v2154, 1.442695
    %v2160 = vpow.pop %v2159
    %v2161 = vmul.f32 %v2155, 1.442695
    %v2162 = vpow.pop %v2161
    %v2163 = vmul.f32 %v2156, 1.442695
    %v2164 = vpow.pop %v2163
    %v2165 = vsel %vm886, %v2158, 0.0
    %2166 = vadd.xlane.f32.xlu0 %v2165
    %v2167 = vpop.xlane.xlu0 %2166
    %v2168 = vsel %vm886, %v2160, 0.0
    %2169 = vadd.xlane.f32.xlu0 %v2168
    %v2170 = vpop.xlane.xlu0 %2169
    %v2171 = vsel %vm886, %v2162, 0.0
    %2172 = vadd.xlane.f32.xlu0 %v2171
    %v2173 = vpop.xlane.xlu0 %2172
    %v2174 = vsel %vm886, %v2164, 0.0
    %2175 = vadd.xlane.f32.xlu0 %v2174
    %v2176 = vpop.xlane.xlu0 %2175
    %v2177 = vrcp.pop %v2167
    %v2178 = vrcp.pop %v2170
    %v2179 = vrcp.pop %v2173
    %v2180 = vrcp.pop %v2176
    %v2181 = vmul.f32 %v2158, %v2177
    %v2182 = vmul.f32 %v2160, %v2178
    %v2183 = vmul.f32 %v2162, %v2179
    %v2184 = vmul.f32 %v2164, %v2180
    %2185 = vxpose.xlu0.b32.start [1/16] %v1693, 128
    %2186 = vxpose.xlu0.b32.cont [2/16] 0.0, 128
    %2187 = vxpose.xlu0.b32.cont [3/16] 0.0, 128
    %2188 = vxpose.xlu0.b32.cont [4/16] 0.0, 128
    %2189 = vxpose.xlu0.b32.cont [5/16] 0.0, 128
    %2190 = vxpose.xlu0.b32.cont [6/16] 0.0, 128
    %2191 = vxpose.xlu0.b32.cont [7/16] 0.0, 128
    %2192 = vxpose.xlu0.b32.cont [8/16] 0.0, 128
    %2193 = vxpose.xlu0.b32.cont [9/16] 0.0, 128
    %2194 = vxpose.xlu0.b32.cont [10/16] 0.0, 128
    %2195 = vxpose.xlu0.b32.cont [11/16] 0.0, 128
    %2196 = vxpose.xlu0.b32.cont [12/16] 0.0, 128
    %2197 = vxpose.xlu0.b32.cont [13/16] 0.0, 128
    %2198 = vxpose.xlu0.b32.cont [14/16] 0.0, 128
    %2199 = vxpose.xlu0.b32.cont [15/16] 0.0, 128
    %2200 = vxpose.xlu0.b32.end [16/16] 0.0, 128
    %v2201 = vpop.trf.xlu0
    %v2202 = vpop.trf.xlu0
    %v2203 = vpop.trf.xlu0
    %v2204 = vpop.trf.xlu0
    %v2205 = vpop.trf.xlu0
    %v2206 = vpop.trf.xlu0
    %v2207 = vpop.trf.xlu0
    %v2208 = vpop.trf.xlu0
    %v2209 = vpop.trf.xlu0
    %v2210 = vpop.trf.xlu0
    %v2211 = vpop.trf.xlu0
    %v2212 = vpop.trf.xlu0
    %v2213 = vpop.trf.xlu0
    %v2214 = vpop.trf.xlu0
    %v2215 = vpop.trf.xlu0
    %v2216 = vpop.trf.xlu0
    %v2218 = vsel %vm963, %v2201, 0
    %v2221 = vsel %vm963, %v2181, 0
    %2223 = vmatprep.subr.mxu0 0.0
    %2224 = vmatpush1.xpose.msra.mxu0 %v2221
    %2225 = vmatprep.subr.mxu0 0.0
    %2226 = vmatpush1.xpose.msra.mxu0 0.0
    %2227 = vmatprep.subr.mxu0 0.0
    %2228 = vmatpush1.xpose.msra.mxu0 0.0
    %2229 = vmatprep.subr.mxu0 0.0
    %2230 = vmatpush1.xpose.msra.mxu0 0.0
    %2231 = vmatprep.subr.mxu0 0.0
    %2232 = vmatpush1.xpose.msra.mxu0 0.0
    %2233 = vmatprep.subr.mxu0 0.0
    %2234 = vmatpush1.xpose.msra.mxu0 0.0
    %2235 = vmatprep.subr.mxu0 0.0
    %2236 = vmatpush1.xpose.msra.mxu0 0.0
    %2237 = vmatprep.subr.mxu0 0.0
    %2238 = vmatpush1.xpose.msra.mxu0 0.0
    %2239 = vmatprep.subr.mxu0 0.0
    %2240 = vmatpush1.xpose.msra.mxu0 0.0
    %2241 = vmatprep.subr.mxu0 0.0
    %2242 = vmatpush1.xpose.msra.mxu0 0.0
    %2243 = vmatprep.subr.mxu0 0.0
    %2244 = vmatpush1.xpose.msra.mxu0 0.0
    %2245 = vmatprep.subr.mxu0 0.0
    %2246 = vmatpush1.xpose.msra.mxu0 0.0
    %2247 = vmatprep.subr.mxu0 0.0
    %2248 = vmatpush1.xpose.msra.mxu0 0.0
    %2249 = vmatprep.subr.mxu0 0.0
    %2250 = vmatpush1.xpose.msra.mxu0 0.0
    %2251 = vmatprep.subr.mxu0 0.0
    %2252 = vmatpush1.xpose.msra.mxu0 0.0
    %2253 = vmatprep.subr.mxu0 0.0
    %2254 = vmatpush1.xpose.msra.mxu0 0.0
    %2255 = vmatprep.subr.mxu0 0.0
    %2256 = vmatpush1.xpose.msra.mxu0 0.0
    %2257 = vmatprep.subr.mxu0 0.0
    %2258 = vmatpush1.xpose.msra.mxu0 0.0
    %2259 = vmatprep.subr.mxu0 0.0
    %2260 = vmatpush1.xpose.msra.mxu0 0.0
    %2261 = vmatprep.subr.mxu0 0.0
    %2262 = vmatpush1.xpose.msra.mxu0 0.0
    %2263 = vmatprep.subr.mxu0 0.0
    %2264 = vmatpush1.xpose.msra.mxu0 0.0
    %2265 = vmatprep.subr.mxu0 0.0
    %2266 = vmatpush1.xpose.msra.mxu0 0.0
    %2267 = vmatprep.subr.mxu0 0.0
    %2268 = vmatpush1.xpose.msra.mxu0 0.0
    %2269 = vmatprep.subr.mxu0 0.0
    %2270 = vmatpush1.xpose.msra.mxu0 0.0
    %2271 = vmatprep.subr.mxu0 0.0
    %2272 = vmatpush1.xpose.msra.mxu0 0.0
    %2273 = vmatprep.subr.mxu0 0.0
    %2274 = vmatpush1.xpose.msra.mxu0 0.0
    %2275 = vmatprep.subr.mxu0 0.0
    %2276 = vmatpush1.xpose.msra.mxu0 0.0
    %2277 = vmatprep.subr.mxu0 0.0
    %2278 = vmatpush1.xpose.msra.mxu0 0.0
    %2279 = vmatprep.subr.mxu0 0.0
    %2280 = vmatpush1.xpose.msra.mxu0 0.0
    %2281 = vmatprep.subr.mxu0 0.0
    %2282 = vmatpush1.xpose.msra.mxu0 0.0
    %2283 = vmatprep.subr.mxu0 0.0
    %2284 = vmatpush1.xpose.msra.mxu0 0.0
    %2285 = vmatprep.subr.mxu0 0.0
    %2286 = vmatpush1.xpose.msra.mxu0 0.0
    %2287 = vmatprep.mubr.f32.mxu0 0.0
    %2288 = vmatmul.mubr.f32.gmra.mrb[0].mxu0 %v2218
    %v2289 = vpop.f32.mrb[0].mxu0
    %v2290 = vadd.f32 0.0, %v2289
    %v2291 = vpop.f32.mrb[0].mxu0
    %2292 = vdwg.mxu0
    %2293 = vxpose.xlu0.b32.start [1/16] %v1701, 128
    %2294 = vxpose.xlu0.b32.cont [2/16] 0.0, 128
    %2295 = vxpose.xlu0.b32.cont [3/16] 0.0, 128
    %2296 = vxpose.xlu0.b32.cont [4/16] 0.0, 128
    %2297 = vxpose.xlu0.b32.cont [5/16] 0.0, 128
    %2298 = vxpose.xlu0.b32.cont [6/16] 0.0, 128
    %2299 = vxpose.xlu0.b32.cont [7/16] 0.0, 128
    %2300 = vxpose.xlu0.b32.cont [8/16] 0.0, 128
    %2301 = vxpose.xlu0.b32.cont [9/16] 0.0, 128
    %2302 = vxpose.xlu0.b32.cont [10/16] 0.0, 128
    %2303 = vxpose.xlu0.b32.cont [11/16] 0.0, 128
    %2304 = vxpose.xlu0.b32.cont [12/16] 0.0, 128
    %2305 = vxpose.xlu0.b32.cont [13/16] 0.0, 128
    %2306 = vxpose.xlu0.b32.cont [14/16] 0.0, 128
    %2307 = vxpose.xlu0.b32.cont [15/16] 0.0, 128
    %2308 = vxpose.xlu0.b32.end [16/16] 0.0, 128
    %v2309 = vpop.trf.xlu0
    %v2310 = vpop.trf.xlu0
    %v2311 = vpop.trf.xlu0
    %v2312 = vpop.trf.xlu0
    %v2313 = vpop.trf.xlu0
    %v2314 = vpop.trf.xlu0
    %v2315 = vpop.trf.xlu0
    %v2316 = vpop.trf.xlu0
    %v2317 = vpop.trf.xlu0
    %v2318 = vpop.trf.xlu0
    %v2319 = vpop.trf.xlu0
    %v2320 = vpop.trf.xlu0
    %v2321 = vpop.trf.xlu0
    %v2322 = vpop.trf.xlu0
    %v2323 = vpop.trf.xlu0
    %v2324 = vpop.trf.xlu0
    %v2326 = vsel %vm963, %v2309, 0
    %v2329 = vsel %vm963, %v2182, 0
    %2331 = vmatprep.subr.mxu0 0.0
    %2332 = vmatpush1.xpose.msra.mxu0 %v2329
    %2333 = vmatprep.subr.mxu0 0.0
    %2334 = vmatpush1.xpose.msra.mxu0 0.0
    %2335 = vmatprep.subr.mxu0 0.0
    %2336 = vmatpush1.xpose.msra.mxu0 0.0
    %2337 = vmatprep.subr.mxu0 0.0
    %2338 = vmatpush1.xpose.msra.mxu0 0.0
    %2339 = vmatprep.subr.mxu0 0.0
    %2340 = vmatpush1.xpose.msra.mxu0 0.0
    %2341 = vmatprep.subr.mxu0 0.0
    %2342 = vmatpush1.xpose.msra.mxu0 0.0
    %2343 = vmatprep.subr.mxu0 0.0
    %2344 = vmatpush1.xpose.msra.mxu0 0.0
    %2345 = vmatprep.subr.mxu0 0.0
    %2346 = vmatpush1.xpose.msra.mxu0 0.0
    %2347 = vmatprep.subr.mxu0 0.0
    %2348 = vmatpush1.xpose.msra.mxu0 0.0
    %2349 = vmatprep.subr.mxu0 0.0
    %2350 = vmatpush1.xpose.msra.mxu0 0.0
    %2351 = vmatprep.subr.mxu0 0.0
    %2352 = vmatpush1.xpose.msra.mxu0 0.0
    %2353 = vmatprep.subr.mxu0 0.0
    %2354 = vmatpush1.xpose.msra.mxu0 0.0
    %2355 = vmatprep.subr.mxu0 0.0
    %2356 = vmatpush1.xpose.msra.mxu0 0.0
    %2357 = vmatprep.subr.mxu0 0.0
    %2358 = vmatpush1.xpose.msra.mxu0 0.0
    %2359 = vmatprep.subr.mxu0 0.0
    %2360 = vmatpush1.xpose.msra.mxu0 0.0
    %2361 = vmatprep.subr.mxu0 0.0
    %2362 = vmatpush1.xpose.msra.mxu0 0.0
    %2363 = vmatprep.subr.mxu0 0.0
    %2364 = vmatpush1.xpose.msra.mxu0 0.0
    %2365 = vmatprep.subr.mxu0 0.0
    %2366 = vmatpush1.xpose.msra.mxu0 0.0
    %2367 = vmatprep.subr.mxu0 0.0
    %2368 = vmatpush1.xpose.msra.mxu0 0.0
    %2369 = vmatprep.subr.mxu0 0.0
    %2370 = vmatpush1.xpose.msra.mxu0 0.0
    %2371 = vmatprep.subr.mxu0 0.0
    %2372 = vmatpush1.xpose.msra.mxu0 0.0
    %2373 = vmatprep.subr.mxu0 0.0
    %2374 = vmatpush1.xpose.msra.mxu0 0.0
    %2375 = vmatprep.subr.mxu0 0.0
    %2376 = vmatpush1.xpose.msra.mxu0 0.0
    %2377 = vmatprep.subr.mxu0 0.0
    %2378 = vmatpush1.xpose.msra.mxu0 0.0
    %2379 = vmatprep.subr.mxu0 0.0
    %2380 = vmatpush1.xpose.msra.mxu0 0.0
    %2381 = vmatprep.subr.mxu0 0.0
    %2382 = vmatpush1.xpose.msra.mxu0 0.0
    %2383 = vmatprep.subr.mxu0 0.0
    %2384 = vmatpush1.xpose.msra.mxu0 0.0
    %2385 = vmatprep.subr.mxu0 0.0
    %2386 = vmatpush1.xpose.msra.mxu0 0.0
    %2387 = vmatprep.subr.mxu0 0.0
    %2388 = vmatpush1.xpose.msra.mxu0 0.0
    %2389 = vmatprep.subr.mxu0 0.0
    %2390 = vmatpush1.xpose.msra.mxu0 0.0
    %2391 = vmatprep.subr.mxu0 0.0
    %2392 = vmatpush1.xpose.msra.mxu0 0.0
    %2393 = vmatprep.subr.mxu0 0.0
    %2394 = vmatpush1.xpose.msra.mxu0 0.0
    %2395 = vmatprep.mubr.f32.mxu0 0.0
    %2396 = vmatmul.mubr.f32.gmra.mrb[0].mxu0 %v2326
    %v2397 = vpop.f32.mrb[0].mxu0
    %v2398 = vadd.f32 0.0, %v2397
    %v2399 = vpop.f32.mrb[0].mxu0
    %2400 = vdwg.mxu0
    %2401 = vxpose.xlu0.b32.start [1/16] %v1700, 128
    %2402 = vxpose.xlu0.b32.cont [2/16] 0.0, 128
    %2403 = vxpose.xlu0.b32.cont [3/16] 0.0, 128
    %2404 = vxpose.xlu0.b32.cont [4/16] 0.0, 128
    %2405 = vxpose.xlu0.b32.cont [5/16] 0.0, 128
    %2406 = vxpose.xlu0.b32.cont [6/16] 0.0, 128
    %2407 = vxpose.xlu0.b32.cont [7/16] 0.0, 128
    %2408 = vxpose.xlu0.b32.cont [8/16] 0.0, 128
    %2409 = vxpose.xlu0.b32.cont [9/16] 0.0, 128
    %2410 = vxpose.xlu0.b32.cont [10/16] 0.0, 128
    %2411 = vxpose.xlu0.b32.cont [11/16] 0.0, 128
    %2412 = vxpose.xlu0.b32.cont [12/16] 0.0, 128
    %2413 = vxpose.xlu0.b32.cont [13/16] 0.0, 128
    %2414 = vxpose.xlu0.b32.cont [14/16] 0.0, 128
    %2415 = vxpose.xlu0.b32.cont [15/16] 0.0, 128
    %2416 = vxpose.xlu0.b32.end [16/16] 0.0, 128
    %v2417 = vpop.trf.xlu0
    %v2418 = vpop.trf.xlu0
    %v2419 = vpop.trf.xlu0
    %v2420 = vpop.trf.xlu0
    %v2421 = vpop.trf.xlu0
    %v2422 = vpop.trf.xlu0
    %v2423 = vpop.trf.xlu0
    %v2424 = vpop.trf.xlu0
    %v2425 = vpop.trf.xlu0
    %v2426 = vpop.trf.xlu0
    %v2427 = vpop.trf.xlu0
    %v2428 = vpop.trf.xlu0
    %v2429 = vpop.trf.xlu0
    %v2430 = vpop.trf.xlu0
    %v2431 = vpop.trf.xlu0
    %v2432 = vpop.trf.xlu0
    %v2434 = vsel %vm963, %v2417, 0
    %v2437 = vsel %vm963, %v2183, 0
    %2439 = vmatprep.subr.mxu0 0.0
    %2440 = vmatpush1.xpose.msra.mxu0 %v2437
    %2441 = vmatprep.subr.mxu0 0.0
    %2442 = vmatpush1.xpose.msra.mxu0 0.0
    %2443 = vmatprep.subr.mxu0 0.0
    %2444 = vmatpush1.xpose.msra.mxu0 0.0
    %2445 = vmatprep.subr.mxu0 0.0
    %2446 = vmatpush1.xpose.msra.mxu0 0.0
    %2447 = vmatprep.subr.mxu0 0.0
    %2448 = vmatpush1.xpose.msra.mxu0 0.0
    %2449 = vmatprep.subr.mxu0 0.0
    %2450 = vmatpush1.xpose.msra.mxu0 0.0
    %2451 = vmatprep.subr.mxu0 0.0
    %2452 = vmatpush1.xpose.msra.mxu0 0.0
    %2453 = vmatprep.subr.mxu0 0.0
    %2454 = vmatpush1.xpose.msra.mxu0 0.0
    %2455 = vmatprep.subr.mxu0 0.0
    %2456 = vmatpush1.xpose.msra.mxu0 0.0
    %2457 = vmatprep.subr.mxu0 0.0
    %2458 = vmatpush1.xpose.msra.mxu0 0.0
    %2459 = vmatprep.subr.mxu0 0.0
    %2460 = vmatpush1.xpose.msra.mxu0 0.0
    %2461 = vmatprep.subr.mxu0 0.0
    %2462 = vmatpush1.xpose.msra.mxu0 0.0
    %2463 = vmatprep.subr.mxu0 0.0
    %2464 = vmatpush1.xpose.msra.mxu0 0.0
    %2465 = vmatprep.subr.mxu0 0.0
    %2466 = vmatpush1.xpose.msra.mxu0 0.0
    %2467 = vmatprep.subr.mxu0 0.0
    %2468 = vmatpush1.xpose.msra.mxu0 0.0
    %2469 = vmatprep.subr.mxu0 0.0
    %2470 = vmatpush1.xpose.msra.mxu0 0.0
    %2471 = vmatprep.subr.mxu0 0.0
    %2472 = vmatpush1.xpose.msra.mxu0 0.0
    %2473 = vmatprep.subr.mxu0 0.0
    %2474 = vmatpush1.xpose.msra.mxu0 0.0
    %2475 = vmatprep.subr.mxu0 0.0
    %2476 = vmatpush1.xpose.msra.mxu0 0.0
    %2477 = vmatprep.subr.mxu0 0.0
    %2478 = vmatpush1.xpose.msra.mxu0 0.0
    %2479 = vmatprep.subr.mxu0 0.0
    %2480 = vmatpush1.xpose.msra.mxu0 0.0
    %2481 = vmatprep.subr.mxu0 0.0
    %2482 = vmatpush1.xpose.msra.mxu0 0.0
    %2483 = vmatprep.subr.mxu0 0.0
    %2484 = vmatpush1.xpose.msra.mxu0 0.0
    %2485 = vmatprep.subr.mxu0 0.0
    %2486 = vmatpush1.xpose.msra.mxu0 0.0
    %2487 = vmatprep.subr.mxu0 0.0
    %2488 = vmatpush1.xpose.msra.mxu0 0.0
    %2489 = vmatprep.subr.mxu0 0.0
    %2490 = vmatpush1.xpose.msra.mxu0 0.0
    %2491 = vmatprep.subr.mxu0 0.0
    %2492 = vmatpush1.xpose.msra.mxu0 0.0
    %2493 = vmatprep.subr.mxu0 0.0
    %2494 = vmatpush1.xpose.msra.mxu0 0.0
    %2495 = vmatprep.subr.mxu0 0.0
    %2496 = vmatpush1.xpose.msra.mxu0 0.0
    %2497 = vmatprep.subr.mxu0 0.0
    %2498 = vmatpush1.xpose.msra.mxu0 0.0
    %2499 = vmatprep.subr.mxu0 0.0
    %2500 = vmatpush1.xpose.msra.mxu0 0.0
    %2501 = vmatprep.subr.mxu0 0.0
    %2502 = vmatpush1.xpose.msra.mxu0 0.0
    %2503 = vmatprep.mubr.f32.mxu0 0.0
    %2504 = vmatmul.mubr.f32.gmra.mrb[0].mxu0 %v2434
    %v2505 = vpop.f32.mrb[0].mxu0
    %v2506 = vadd.f32 0.0, %v2505
    %v2507 = vpop.f32.mrb[0].mxu0
    %2508 = vdwg.mxu0
    %2509 = vxpose.xlu0.b32.start [1/16] %v1702, 128
    %2510 = vxpose.xlu0.b32.cont [2/16] 0.0, 128
    %2511 = vxpose.xlu0.b32.cont [3/16] 0.0, 128
    %2512 = vxpose.xlu0.b32.cont [4/16] 0.0, 128
    %2513 = vxpose.xlu0.b32.cont [5/16] 0.0, 128
    %2514 = vxpose.xlu0.b32.cont [6/16] 0.0, 128
    %2515 = vxpose.xlu0.b32.cont [7/16] 0.0, 128
    %2516 = vxpose.xlu0.b32.cont [8/16] 0.0, 128
    %2517 = vxpose.xlu0.b32.cont [9/16] 0.0, 128
    %2518 = vxpose.xlu0.b32.cont [10/16] 0.0, 128
    %2519 = vxpose.xlu0.b32.cont [11/16] 0.0, 128
    %2520 = vxpose.xlu0.b32.cont [12/16] 0.0, 128
    %2521 = vxpose.xlu0.b32.cont [13/16] 0.0, 128
    %2522 = vxpose.xlu0.b32.cont [14/16] 0.0, 128
    %2523 = vxpose.xlu0.b32.cont [15/16] 0.0, 128
    %2524 = vxpose.xlu0.b32.end [16/16] 0.0, 128
    %v2525 = vpop.trf.xlu0
    %v2526 = vpop.trf.xlu0
    %v2527 = vpop.trf.xlu0
    %v2528 = vpop.trf.xlu0
    %v2529 = vpop.trf.xlu0
    %v2530 = vpop.trf.xlu0
    %v2531 = vpop.trf.xlu0
    %v2532 = vpop.trf.xlu0
    %v2533 = vpop.trf.xlu0
    %v2534 = vpop.trf.xlu0
    %v2535 = vpop.trf.xlu0
    %v2536 = vpop.trf.xlu0
    %v2537 = vpop.trf.xlu0
    %v2538 = vpop.trf.xlu0
    %v2539 = vpop.trf.xlu0
    %v2540 = vpop.trf.xlu0
    %v2542 = vsel %vm963, %v2525, 0
    %v2545 = vsel %vm963, %v2184, 0
    %2547 = vmatprep.subr.mxu0 0.0
    %2548 = vmatpush1.xpose.msra.mxu0 %v2545
    %2549 = vmatprep.subr.mxu0 0.0
    %2550 = vmatpush1.xpose.msra.mxu0 0.0
    %2551 = vmatprep.subr.mxu0 0.0
    %2552 = vmatpush1.xpose.msra.mxu0 0.0
    %2553 = vmatprep.subr.mxu0 0.0
    %2554 = vmatpush1.xpose.msra.mxu0 0.0
    %2555 = vmatprep.subr.mxu0 0.0
    %2556 = vmatpush1.xpose.msra.mxu0 0.0
    %2557 = vmatprep.subr.mxu0 0.0
    %2558 = vmatpush1.xpose.msra.mxu0 0.0
    %2559 = vmatprep.subr.mxu0 0.0
    %2560 = vmatpush1.xpose.msra.mxu0 0.0
    %2561 = vmatprep.subr.mxu0 0.0
    %2562 = vmatpush1.xpose.msra.mxu0 0.0
    %2563 = vmatprep.subr.mxu0 0.0
    %2564 = vmatpush1.xpose.msra.mxu0 0.0
    %2565 = vmatprep.subr.mxu0 0.0
    %2566 = vmatpush1.xpose.msra.mxu0 0.0
    %2567 = vmatprep.subr.mxu0 0.0
    %2568 = vmatpush1.xpose.msra.mxu0 0.0
    %2569 = vmatprep.subr.mxu0 0.0
    %2570 = vmatpush1.xpose.msra.mxu0 0.0
    %2571 = vmatprep.subr.mxu0 0.0
    %2572 = vmatpush1.xpose.msra.mxu0 0.0
    %2573 = vmatprep.subr.mxu0 0.0
    %2574 = vmatpush1.xpose.msra.mxu0 0.0
    %2575 = vmatprep.subr.mxu0 0.0
    %2576 = vmatpush1.xpose.msra.mxu0 0.0
    %2577 = vmatprep.subr.mxu0 0.0
    %2578 = vmatpush1.xpose.msra.mxu0 0.0
    %2579 = vmatprep.subr.mxu0 0.0
    %2580 = vmatpush1.xpose.msra.mxu0 0.0
    %2581 = vmatprep.subr.mxu0 0.0
    %2582 = vmatpush1.xpose.msra.mxu0 0.0
    %2583 = vmatprep.subr.mxu0 0.0
    %2584 = vmatpush1.xpose.msra.mxu0 0.0
    %2585 = vmatprep.subr.mxu0 0.0
    %2586 = vmatpush1.xpose.msra.mxu0 0.0
    %2587 = vmatprep.subr.mxu0 0.0
    %2588 = vmatpush1.xpose.msra.mxu0 0.0
    %2589 = vmatprep.subr.mxu0 0.0
    %2590 = vmatpush1.xpose.msra.mxu0 0.0
    %2591 = vmatprep.subr.mxu0 0.0
    %2592 = vmatpush1.xpose.msra.mxu0 0.0
    %2593 = vmatprep.subr.mxu0 0.0
    %2594 = vmatpush1.xpose.msra.mxu0 0.0
    %2595 = vmatprep.subr.mxu0 0.0
    %2596 = vmatpush1.xpose.msra.mxu0 0.0
    %2597 = vmatprep.subr.mxu0 0.0
    %2598 = vmatpush1.xpose.msra.mxu0 0.0
    %2599 = vmatprep.subr.mxu0 0.0
    %2600 = vmatpush1.xpose.msra.mxu0 0.0
    %2601 = vmatprep.subr.mxu0 0.0
    %2602 = vmatpush1.xpose.msra.mxu0 0.0
    %2603 = vmatprep.subr.mxu0 0.0
    %2604 = vmatpush1.xpose.msra.mxu0 0.0
    %2605 = vmatprep.subr.mxu0 0.0
    %2606 = vmatpush1.xpose.msra.mxu0 0.0
    %2607 = vmatprep.subr.mxu0 0.0
    %2608 = vmatpush1.xpose.msra.mxu0 0.0
    %2609 = vmatprep.subr.mxu0 0.0
    %2610 = vmatpush1.xpose.msra.mxu0 0.0
    %2611 = vmatprep.mubr.f32.mxu0 0.0
    %2612 = vmatmul.mubr.f32.gmra.mrb[0].mxu0 %v2542
    %v2613 = vpop.f32.mrb[0].mxu0
    %v2614 = vadd.f32 0.0, %v2613
    %v2615 = vpop.f32.mrb[0].mxu0
    %2616 = vdwg.mxu0
    %2617 = vxpose.xlu0.b32.start [1/16] %v2290, 128
    %2618 = vxpose.xlu0.b32.cont [2/16] 0.0, 128
    %2619 = vxpose.xlu0.b32.cont [3/16] 0.0, 128
    %2620 = vxpose.xlu0.b32.cont [4/16] 0.0, 128
    %2621 = vxpose.xlu0.b32.cont [5/16] 0.0, 128
    %2622 = vxpose.xlu0.b32.cont [6/16] 0.0, 128
    %2623 = vxpose.xlu0.b32.cont [7/16] 0.0, 128
    %2624 = vxpose.xlu0.b32.cont [8/16] 0.0, 128
    %2625 = vxpose.xlu0.b32.cont [9/16] 0.0, 128
    %2626 = vxpose.xlu0.b32.cont [10/16] 0.0, 128
    %2627 = vxpose.xlu0.b32.cont [11/16] 0.0, 128
    %2628 = vxpose.xlu0.b32.cont [12/16] 0.0, 128
    %2629 = vxpose.xlu0.b32.cont [13/16] 0.0, 128
    %2630 = vxpose.xlu0.b32.cont [14/16] 0.0, 128
    %2631 = vxpose.xlu0.b32.cont [15/16] 0.0, 128
    %2632 = vxpose.xlu0.b32.end [16/16] 0.0, 128
    %v2633 = vpop.trf.xlu0
    %v2634 = vpop.trf.xlu0
    %v2635 = vpop.trf.xlu0
    %v2636 = vpop.trf.xlu0
    %v2637 = vpop.trf.xlu0
    %v2638 = vpop.trf.xlu0
    %v2639 = vpop.trf.xlu0
    %v2640 = vpop.trf.xlu0
    %v2641 = vpop.trf.xlu0
    %v2642 = vpop.trf.xlu0
    %v2643 = vpop.trf.xlu0
    %v2644 = vpop.trf.xlu0
    %v2645 = vpop.trf.xlu0
    %v2646 = vpop.trf.xlu0
    %v2647 = vpop.trf.xlu0
    %v2648 = vpop.trf.xlu0
    %2649 = vxpose.xlu0.b32.start [1/16] %v2398, 128
    %2650 = vxpose.xlu0.b32.cont [2/16] 0.0, 128
    %2651 = vxpose.xlu0.b32.cont [3/16] 0.0, 128
    %2652 = vxpose.xlu0.b32.cont [4/16] 0.0, 128
    %2653 = vxpose.xlu0.b32.cont [5/16] 0.0, 128
    %2654 = vxpose.xlu0.b32.cont [6/16] 0.0, 128
    %2655 = vxpose.xlu0.b32.cont [7/16] 0.0, 128
    %2656 = vxpose.xlu0.b32.cont [8/16] 0.0, 128
    %2657 = vxpose.xlu0.b32.cont [9/16] 0.0, 128
    %2658 = vxpose.xlu0.b32.cont [10/16] 0.0, 128
    %2659 = vxpose.xlu0.b32.cont [11/16] 0.0, 128
    %2660 = vxpose.xlu0.b32.cont [12/16] 0.0, 128
    %2661 = vxpose.xlu0.b32.cont [13/16] 0.0, 128
    %2662 = vxpose.xlu0.b32.cont [14/16] 0.0, 128
    %2663 = vxpose.xlu0.b32.cont [15/16] 0.0, 128
    %2664 = vxpose.xlu0.b32.end [16/16] 0.0, 128
    %v2665 = vpop.trf.xlu0
    %v2666 = vpop.trf.xlu0
    %v2667 = vpop.trf.xlu0
    %v2668 = vpop.trf.xlu0
    %v2669 = vpop.trf.xlu0
    %v2670 = vpop.trf.xlu0
    %v2671 = vpop.trf.xlu0
    %v2672 = vpop.trf.xlu0
    %v2673 = vpop.trf.xlu0
    %v2674 = vpop.trf.xlu0
    %v2675 = vpop.trf.xlu0
    %v2676 = vpop.trf.xlu0
    %v2677 = vpop.trf.xlu0
    %v2678 = vpop.trf.xlu0
    %v2679 = vpop.trf.xlu0
    %v2680 = vpop.trf.xlu0
    %2681 = vxpose.xlu0.b32.start [1/16] %v2506, 128
    %2682 = vxpose.xlu0.b32.cont [2/16] 0.0, 128
    %2683 = vxpose.xlu0.b32.cont [3/16] 0.0, 128
    %2684 = vxpose.xlu0.b32.cont [4/16] 0.0, 128
    %2685 = vxpose.xlu0.b32.cont [5/16] 0.0, 128
    %2686 = vxpose.xlu0.b32.cont [6/16] 0.0, 128
    %2687 = vxpose.xlu0.b32.cont [7/16] 0.0, 128
    %2688 = vxpose.xlu0.b32.cont [8/16] 0.0, 128
    %2689 = vxpose.xlu0.b32.cont [9/16] 0.0, 128
    %2690 = vxpose.xlu0.b32.cont [10/16] 0.0, 128
    %2691 = vxpose.xlu0.b32.cont [11/16] 0.0, 128
    %2692 = vxpose.xlu0.b32.cont [12/16] 0.0, 128
    %2693 = vxpose.xlu0.b32.cont [13/16] 0.0, 128
    %2694 = vxpose.xlu0.b32.cont [14/16] 0.0, 128
    %2695 = vxpose.xlu0.b32.cont [15/16] 0.0, 128
    %2696 = vxpose.xlu0.b32.end [16/16] 0.0, 128
    %v2697 = vpop.trf.xlu0
    %v2698 = vpop.trf.xlu0
    %v2699 = vpop.trf.xlu0
    %v2700 = vpop.trf.xlu0
    %v2701 = vpop.trf.xlu0
    %v2702 = vpop.trf.xlu0
    %v2703 = vpop.trf.xlu0
    %v2704 = vpop.trf.xlu0
    %v2705 = vpop.trf.xlu0
    %v2706 = vpop.trf.xlu0
    %v2707 = vpop.trf.xlu0
    %v2708 = vpop.trf.xlu0
    %v2709 = vpop.trf.xlu0
    %v2710 = vpop.trf.xlu0
    %v2711 = vpop.trf.xlu0
    %v2712 = vpop.trf.xlu0
    %2713 = vxpose.xlu0.b32.start [1/16] %v2614, 128
    %2714 = vxpose.xlu0.b32.cont [2/16] 0.0, 128
    %2715 = vxpose.xlu0.b32.cont [3/16] 0.0, 128
    %2716 = vxpose.xlu0.b32.cont [4/16] 0.0, 128
    %2717 = vxpose.xlu0.b32.cont [5/16] 0.0, 128
    %2718 = vxpose.xlu0.b32.cont [6/16] 0.0, 128
    %2719 = vxpose.xlu0.b32.cont [7/16] 0.0, 128
    %2720 = vxpose.xlu0.b32.cont [8/16] 0.0, 128
    %2721 = vxpose.xlu0.b32.cont [9/16] 0.0, 128
    %2722 = vxpose.xlu0.b32.cont [10/16] 0.0, 128
    %2723 = vxpose.xlu0.b32.cont [11/16] 0.0, 128
    %2724 = vxpose.xlu0.b32.cont [12/16] 0.0, 128
    %2725 = vxpose.xlu0.b32.cont [13/16] 0.0, 128
    %2726 = vxpose.xlu0.b32.cont [14/16] 0.0, 128
    %2727 = vxpose.xlu0.b32.cont [15/16] 0.0, 128
    %2728 = vxpose.xlu0.b32.end [16/16] 0.0, 128
    %v2729 = vpop.trf.xlu0
    %v2730 = vpop.trf.xlu0
    %v2731 = vpop.trf.xlu0
    %v2732 = vpop.trf.xlu0
    %v2733 = vpop.trf.xlu0
    %v2734 = vpop.trf.xlu0
    %v2735 = vpop.trf.xlu0
    %v2736 = vpop.trf.xlu0
    %v2737 = vpop.trf.xlu0
    %v2738 = vpop.trf.xlu0
    %v2739 = vpop.trf.xlu0
    %v2740 = vpop.trf.xlu0
    %v2741 = vpop.trf.xlu0
    %v2742 = vpop.trf.xlu0
    %v2743 = vpop.trf.xlu0
    %v2744 = vpop.trf.xlu0
    %v2745 = vcombine.low %v2633, %v2697
    %v2747 = vunpack.c.l.s4 1983009808
    %v2748 = vunpack.c.0.s8 %v2747
    %v2749 = vlaneseq
    %v2750 = vshrl.u32 %v2749, 7
    %v2751 = vsub.s32 %v2748, %v2750
    %v2752 = vrot.slane %v2745, %v2751
    %v2753 = vcombine.low %v2665, %v2729
    %v2755 = vunpack.c.l.s4 1983009808
    %v2756 = vunpack.c.0.s8 %v2755
    %v2757 = vlaneseq
    %v2758 = vshrl.u32 %v2757, 7
    %v2759 = vsub.s32 %v2756, %v2758
    %v2760 = vrot.slane %v2753, %v2759
    %v2761 = vcombine.low %v2752, %v2760
    %v2762 = vcombine.high %v2752, %v2760
    %v2764 = vunpack.c.l.s4 1934713408
    %v2765 = vunpack.c.0.s8 %v2764
    %v2766 = vlaneseq
    %v2767 = vshrl.u32 %v2766, 7
    %v2768 = vsub.s32 %v2765, %v2767
    %v2769 = vrot.slane %v2761, %v2768
    %v2771 = vunpack.c.l.s4 1934713408
    %v2772 = vunpack.c.0.s8 %v2771
    %v2773 = vlaneseq
    %v2774 = vshrl.u32 %v2773, 7
    %v2775 = vsub.s32 %v2772, %v2774
    %v2776 = vrot.slane %v2762, %v2775
    %v2777 = vcombine.high %v2769, 0.0
    %v2778 = vcombine.high %v2776, 0.0
    %v2779 = vcombine.low %v2769, %v2776
    %v2781 = vunpack.c.l.s4 1983009808
    %v2782 = vunpack.c.0.s8 %v2781
    %v2783 = vlaneseq
    %v2784 = vshrl.u32 %v2783, 7
    %v2785 = vsub.s32 %v2782, %v2784
    %v2786 = vrot.slane %v2779, %v2785
    %v2787 = vcombine.low %v2777, %v2778
    %v2789 = vunpack.c.l.s4 1983009808
    %v2790 = vunpack.c.0.s8 %v2789
    %v2791 = vlaneseq
    %v2792 = vshrl.u32 %v2791, 7
    %v2793 = vsub.s32 %v2790, %v2792
    %v2794 = vrot.slane %v2787, %v2793
    %v2795 = vcombine.low %v2786, %v2794
    %v2796 = vcombine.high %v2786, %v2794
    %v2798 = vunpack.c.l.s4 1934713408
    %v2799 = vunpack.c.0.s8 %v2798
    %v2800 = vlaneseq
    %v2801 = vshrl.u32 %v2800, 7
    %v2802 = vsub.s32 %v2799, %v2801
    %v2803 = vrot.slane %v2795, %v2802
    %v2805 = vunpack.c.l.s4 1934713408
    %v2806 = vunpack.c.0.s8 %v2805
    %v2807 = vlaneseq
    %v2808 = vshrl.u32 %v2807, 7
    %v2809 = vsub.s32 %v2806, %v2808
    %v2810 = vrot.slane %v2796, %v2809
    %v2811 = vcombine.high %v2803, 0.0
    %v2812 = vcombine.high %v2810, 0.0
    %2814 = vrot.lane.b32.xlu0 %v2811, 8
    %v2815 = vpop.permute.xlu0 %2814
    %2818 = vrot.lane.b32.xlu0 %v2810, 16
    %v2819 = vpop.permute.xlu0 %2818
    %2822 = vrot.lane.b32.xlu0 %v2812, 24
    %v2823 = vpop.permute.xlu0 %2822
    %v2825 = vsel %vm587, %v2803, %v2815
    %v2826 = vsel %vm1573, %v2825, %v2819
    %v2827 = vsel %vm1575, %v2826, %v2823
    %v2828 = vcombine.low %v2181, %v2183
    %v2830 = vunpack.c.l.s4 1983009808
    %v2831 = vunpack.c.0.s8 %v2830
    %v2832 = vlaneseq
    %v2833 = vshrl.u32 %v2832, 7
    %v2834 = vsub.s32 %v2831, %v2833
    %v2835 = vrot.slane %v2828, %v2834
    %v2836 = vcombine.low %v2182, %v2184
    %v2838 = vunpack.c.l.s4 1983009808
    %v2839 = vunpack.c.0.s8 %v2838
    %v2840 = vlaneseq
    %v2841 = vshrl.u32 %v2840, 7
    %v2842 = vsub.s32 %v2839, %v2841
    %v2843 = vrot.slane %v2836, %v2842
    %v2844 = vcombine.low %v2835, %v2843
    %v2845 = vcombine.high %v2835, %v2843
    %v2847 = vunpack.c.l.s4 1934713408
    %v2848 = vunpack.c.0.s8 %v2847
    %v2849 = vlaneseq
    %v2850 = vshrl.u32 %v2849, 7
    %v2851 = vsub.s32 %v2848, %v2850
    %v2852 = vrot.slane %v2844, %v2851
    %v2854 = vunpack.c.l.s4 1934713408
    %v2855 = vunpack.c.0.s8 %v2854
    %v2856 = vlaneseq
    %v2857 = vshrl.u32 %v2856, 7
    %v2858 = vsub.s32 %v2855, %v2857
    %v2859 = vrot.slane %v2845, %v2858
    %v2860 = vcombine.high %v2852, 0.0
    %v2861 = vcombine.high %v2859, 0.0
    %v2862 = vcombine.low %v2852, %v2859
    %v2864 = vunpack.c.l.s4 1983009808
    %v2865 = vunpack.c.0.s8 %v2864
    %v2866 = vlaneseq
    %v2867 = vshrl.u32 %v2866, 7
    %v2868 = vsub.s32 %v2865, %v2867
    %v2869 = vrot.slane %v2862, %v2868
    %v2870 = vcombine.low %v2860, %v2861
    %v2872 = vunpack.c.l.s4 1983009808
    %v2873 = vunpack.c.0.s8 %v2872
    %v2874 = vlaneseq
    %v2875 = vshrl.u32 %v2874, 7
    %v2876 = vsub.s32 %v2873, %v2875
    %v2877 = vrot.slane %v2870, %v2876
    %v2878 = vcombine.low %v2869, %v2877
    %v2879 = vcombine.high %v2869, %v2877
    %v2881 = vunpack.c.l.s4 1934713408
    %v2882 = vunpack.c.0.s8 %v2881
    %v2883 = vlaneseq
    %v2884 = vshrl.u32 %v2883, 7
    %v2885 = vsub.s32 %v2882, %v2884
    %v2886 = vrot.slane %v2878, %v2885
    %v2888 = vunpack.c.l.s4 1934713408
    %v2889 = vunpack.c.0.s8 %v2888
    %v2890 = vlaneseq
    %v2891 = vshrl.u32 %v2890, 7
    %v2892 = vsub.s32 %v2889, %v2891
    %v2893 = vrot.slane %v2879, %v2892
    %v2894 = vcombine.high %v2886, 0.0
    %v2895 = vcombine.high %v2893, 0.0
    %2897 = vrot.lane.b32.xlu0 %v2894, 4
    %v2898 = vpop.permute.xlu0 %2897
    %2901 = vrot.lane.b32.xlu0 %v2893, 8
    %v2902 = vpop.permute.xlu0 %2901
    %2905 = vrot.lane.b32.xlu0 %v2895, 12
    %v2906 = vpop.permute.xlu0 %2905
    %v2908 = vsel %vm963, %v2886, %v2898
    %v2909 = vsel %vm587, %v2908, %v2902
    %v2910 = vsel %vm1659, %v2909, %v2906
    %v2912 = vrot.slane %v2827, 4
    %vm2914 = vcmask 1043456
    %v2915 = vsel %vm2914, %v1576, %v2912
    %v2917 = vrot.slane %v2910, 4
    %v2919 = vsel %vm2914, %v1660, %v2917
    %2920 = vst.msk [vmem:[#allocation18] sm:$0xff] %vm1573, %v2919
    %v2921 = vld [vmem:[#allocation8] sm:$0xff]
    %v2922 = vld [vmem:[#allocation8 + $0x8] sm:$0xff]
    %v2923 = vld [vmem:[#allocation8 + $0x10] sm:$0xff]
    %v2924 = vld [vmem:[#allocation8 + $0x18] sm:$0xff]
    %v2926 = vsel %vm176, %v2915, 0
    %2928 = vmatprep.subr.mxu0 0.0
    %2929 = vmatpush1.msra.mxu0 %v2921
    %2930 = vmatprep.subr.mxu0 0.0
    %2931 = vmatpush1.msra.mxu0 %v2922
    %2932 = vmatprep.subr.mxu0 0.0
    %2933 = vmatpush1.msra.mxu0 %v2923
    %2934 = vmatprep.subr.mxu0 0.0
    %2935 = vmatpush1.msra.mxu0 %v2924
    %2936 = vmatprep.subr.mxu0 0.0
    %2937 = vmatpush1.msra.mxu0 0.0
    %2938 = vmatprep.subr.mxu0 0.0
    %2939 = vmatpush1.msra.mxu0 0.0
    %2940 = vmatprep.subr.mxu0 0.0
    %2941 = vmatpush1.msra.mxu0 0.0
    %2942 = vmatprep.subr.mxu0 0.0
    %2943 = vmatpush1.msra.mxu0 0.0
    %2944 = vmatprep.subr.mxu0 0.0
    %2945 = vmatpush1.msra.mxu0 0.0
    %2946 = vmatprep.subr.mxu0 0.0
    %2947 = vmatpush1.msra.mxu0 0.0
    %2948 = vmatprep.subr.mxu0 0.0
    %2949 = vmatpush1.msra.mxu0 0.0
    %2950 = vmatprep.subr.mxu0 0.0
    %2951 = vmatpush1.msra.mxu0 0.0
    %2952 = vmatprep.subr.mxu0 0.0
    %2953 = vmatpush1.msra.mxu0 0.0
    %2954 = vmatprep.subr.mxu0 0.0
    %2955 = vmatpush1.msra.mxu0 0.0
    %2956 = vmatprep.subr.mxu0 0.0
    %2957 = vmatpush1.msra.mxu0 0.0
    %2958 = vmatprep.subr.mxu0 0.0
    %2959 = vmatpush1.msra.mxu0 0.0
    %2960 = vmatprep.subr.mxu0 0.0
    %2961 = vmatpush1.msra.mxu0 0.0
    %2962 = vmatprep.subr.mxu0 0.0
    %2963 = vmatpush1.msra.mxu0 0.0
    %2964 = vmatprep.subr.mxu0 0.0
    %2965 = vmatpush1.msra.mxu0 0.0
    %2966 = vmatprep.subr.mxu0 0.0
    %2967 = vmatpush1.msra.mxu0 0.0
    %2968 = vmatprep.subr.mxu0 0.0
    %2969 = vmatpush1.msra.mxu0 0.0
    %2970 = vmatprep.subr.mxu0 0.0
    %2971 = vmatpush1.msra.mxu0 0.0
    %2972 = vmatprep.subr.mxu0 0.0
    %2973 = vmatpush1.msra.mxu0 0.0
    %2974 = vmatprep.subr.mxu0 0.0
    %2975 = vmatpush1.msra.mxu0 0.0
    %2976 = vmatprep.subr.mxu0 0.0
    %2977 = vmatpush1.msra.mxu0 0.0
    %2978 = vmatprep.subr.mxu0 0.0
    %2979 = vmatpush1.msra.mxu0 0.0
    %2980 = vmatprep.subr.mxu0 0.0
    %2981 = vmatpush1.msra.mxu0 0.0
    %2982 = vmatprep.subr.mxu0 0.0
    %2983 = vmatpush1.msra.mxu0 0.0
    %2984 = vmatprep.subr.mxu0 0.0
    %2985 = vmatpush1.msra.mxu0 0.0
    %2986 = vmatprep.subr.mxu0 0.0
    %2987 = vmatpush1.msra.mxu0 0.0
    %2988 = vmatprep.subr.mxu0 0.0
    %2989 = vmatpush1.msra.mxu0 0.0
    %2990 = vmatprep.subr.mxu0 0.0
    %2991 = vmatpush1.msra.mxu0 0.0
    %2992 = vmatprep.mubr.f32.mxu0 0.0
    %2993 = vmatmul.mubr.f32.gmra.mrb[0].mxu0 %v2926
    %v2994 = vpop.f32.mrb[0].mxu0
    %v2995 = vadd.f32 %v170, %v2994
    %v2996 = vpop.f32.mrb[0].mxu0
    %2997 = vdwg.mxu0
    %v2998 = vsel %vm176, %v2995, 0.0
    %2999 = vadd.xlane.f32.xlu0 %v2998
    %v3000 = vpop.xlane.xlu0 %2999
    %v3001 = vrcp.pop 32.0
    %v3002 = vmul.f32 %v3000, %v3001
    %v3003 = vsub.f32 %v2995, %v3002
    %v3004 = vmul.f32 %v3003, %v3003
    %v3005 = vsel %vm176, %v3004, 0.0
    %3006 = vadd.xlane.f32.xlu0 %v3005
    %v3007 = vpop.xlane.xlu0 %3006
    %v3008 = vmul.f32 %v3007, %v3001
    %v3009 = vadd.f32 %v3008, 1e-05
    %v3010 = vrsqrt.pop %v3009
    %v3011 = vmul.f32 %v3009, %v3010
    %vm3012 = vcmp.eq.f32.partialorder %v3009, inf
    %v3013 = vsel %vm3012, %v3009, %v3011
    %vm3014 = vcmp.eq.f32.partialorder %v3009, 0.0
    %v3015 = vand.u32 %v3009, 2147483648
    %v3016 = vsel %vm3014, %v3015, %v3013
    %v3017 = vrcp.pop %v3016
    %v3018 = vmul.f32 %v3003, %v3017
    %v3019 = vld [vmem:[#allocation10] sm:$0xff]
    %v3020 = vld [vmem:[#allocation10 + $0x8] sm:$0xff]
    %v3021 = vld [vmem:[#allocation10 + $0x10] sm:$0xff]
    %v3022 = vld [vmem:[#allocation10 + $0x18] sm:$0xff]
    %v3024 = vsel %vm176, %v3018, 0
    %3026 = vmatprep.subr.mxu0 0.0
    %3027 = vmatpush1.msra.mxu0 %v3019
    %3028 = vmatprep.subr.mxu0 0.0
    %3029 = vmatpush1.msra.mxu0 %v3020
    %3030 = vmatprep.subr.mxu0 0.0
    %3031 = vmatpush1.msra.mxu0 %v3021
    %3032 = vmatprep.subr.mxu0 0.0
    %3033 = vmatpush1.msra.mxu0 %v3022
    %3034 = vmatprep.subr.mxu0 0.0
    %3035 = vmatpush1.msra.mxu0 0.0
    %3036 = vmatprep.subr.mxu0 0.0
    %3037 = vmatpush1.msra.mxu0 0.0
    %3038 = vmatprep.subr.mxu0 0.0
    %3039 = vmatpush1.msra.mxu0 0.0
    %3040 = vmatprep.subr.mxu0 0.0
    %3041 = vmatpush1.msra.mxu0 0.0
    %3042 = vmatprep.subr.mxu0 0.0
    %3043 = vmatpush1.msra.mxu0 0.0
    %3044 = vmatprep.subr.mxu0 0.0
    %3045 = vmatpush1.msra.mxu0 0.0
    %3046 = vmatprep.subr.mxu0 0.0
    %3047 = vmatpush1.msra.mxu0 0.0
    %3048 = vmatprep.subr.mxu0 0.0
    %3049 = vmatpush1.msra.mxu0 0.0
    %3050 = vmatprep.subr.mxu0 0.0
    %3051 = vmatpush1.msra.mxu0 0.0
    %3052 = vmatprep.subr.mxu0 0.0
    %3053 = vmatpush1.msra.mxu0 0.0
    %3054 = vmatprep.subr.mxu0 0.0
    %3055 = vmatpush1.msra.mxu0 0.0
    %3056 = vmatprep.subr.mxu0 0.0
    %3057 = vmatpush1.msra.mxu0 0.0
    %3058 = vmatprep.subr.mxu0 0.0
    %3059 = vmatpush1.msra.mxu0 0.0
    %3060 = vmatprep.subr.mxu0 0.0
    %3061 = vmatpush1.msra.mxu0 0.0
    %3062 = vmatprep.subr.mxu0 0.0
    %3063 = vmatpush1.msra.mxu0 0.0
    %3064 = vmatprep.subr.mxu0 0.0
    %3065 = vmatpush1.msra.mxu0 0.0
    %3066 = vmatprep.subr.mxu0 0.0
    %3067 = vmatpush1.msra.mxu0 0.0
    %3068 = vmatprep.subr.mxu0 0.0
    %3069 = vmatpush1.msra.mxu0 0.0
    %3070 = vmatprep.subr.mxu0 0.0
    %3071 = vmatpush1.msra.mxu0 0.0
    %3072 = vmatprep.subr.mxu0 0.0
    %3073 = vmatpush1.msra.mxu0 0.0
    %3074 = vmatprep.subr.mxu0 0.0
    %3075 = vmatpush1.msra.mxu0 0.0
    %3076 = vmatprep.subr.mxu0 0.0
    %3077 = vmatpush1.msra.mxu0 0.0
    %3078 = vmatprep.subr.mxu0 0.0
    %3079 = vmatpush1.msra.mxu0 0.0
    %3080 = vmatprep.subr.mxu0 0.0
    %3081 = vmatpush1.msra.mxu0 0.0
    %3082 = vmatprep.subr.mxu0 0.0
    %3083 = vmatpush1.msra.mxu0 0.0
    %3084 = vmatprep.subr.mxu0 0.0
    %3085 = vmatpush1.msra.mxu0 0.0
    %3086 = vmatprep.subr.mxu0 0.0
    %3087 = vmatpush1.msra.mxu0 0.0
    %3088 = vmatprep.subr.mxu0 0.0
    %3089 = vmatpush1.msra.mxu0 0.0
    %3090 = vmatprep.mubr.f32.mxu0 0.0
    %3091 = vmatmul.mubr.f32.gmra.mrb[0].mxu0 %v3024
    %v3092 = vpop.f32.mrb[0].mxu0
    %v3093 = vadd.f32 0.0, %v3092
    %v3094 = vpop.f32.mrb[0].mxu0
    %3095 = vdwg.mxu0
    %v3096 = vld [vmem:[#allocation11] sm:$0xff]
    %v3097 = vld [vmem:[#allocation11 + $0x8] sm:$0xff]
    %v3098 = vld [vmem:[#allocation11 + $0x10] sm:$0xff]
    %v3099 = vld [vmem:[#allocation11 + $0x18] sm:$0xff]
    %v3101 = vsel %vm176, %v171, 0
    %3103 = vmatprep.subr.mxu0 0.0
    %3104 = vmatpush1.msra.mxu0 %v3096
    %3105 = vmatprep.subr.mxu0 0.0
    %3106 = vmatpush1.msra.mxu0 %v3097
    %3107 = vmatprep.subr.mxu0 0.0
    %3108 = vmatpush1.msra.mxu0 %v3098
    %3109 = vmatprep.subr.mxu0 0.0
    %3110 = vmatpush1.msra.mxu0 %v3099
    %3111 = vmatprep.subr.mxu0 0.0
    %3112 = vmatpush1.msra.mxu0 0.0
    %3113 = vmatprep.subr.mxu0 0.0
    %3114 = vmatpush1.msra.mxu0 0.0
    %3115 = vmatprep.subr.mxu0 0.0
    %3116 = vmatpush1.msra.mxu0 0.0
    %3117 = vmatprep.subr.mxu0 0.0
    %3118 = vmatpush1.msra.mxu0 0.0
    %3119 = vmatprep.subr.mxu0 0.0
    %3120 = vmatpush1.msra.mxu0 0.0
    %3121 = vmatprep.subr.mxu0 0.0
    %3122 = vmatpush1.msra.mxu0 0.0
    %3123 = vmatprep.subr.mxu0 0.0
    %3124 = vmatpush1.msra.mxu0 0.0
    %3125 = vmatprep.subr.mxu0 0.0
    %3126 = vmatpush1.msra.mxu0 0.0
    %3127 = vmatprep.subr.mxu0 0.0
    %3128 = vmatpush1.msra.mxu0 0.0
    %3129 = vmatprep.subr.mxu0 0.0
    %3130 = vmatpush1.msra.mxu0 0.0
    %3131 = vmatprep.subr.mxu0 0.0
    %3132 = vmatpush1.msra.mxu0 0.0
    %3133 = vmatprep.subr.mxu0 0.0
    %3134 = vmatpush1.msra.mxu0 0.0
    %3135 = vmatprep.subr.mxu0 0.0
    %3136 = vmatpush1.msra.mxu0 0.0
    %3137 = vmatprep.subr.mxu0 0.0
    %3138 = vmatpush1.msra.mxu0 0.0
    %3139 = vmatprep.subr.mxu0 0.0
    %3140 = vmatpush1.msra.mxu0 0.0
    %3141 = vmatprep.subr.mxu0 0.0
    %3142 = vmatpush1.msra.mxu0 0.0
    %3143 = vmatprep.subr.mxu0 0.0
    %3144 = vmatpush1.msra.mxu0 0.0
    %3145 = vmatprep.subr.mxu0 0.0
    %3146 = vmatpush1.msra.mxu0 0.0
    %3147 = vmatprep.subr.mxu0 0.0
    %3148 = vmatpush1.msra.mxu0 0.0
    %3149 = vmatprep.subr.mxu0 0.0
    %3150 = vmatpush1.msra.mxu0 0.0
    %3151 = vmatprep.subr.mxu0 0.0
    %3152 = vmatpush1.msra.mxu0 0.0
    %3153 = vmatprep.subr.mxu0 0.0
    %3154 = vmatpush1.msra.mxu0 0.0
    %3155 = vmatprep.subr.mxu0 0.0
    %3156 = vmatpush1.msra.mxu0 0.0
    %3157 = vmatprep.subr.mxu0 0.0
    %3158 = vmatpush1.msra.mxu0 0.0
    %3159 = vmatprep.subr.mxu0 0.0
    %3160 = vmatpush1.msra.mxu0 0.0
    %3161 = vmatprep.subr.mxu0 0.0
    %3162 = vmatpush1.msra.mxu0 0.0
    %3163 = vmatprep.subr.mxu0 0.0
    %3164 = vmatpush1.msra.mxu0 0.0
    %3165 = vmatprep.subr.mxu0 0.0
    %3166 = vmatpush1.msra.mxu0 0.0
    %3167 = vmatprep.mubr.f32.mxu0 0.0
    %3168 = vmatmul.mubr.f32.gmra.mrb[0].mxu0 %v3101
    %v3169 = vpop.f32.mrb[0].mxu0
    %v3170 = vadd.f32 0.0, %v3169
    %v3171 = vpop.f32.mrb[0].mxu0
    %3172 = vdwg.mxu0
    %v3173 = vld [vmem:[#allocation13] sm:$0xff]
    %v3174 = vld [vmem:[#allocation13 + $0x8] sm:$0xff]
    %v3175 = vld [vmem:[#allocation13 + $0x10] sm:$0xff]
    %v3176 = vld [vmem:[#allocation13 + $0x18] sm:$0xff]
    %3177 = vmatprep.subr.mxu0 0.0
    %3178 = vmatpush1.msra.mxu0 %v3173
    %3179 = vmatprep.subr.mxu0 0.0
    %3180 = vmatpush1.msra.mxu0 %v3174
    %3181 = vmatprep.subr.mxu0 0.0
    %3182 = vmatpush1.msra.mxu0 %v3175
    %3183 = vmatprep.subr.mxu0 0.0
    %3184 = vmatpush1.msra.mxu0 %v3176
    %3185 = vmatprep.subr.mxu0 0.0
    %3186 = vmatpush1.msra.mxu0 0.0
    %3187 = vmatprep.subr.mxu0 0.0
    %3188 = vmatpush1.msra.mxu0 0.0
    %3189 = vmatprep.subr.mxu0 0.0
    %3190 = vmatpush1.msra.mxu0 0.0
    %3191 = vmatprep.subr.mxu0 0.0
    %3192 = vmatpush1.msra.mxu0 0.0
    %3193 = vmatprep.subr.mxu0 0.0
    %3194 = vmatpush1.msra.mxu0 0.0
    %3195 = vmatprep.subr.mxu0 0.0
    %3196 = vmatpush1.msra.mxu0 0.0
    %3197 = vmatprep.subr.mxu0 0.0
    %3198 = vmatpush1.msra.mxu0 0.0
    %3199 = vmatprep.subr.mxu0 0.0
    %3200 = vmatpush1.msra.mxu0 0.0
    %3201 = vmatprep.subr.mxu0 0.0
    %3202 = vmatpush1.msra.mxu0 0.0
    %3203 = vmatprep.subr.mxu0 0.0
    %3204 = vmatpush1.msra.mxu0 0.0
    %3205 = vmatprep.subr.mxu0 0.0
    %3206 = vmatpush1.msra.mxu0 0.0
    %3207 = vmatprep.subr.mxu0 0.0
    %3208 = vmatpush1.msra.mxu0 0.0
    %3209 = vmatprep.subr.mxu0 0.0
    %3210 = vmatpush1.msra.mxu0 0.0
    %3211 = vmatprep.subr.mxu0 0.0
    %3212 = vmatpush1.msra.mxu0 0.0
    %3213 = vmatprep.subr.mxu0 0.0
    %3214 = vmatpush1.msra.mxu0 0.0
    %3215 = vmatprep.subr.mxu0 0.0
    %3216 = vmatpush1.msra.mxu0 0.0
    %3217 = vmatprep.subr.mxu0 0.0
    %3218 = vmatpush1.msra.mxu0 0.0
    %3219 = vmatprep.subr.mxu0 0.0
    %3220 = vmatpush1.msra.mxu0 0.0
    %3221 = vmatprep.subr.mxu0 0.0
    %3222 = vmatpush1.msra.mxu0 0.0
    %3223 = vmatprep.subr.mxu0 0.0
    %3224 = vmatpush1.msra.mxu0 0.0
    %3225 = vmatprep.subr.mxu0 0.0
    %3226 = vmatpush1.msra.mxu0 0.0
    %3227 = vmatprep.subr.mxu0 0.0
    %3228 = vmatpush1.msra.mxu0 0.0
    %3229 = vmatprep.subr.mxu0 0.0
    %3230 = vmatpush1.msra.mxu0 0.0
    %3231 = vmatprep.subr.mxu0 0.0
    %3232 = vmatpush1.msra.mxu0 0.0
    %3233 = vmatprep.subr.mxu0 0.0
    %3234 = vmatpush1.msra.mxu0 0.0
    %3235 = vmatprep.subr.mxu0 0.0
    %3236 = vmatpush1.msra.mxu0 0.0
    %3237 = vmatprep.subr.mxu0 0.0
    %3238 = vmatpush1.msra.mxu0 0.0
    %3239 = vmatprep.subr.mxu0 0.0
    %3240 = vmatpush1.msra.mxu0 0.0
    %3241 = vmatprep.mubr.f32.mxu0 0.0
    %3242 = vmatmul.mubr.f32.gmra.mrb[0].mxu0 %v3101
    %v3243 = vpop.f32.mrb[0].mxu0
    %v3244 = vadd.f32 0.0, %v3243
    %v3245 = vpop.f32.mrb[0].mxu0
    %3246 = vdwg.mxu0
    %3248 = vrot.lane.b32.xlu0 %v3093, 120
    %v3249 = vpop.permute.xlu0 %3248
    %3250 = vrot.lane.b32.xlu0 %v3093, 112
    %v3251 = vpop.permute.xlu0 %3250
    %3252 = vrot.lane.b32.xlu0 %v3093, 104
    %v3253 = vpop.permute.xlu0 %3252
    %3255 = vrot.lane.b32.xlu0 %v3170, 120
    %v3256 = vpop.permute.xlu0 %3255
    %3258 = vrot.lane.b32.xlu0 %v3170, 112
    %v3259 = vpop.permute.xlu0 %3258
    %3261 = vrot.lane.b32.xlu0 %v3170, 104
    %v3262 = vpop.permute.xlu0 %3261
    %3265 = vrot.lane.b32.xlu0 %v3244, 120
    %v3266 = vpop.permute.xlu0 %3265
    %3268 = vrot.lane.b32.xlu0 %v3244, 112
    %v3269 = vpop.permute.xlu0 %3268
    %3271 = vrot.lane.b32.xlu0 %v3244, 104
    %v3272 = vpop.permute.xlu0 %3271
    %v3274 = vcombine.low %v3244, %v3269
    %v3276 = vunpack.c.l.s4 1983009808
    %v3277 = vunpack.c.0.s8 %v3276
    %v3278 = vlaneseq
    %v3279 = vshrl.u32 %v3278, 7
    %v3280 = vsub.s32 %v3277, %v3279
    %v3281 = vrot.slane %v3274, %v3280
    %v3282 = vcombine.low %v3266, %v3272
    %v3284 = vunpack.c.l.s4 1983009808
    %v3285 = vunpack.c.0.s8 %v3284
    %v3286 = vlaneseq
    %v3287 = vshrl.u32 %v3286, 7
    %v3288 = vsub.s32 %v3285, %v3287
    %v3289 = vrot.slane %v3282, %v3288
    %v3290 = vcombine.low %v3281, %v3289
    %v3291 = vcombine.high %v3281, %v3289
    %v3293 = vunpack.c.l.s4 1934713408
    %v3294 = vunpack.c.0.s8 %v3293
    %v3295 = vlaneseq
    %v3296 = vshrl.u32 %v3295, 7
    %v3297 = vsub.s32 %v3294, %v3296
    %v3298 = vrot.slane %v3290, %v3297
    %v3300 = vunpack.c.l.s4 1934713408
    %v3301 = vunpack.c.0.s8 %v3300
    %v3302 = vlaneseq
    %v3303 = vshrl.u32 %v3302, 7
    %v3304 = vsub.s32 %v3301, %v3303
    %v3305 = vrot.slane %v3291, %v3304
    %v3306 = vcombine.high %v3298, 0.0
    %v3307 = vcombine.high %v3305, 0.0
    %3308 = vxpose.xlu0.b32.start [1/16] %v3170, 128
    %3309 = vxpose.xlu0.b32.cont [2/16] 0.0, 128
    %3310 = vxpose.xlu0.b32.cont [3/16] 0.0, 128
    %3311 = vxpose.xlu0.b32.cont [4/16] 0.0, 128
    %3312 = vxpose.xlu0.b32.cont [5/16] 0.0, 128
    %3313 = vxpose.xlu0.b32.cont [6/16] 0.0, 128
    %3314 = vxpose.xlu0.b32.cont [7/16] 0.0, 128
    %3315 = vxpose.xlu0.b32.cont [8/16] 0.0, 128
    %3316 = vxpose.xlu0.b32.cont [9/16] 0.0, 128
    %3317 = vxpose.xlu0.b32.cont [10/16] 0.0, 128
    %3318 = vxpose.xlu0.b32.cont [11/16] 0.0, 128
    %3319 = vxpose.xlu0.b32.cont [12/16] 0.0, 128
    %3320 = vxpose.xlu0.b32.cont [13/16] 0.0, 128
    %3321 = vxpose.xlu0.b32.cont [14/16] 0.0, 128
    %3322 = vxpose.xlu0.b32.cont [15/16] 0.0, 128
    %3323 = vxpose.xlu0.b32.end [16/16] 0.0, 128
    %v3324 = vpop.trf.xlu0
    %v3325 = vpop.trf.xlu0
    %v3326 = vpop.trf.xlu0
    %v3327 = vpop.trf.xlu0
    %v3328 = vpop.trf.xlu0
    %v3329 = vpop.trf.xlu0
    %v3330 = vpop.trf.xlu0
    %v3331 = vpop.trf.xlu0
    %v3332 = vpop.trf.xlu0
    %v3333 = vpop.trf.xlu0
    %v3334 = vpop.trf.xlu0
    %v3335 = vpop.trf.xlu0
    %v3336 = vpop.trf.xlu0
    %v3337 = vpop.trf.xlu0
    %v3338 = vpop.trf.xlu0
    %v3339 = vpop.trf.xlu0
    %3340 = vxpose.xlu0.b32.start [1/16] %v3256, 128
    %3341 = vxpose.xlu0.b32.cont [2/16] 0.0, 128
    %3342 = vxpose.xlu0.b32.cont [3/16] 0.0, 128
    %3343 = vxpose.xlu0.b32.cont [4/16] 0.0, 128
    %3344 = vxpose.xlu0.b32.cont [5/16] 0.0, 128
    %3345 = vxpose.xlu0.b32.cont [6/16] 0.0, 128
    %3346 = vxpose.xlu0.b32.cont [7/16] 0.0, 128
    %3347 = vxpose.xlu0.b32.cont [8/16] 0.0, 128
    %3348 = vxpose.xlu0.b32.cont [9/16] 0.0, 128
    %3349 = vxpose.xlu0.b32.cont [10/16] 0.0, 128
    %3350 = vxpose.xlu0.b32.cont [11/16] 0.0, 128
    %3351 = vxpose.xlu0.b32.cont [12/16] 0.0, 128
    %3352 = vxpose.xlu0.b32.cont [13/16] 0.0, 128
    %3353 = vxpose.xlu0.b32.cont [14/16] 0.0, 128
    %3354 = vxpose.xlu0.b32.cont [15/16] 0.0, 128
    %3355 = vxpose.xlu0.b32.end [16/16] 0.0, 128
    %v3356 = vpop.trf.xlu0
    %v3357 = vpop.trf.xlu0
    %v3358 = vpop.trf.xlu0
    %v3359 = vpop.trf.xlu0
    %v3360 = vpop.trf.xlu0
    %v3361 = vpop.trf.xlu0
    %v3362 = vpop.trf.xlu0
    %v3363 = vpop.trf.xlu0
    %v3364 = vpop.trf.xlu0
    %v3365 = vpop.trf.xlu0
    %v3366 = vpop.trf.xlu0
    %v3367 = vpop.trf.xlu0
    %v3368 = vpop.trf.xlu0
    %v3369 = vpop.trf.xlu0
    %v3370 = vpop.trf.xlu0
    %v3371 = vpop.trf.xlu0
    %3372 = vxpose.xlu0.b32.start [1/16] %v3259, 128
    %3373 = vxpose.xlu0.b32.cont [2/16] 0.0, 128
    %3374 = vxpose.xlu0.b32.cont [3/16] 0.0, 128
    %3375 = vxpose.xlu0.b32.cont [4/16] 0.0, 128
    %3376 = vxpose.xlu0.b32.cont [5/16] 0.0, 128
    %3377 = vxpose.xlu0.b32.cont [6/16] 0.0, 128
    %3378 = vxpose.xlu0.b32.cont [7/16] 0.0, 128
    %3379 = vxpose.xlu0.b32.cont [8/16] 0.0, 128
    %3380 = vxpose.xlu0.b32.cont [9/16] 0.0, 128
    %3381 = vxpose.xlu0.b32.cont [10/16] 0.0, 128
    %3382 = vxpose.xlu0.b32.cont [11/16] 0.0, 128
    %3383 = vxpose.xlu0.b32.cont [12/16] 0.0, 128
    %3384 = vxpose.xlu0.b32.cont [13/16] 0.0, 128
    %3385 = vxpose.xlu0.b32.cont [14/16] 0.0, 128
    %3386 = vxpose.xlu0.b32.cont [15/16] 0.0, 128
    %3387 = vxpose.xlu0.b32.end [16/16] 0.0, 128
    %v3388 = vpop.trf.xlu0
    %v3389 = vpop.trf.xlu0
    %v3390 = vpop.trf.xlu0
    %v3391 = vpop.trf.xlu0
    %v3392 = vpop.trf.xlu0
    %v3393 = vpop.trf.xlu0
    %v3394 = vpop.trf.xlu0
    %v3395 = vpop.trf.xlu0
    %v3396 = vpop.trf.xlu0
    %v3397 = vpop.trf.xlu0
    %v3398 = vpop.trf.xlu0
    %v3399 = vpop.trf.xlu0
    %v3400 = vpop.trf.xlu0
    %v3401 = vpop.trf.xlu0
    %v3402 = vpop.trf.xlu0
    %v3403 = vpop.trf.xlu0
    %3404 = vxpose.xlu0.b32.start [1/16] %v3262, 128
    %3405 = vxpose.xlu0.b32.cont [2/16] 0.0, 128
    %3406 = vxpose.xlu0.b32.cont [3/16] 0.0, 128
    %3407 = vxpose.xlu0.b32.cont [4/16] 0.0, 128
    %3408 = vxpose.xlu0.b32.cont [5/16] 0.0, 128
    %3409 = vxpose.xlu0.b32.cont [6/16] 0.0, 128
    %3410 = vxpose.xlu0.b32.cont [7/16] 0.0, 128
    %3411 = vxpose.xlu0.b32.cont [8/16] 0.0, 128
    %3412 = vxpose.xlu0.b32.cont [9/16] 0.0, 128
    %3413 = vxpose.xlu0.b32.cont [10/16] 0.0, 128
    %3414 = vxpose.xlu0.b32.cont [11/16] 0.0, 128
    %3415 = vxpose.xlu0.b32.cont [12/16] 0.0, 128
    %3416 = vxpose.xlu0.b32.cont [13/16] 0.0, 128
    %3417 = vxpose.xlu0.b32.cont [14/16] 0.0, 128
    %3418 = vxpose.xlu0.b32.cont [15/16] 0.0, 128
    %3419 = vxpose.xlu0.b32.end [16/16] 0.0, 128
    %v3420 = vpop.trf.xlu0
    %v3421 = vpop.trf.xlu0
    %v3422 = vpop.trf.xlu0
    %v3423 = vpop.trf.xlu0
    %v3424 = vpop.trf.xlu0
    %v3425 = vpop.trf.xlu0
    %v3426 = vpop.trf.xlu0
    %v3427 = vpop.trf.xlu0
    %v3428 = vpop.trf.xlu0
    %v3429 = vpop.trf.xlu0
    %v3430 = vpop.trf.xlu0
    %v3431 = vpop.trf.xlu0
    %v3432 = vpop.trf.xlu0
    %v3433 = vpop.trf.xlu0
    %v3434 = vpop.trf.xlu0
    %v3435 = vpop.trf.xlu0
    %v3436 = vsel %vm587, %v3093, 0
    %3438 = vmatprep.subr.mxu0 0.0
    %3439 = vmatpush1.msra.mxu0 %v3324
    %3440 = vmatprep.subr.mxu0 0.0
    %3441 = vmatpush1.msra.mxu0 0.0
    %3442 = vmatprep.subr.mxu0 0.0
    %3443 = vmatpush1.msra.mxu0 0.0
    %3444 = vmatprep.subr.mxu0 0.0
    %3445 = vmatpush1.msra.mxu0 0.0
    %3446 = vmatprep.subr.mxu0 0.0
    %3447 = vmatpush1.msra.mxu0 0.0
    %3448 = vmatprep.subr.mxu0 0.0
    %3449 = vmatpush1.msra.mxu0 0.0
    %3450 = vmatprep.subr.mxu0 0.0
    %3451 = vmatpush1.msra.mxu0 0.0
    %3452 = vmatprep.subr.mxu0 0.0
    %3453 = vmatpush1.msra.mxu0 0.0
    %3454 = vmatprep.subr.mxu0 0.0
    %3455 = vmatpush1.msra.mxu0 0.0
    %3456 = vmatprep.subr.mxu0 0.0
    %3457 = vmatpush1.msra.mxu0 0.0
    %3458 = vmatprep.subr.mxu0 0.0
    %3459 = vmatpush1.msra.mxu0 0.0
    %3460 = vmatprep.subr.mxu0 0.0
    %3461 = vmatpush1.msra.mxu0 0.0
    %3462 = vmatprep.subr.mxu0 0.0
    %3463 = vmatpush1.msra.mxu0 0.0
    %3464 = vmatprep.subr.mxu0 0.0
    %3465 = vmatpush1.msra.mxu0 0.0
    %3466 = vmatprep.subr.mxu0 0.0
    %3467 = vmatpush1.msra.mxu0 0.0
    %3468 = vmatprep.subr.mxu0 0.0
    %3469 = vmatpush1.msra.mxu0 0.0
    %3470 = vmatprep.subr.mxu0 0.0
    %3471 = vmatpush1.msra.mxu0 0.0
    %3472 = vmatprep.subr.mxu0 0.0
    %3473 = vmatpush1.msra.mxu0 0.0
    %3474 = vmatprep.subr.mxu0 0.0
    %3475 = vmatpush1.msra.mxu0 0.0
    %3476 = vmatprep.subr.mxu0 0.0
    %3477 = vmatpush1.msra.mxu0 0.0
    %3478 = vmatprep.subr.mxu0 0.0
    %3479 = vmatpush1.msra.mxu0 0.0
    %3480 = vmatprep.subr.mxu0 0.0
    %3481 = vmatpush1.msra.mxu0 0.0
    %3482 = vmatprep.subr.mxu0 0.0
    %3483 = vmatpush1.msra.mxu0 0.0
    %3484 = vmatprep.subr.mxu0 0.0
    %3485 = vmatpush1.msra.mxu0 0.0
    %3486 = vmatprep.subr.mxu0 0.0
    %3487 = vmatpush1.msra.mxu0 0.0
    %3488 = vmatprep.subr.mxu0 0.0
    %3489 = vmatpush1.msra.mxu0 0.0
    %3490 = vmatprep.subr.mxu0 0.0
    %3491 = vmatpush1.msra.mxu0 0.0
    %3492 = vmatprep.subr.mxu0 0.0
    %3493 = vmatpush1.msra.mxu0 0.0
    %3494 = vmatprep.subr.mxu0 0.0
    %3495 = vmatpush1.msra.mxu0 0.0
    %3496 = vmatprep.subr.mxu0 0.0
    %3497 = vmatpush1.msra.mxu0 0.0
    %3498 = vmatprep.subr.mxu0 0.0
    %3499 = vmatpush1.msra.mxu0 0.0
    %3500 = vmatprep.subr.mxu0 0.0
    %3501 = vmatpush1.msra.mxu0 0.0
    %3502 = vmatprep.mubr.f32.mxu0 0.0
    %3503 = vmatmul.mubr.f32.gmra.mrb[0].mxu0 %v3436
    %v3504 = vpop.f32.mrb[0].mxu0
    %v3505 = vadd.f32 0.0, %v3504
    %v3506 = vpop.f32.mrb[0].mxu0
    %3507 = vdwg.mxu0
    %v3508 = vsel %vm587, %v3249, 0
    %3510 = vmatprep.subr.mxu0 0.0
    %3511 = vmatpush1.msra.mxu0 %v3356
    %3512 = vmatprep.subr.mxu0 0.0
    %3513 = vmatpush1.msra.mxu0 0.0
    %3514 = vmatprep.subr.mxu0 0.0
    %3515 = vmatpush1.msra.mxu0 0.0
    %3516 = vmatprep.subr.mxu0 0.0
    %3517 = vmatpush1.msra.mxu0 0.0
    %3518 = vmatprep.subr.mxu0 0.0
    %3519 = vmatpush1.msra.mxu0 0.0
    %3520 = vmatprep.subr.mxu0 0.0
    %3521 = vmatpush1.msra.mxu0 0.0
    %3522 = vmatprep.subr.mxu0 0.0
    %3523 = vmatpush1.msra.mxu0 0.0
    %3524 = vmatprep.subr.mxu0 0.0
    %3525 = vmatpush1.msra.mxu0 0.0
    %3526 = vmatprep.subr.mxu0 0.0
    %3527 = vmatpush1.msra.mxu0 0.0
    %3528 = vmatprep.subr.mxu0 0.0
    %3529 = vmatpush1.msra.mxu0 0.0
    %3530 = vmatprep.subr.mxu0 0.0
    %3531 = vmatpush1.msra.mxu0 0.0
    %3532 = vmatprep.subr.mxu0 0.0
    %3533 = vmatpush1.msra.mxu0 0.0
    %3534 = vmatprep.subr.mxu0 0.0
    %3535 = vmatpush1.msra.mxu0 0.0
    %3536 = vmatprep.subr.mxu0 0.0
    %3537 = vmatpush1.msra.mxu0 0.0
    %3538 = vmatprep.subr.mxu0 0.0
    %3539 = vmatpush1.msra.mxu0 0.0
    %3540 = vmatprep.subr.mxu0 0.0
    %3541 = vmatpush1.msra.mxu0 0.0
    %3542 = vmatprep.subr.mxu0 0.0
    %3543 = vmatpush1.msra.mxu0 0.0
    %3544 = vmatprep.subr.mxu0 0.0
    %3545 = vmatpush1.msra.mxu0 0.0
    %3546 = vmatprep.subr.mxu0 0.0
    %3547 = vmatpush1.msra.mxu0 0.0
    %3548 = vmatprep.subr.mxu0 0.0
    %3549 = vmatpush1.msra.mxu0 0.0
    %3550 = vmatprep.subr.mxu0 0.0
    %3551 = vmatpush1.msra.mxu0 0.0
    %3552 = vmatprep.subr.mxu0 0.0
    %3553 = vmatpush1.msra.mxu0 0.0
    %3554 = vmatprep.subr.mxu0 0.0
    %3555 = vmatpush1.msra.mxu0 0.0
    %3556 = vmatprep.subr.mxu0 0.0
    %3557 = vmatpush1.msra.mxu0 0.0
    %3558 = vmatprep.subr.mxu0 0.0
    %3559 = vmatpush1.msra.mxu0 0.0
    %3560 = vmatprep.subr.mxu0 0.0
    %3561 = vmatpush1.msra.mxu0 0.0
    %3562 = vmatprep.subr.mxu0 0.0
    %3563 = vmatpush1.msra.mxu0 0.0
    %3564 = vmatprep.subr.mxu0 0.0
    %3565 = vmatpush1.msra.mxu0 0.0
    %3566 = vmatprep.subr.mxu0 0.0
    %3567 = vmatpush1.msra.mxu0 0.0
    %3568 = vmatprep.subr.mxu0 0.0
    %3569 = vmatpush1.msra.mxu0 0.0
    %3570 = vmatprep.subr.mxu0 0.0
    %3571 = vmatpush1.msra.mxu0 0.0
    %3572 = vmatprep.subr.mxu0 0.0
    %3573 = vmatpush1.msra.mxu0 0.0
    %3574 = vmatprep.mubr.f32.mxu0 0.0
    %3575 = vmatmul.mubr.f32.gmra.mrb[0].mxu0 %v3508
    %v3576 = vpop.f32.mrb[0].mxu0
    %v3577 = vadd.f32 0.0, %v3576
    %v3578 = vpop.f32.mrb[0].mxu0
    %3579 = vdwg.mxu0
    %v3580 = vsel %vm587, %v3251, 0
    %3582 = vmatprep.subr.mxu0 0.0
    %3583 = vmatpush1.msra.mxu0 %v3388
    %3584 = vmatprep.subr.mxu0 0.0
    %3585 = vmatpush1.msra.mxu0 0.0
    %3586 = vmatprep.subr.mxu0 0.0
    %3587 = vmatpush1.msra.mxu0 0.0
    %3588 = vmatprep.subr.mxu0 0.0
    %3589 = vmatpush1.msra.mxu0 0.0
    %3590 = vmatprep.subr.mxu0 0.0
    %3591 = vmatpush1.msra.mxu0 0.0
    %3592 = vmatprep.subr.mxu0 0.0
    %3593 = vmatpush1.msra.mxu0 0.0
    %3594 = vmatprep.subr.mxu0 0.0
    %3595 = vmatpush1.msra.mxu0 0.0
    %3596 = vmatprep.subr.mxu0 0.0
    %3597 = vmatpush1.msra.mxu0 0.0
    %3598 = vmatprep.subr.mxu0 0.0
    %3599 = vmatpush1.msra.mxu0 0.0
    %3600 = vmatprep.subr.mxu0 0.0
    %3601 = vmatpush1.msra.mxu0 0.0
    %3602 = vmatprep.subr.mxu0 0.0
    %3603 = vmatpush1.msra.mxu0 0.0
    %3604 = vmatprep.subr.mxu0 0.0
    %3605 = vmatpush1.msra.mxu0 0.0
    %3606 = vmatprep.subr.mxu0 0.0
    %3607 = vmatpush1.msra.mxu0 0.0
    %3608 = vmatprep.subr.mxu0 0.0
    %3609 = vmatpush1.msra.mxu0 0.0
    %3610 = vmatprep.subr.mxu0 0.0
    %3611 = vmatpush1.msra.mxu0 0.0
    %3612 = vmatprep.subr.mxu0 0.0
    %3613 = vmatpush1.msra.mxu0 0.0
    %3614 = vmatprep.subr.mxu0 0.0
    %3615 = vmatpush1.msra.mxu0 0.0
    %3616 = vmatprep.subr.mxu0 0.0
    %3617 = vmatpush1.msra.mxu0 0.0
    %3618 = vmatprep.subr.mxu0 0.0
    %3619 = vmatpush1.msra.mxu0 0.0
    %3620 = vmatprep.subr.mxu0 0.0
    %3621 = vmatpush1.msra.mxu0 0.0
    %3622 = vmatprep.subr.mxu0 0.0
    %3623 = vmatpush1.msra.mxu0 0.0
    %3624 = vmatprep.subr.mxu0 0.0
    %3625 = vmatpush1.msra.mxu0 0.0
    %3626 = vmatprep.subr.mxu0 0.0
    %3627 = vmatpush1.msra.mxu0 0.0
    %3628 = vmatprep.subr.mxu0 0.0
    %3629 = vmatpush1.msra.mxu0 0.0
    %3630 = vmatprep.subr.mxu0 0.0
    %3631 = vmatpush1.msra.mxu0 0.0
    %3632 = vmatprep.subr.mxu0 0.0
    %3633 = vmatpush1.msra.mxu0 0.0
    %3634 = vmatprep.subr.mxu0 0.0
    %3635 = vmatpush1.msra.mxu0 0.0
    %3636 = vmatprep.subr.mxu0 0.0
    %3637 = vmatpush1.msra.mxu0 0.0
    %3638 = vmatprep.subr.mxu0 0.0
    %3639 = vmatpush1.msra.mxu0 0.0
    %3640 = vmatprep.subr.mxu0 0.0
    %3641 = vmatpush1.msra.mxu0 0.0
    %3642 = vmatprep.subr.mxu0 0.0
    %3643 = vmatpush1.msra.mxu0 0.0
    %3644 = vmatprep.subr.mxu0 0.0
    %3645 = vmatpush1.msra.mxu0 0.0
    %3646 = vmatprep.mubr.f32.mxu0 0.0
    %3647 = vmatmul.mubr.f32.gmra.mrb[0].mxu0 %v3580
    %v3648 = vpop.f32.mrb[0].mxu0
    %v3649 = vadd.f32 0.0, %v3648
    %v3650 = vpop.f32.mrb[0].mxu0
    %3651 = vdwg.mxu0
    %v3652 = vsel %vm587, %v3253, 0
    %3654 = vmatprep.subr.mxu0 0.0
    %3655 = vmatpush1.msra.mxu0 %v3420
    %3656 = vmatprep.subr.mxu0 0.0
    %3657 = vmatpush1.msra.mxu0 0.0
    %3658 = vmatprep.subr.mxu0 0.0
    %3659 = vmatpush1.msra.mxu0 0.0
    %3660 = vmatprep.subr.mxu0 0.0
    %3661 = vmatpush1.msra.mxu0 0.0
    %3662 = vmatprep.subr.mxu0 0.0
    %3663 = vmatpush1.msra.mxu0 0.0
    %3664 = vmatprep.subr.mxu0 0.0
    %3665 = vmatpush1.msra.mxu0 0.0
    %3666 = vmatprep.subr.mxu0 0.0
    %3667 = vmatpush1.msra.mxu0 0.0
    %3668 = vmatprep.subr.mxu0 0.0
    %3669 = vmatpush1.msra.mxu0 0.0
    %3670 = vmatprep.subr.mxu0 0.0
    %3671 = vmatpush1.msra.mxu0 0.0
    %3672 = vmatprep.subr.mxu0 0.0
    %3673 = vmatpush1.msra.mxu0 0.0
    %3674 = vmatprep.subr.mxu0 0.0
    %3675 = vmatpush1.msra.mxu0 0.0
    %3676 = vmatprep.subr.mxu0 0.0
    %3677 = vmatpush1.msra.mxu0 0.0
    %3678 = vmatprep.subr.mxu0 0.0
    %3679 = vmatpush1.msra.mxu0 0.0
    %3680 = vmatprep.subr.mxu0 0.0
    %3681 = vmatpush1.msra.mxu0 0.0
    %3682 = vmatprep.subr.mxu0 0.0
    %3683 = vmatpush1.msra.mxu0 0.0
    %3684 = vmatprep.subr.mxu0 0.0
    %3685 = vmatpush1.msra.mxu0 0.0
    %3686 = vmatprep.subr.mxu0 0.0
    %3687 = vmatpush1.msra.mxu0 0.0
    %3688 = vmatprep.subr.mxu0 0.0
    %3689 = vmatpush1.msra.mxu0 0.0
    %3690 = vmatprep.subr.mxu0 0.0
    %3691 = vmatpush1.msra.mxu0 0.0
    %3692 = vmatprep.subr.mxu0 0.0
    %3693 = vmatpush1.msra.mxu0 0.0
    %3694 = vmatprep.subr.mxu0 0.0
    %3695 = vmatpush1.msra.mxu0 0.0
    %3696 = vmatprep.subr.mxu0 0.0
    %3697 = vmatpush1.msra.mxu0 0.0
    %3698 = vmatprep.subr.mxu0 0.0
    %3699 = vmatpush1.msra.mxu0 0.0
    %3700 = vmatprep.subr.mxu0 0.0
    %3701 = vmatpush1.msra.mxu0 0.0
    %3702 = vmatprep.subr.mxu0 0.0
    %3703 = vmatpush1.msra.mxu0 0.0
    %3704 = vmatprep.subr.mxu0 0.0
    %3705 = vmatpush1.msra.mxu0 0.0
    %3706 = vmatprep.subr.mxu0 0.0
    %3707 = vmatpush1.msra.mxu0 0.0
    %3708 = vmatprep.subr.mxu0 0.0
    %3709 = vmatpush1.msra.mxu0 0.0
    %3710 = vmatprep.subr.mxu0 0.0
    %3711 = vmatpush1.msra.mxu0 0.0
    %3712 = vmatprep.subr.mxu0 0.0
    %3713 = vmatpush1.msra.mxu0 0.0
    %3714 = vmatprep.subr.mxu0 0.0
    %3715 = vmatpush1.msra.mxu0 0.0
    %3716 = vmatprep.subr.mxu0 0.0
    %3717 = vmatpush1.msra.mxu0 0.0
    %3718 = vmatprep.mubr.f32.mxu0 0.0
    %3719 = vmatmul.mubr.f32.gmra.mrb[0].mxu0 %v3652
    %v3720 = vpop.f32.mrb[0].mxu0
    %v3721 = vadd.f32 0.0, %v3720
    %v3722 = vpop.f32.mrb[0].mxu0
    %3723 = vdwg.mxu0
    %v3724 = vmul.f32 %v3505, %v876
    %v3725 = vmul.f32 %v3577, %v876
    %v3726 = vmul.f32 %v3649, %v876
    %v3727 = vmul.f32 %v3721, %v876
    %v3728 = vld [vmem:[%s3] sm:$0xf]
    %v3729 = vadd.f32 %v3724, %v3728
    %v3730 = vadd.f32 %v3725, %v3728
    %v3731 = vadd.f32 %v3726, %v3728
    %v3732 = vadd.f32 %v3727, %v3728
    %v3733 = vsel %vm886, %v3729, -inf
    %3734 = vmax.xlane.f32.xlu0 %v3733
    %v3735 = vpop.xlane.xlu0 %3734
    %v3736 = vsel %vm886, %v3730, -inf
    %3737 = vmax.xlane.f32.xlu0 %v3736
    %v3738 = vpop.xlane.xlu0 %3737
    %v3739 = vsel %vm886, %v3731, -inf
    %3740 = vmax.xlane.f32.xlu0 %v3739
    %v3741 = vpop.xlane.xlu0 %3740
    %v3742 = vsel %vm886, %v3732, -inf
    %3743 = vmax.xlane.f32.xlu0 %v3742
    %v3744 = vpop.xlane.xlu0 %3743
    %v3745 = vsub.f32 %v3729, %v3735
    %v3746 = vsub.f32 %v3730, %v3738
    %v3747 = vsub.f32 %v3731, %v3741
    %v3748 = vsub.f32 %v3732, %v3744
    %v3749 = vmul.f32 %v3745, 1.442695
    %v3750 = vpow.pop %v3749
    %v3751 = vmul.f32 %v3746, 1.442695
    %v3752 = vpow.pop %v3751
    %v3753 = vmul.f32 %v3747, 1.442695
    %v3754 = vpow.pop %v3753
    %v3755 = vmul.f32 %v3748, 1.442695
    %v3756 = vpow.pop %v3755
    %v3757 = vsel %vm886, %v3750, 0.0
    %3758 = vadd.xlane.f32.xlu0 %v3757
    %v3759 = vpop.xlane.xlu0 %3758
    %v3760 = vsel %vm886, %v3752, 0.0
    %3761 = vadd.xlane.f32.xlu0 %v3760
    %v3762 = vpop.xlane.xlu0 %3761
    %v3763 = vsel %vm886, %v3754, 0.0
    %3764 = vadd.xlane.f32.xlu0 %v3763
    %v3765 = vpop.xlane.xlu0 %3764
    %v3766 = vsel %vm886, %v3756, 0.0
    %3767 = vadd.xlane.f32.xlu0 %v3766
    %v3768 = vpop.xlane.xlu0 %3767
    %v3769 = vrcp.pop %v3759
    %v3770 = vrcp.pop %v3762
    %v3771 = vrcp.pop %v3765
    %v3772 = vrcp.pop %v3768
    %v3773 = vmul.f32 %v3750, %v3769
    %v3774 = vmul.f32 %v3752, %v3770
    %v3775 = vmul.f32 %v3754, %v3771
    %v3776 = vmul.f32 %v3756, %v3772
    %3777 = vxpose.xlu0.b32.start [1/16] %v3298, 128
    %3778 = vxpose.xlu0.b32.cont [2/16] 0.0, 128
    %3779 = vxpose.xlu0.b32.cont [3/16] 0.0, 128
    %3780 = vxpose.xlu0.b32.cont [4/16] 0.0, 128
    %3781 = vxpose.xlu0.b32.cont [5/16] 0.0, 128
    %3782 = vxpose.xlu0.b32.cont [6/16] 0.0, 128
    %3783 = vxpose.xlu0.b32.cont [7/16] 0.0, 128
    %3784 = vxpose.xlu0.b32.cont [8/16] 0.0, 128
    %3785 = vxpose.xlu0.b32.cont [9/16] 0.0, 128
    %3786 = vxpose.xlu0.b32.cont [10/16] 0.0, 128
    %3787 = vxpose.xlu0.b32.cont [11/16] 0.0, 128
    %3788 = vxpose.xlu0.b32.cont [12/16] 0.0, 128
    %3789 = vxpose.xlu0.b32.cont [13/16] 0.0, 128
    %3790 = vxpose.xlu0.b32.cont [14/16] 0.0, 128
    %3791 = vxpose.xlu0.b32.cont [15/16] 0.0, 128
    %3792 = vxpose.xlu0.b32.end [16/16] 0.0, 128
    %v3793 = vpop.trf.xlu0
    %v3794 = vpop.trf.xlu0
    %v3795 = vpop.trf.xlu0
    %v3796 = vpop.trf.xlu0
    %v3797 = vpop.trf.xlu0
    %v3798 = vpop.trf.xlu0
    %v3799 = vpop.trf.xlu0
    %v3800 = vpop.trf.xlu0
    %v3801 = vpop.trf.xlu0
    %v3802 = vpop.trf.xlu0
    %v3803 = vpop.trf.xlu0
    %v3804 = vpop.trf.xlu0
    %v3805 = vpop.trf.xlu0
    %v3806 = vpop.trf.xlu0
    %v3807 = vpop.trf.xlu0
    %v3808 = vpop.trf.xlu0
    %v3810 = vsel %vm963, %v3793, 0
    %v3813 = vsel %vm963, %v3773, 0
    %3815 = vmatprep.subr.mxu0 0.0
    %3816 = vmatpush1.xpose.msra.mxu0 %v3813
    %3817 = vmatprep.subr.mxu0 0.0
    %3818 = vmatpush1.xpose.msra.mxu0 0.0
    %3819 = vmatprep.subr.mxu0 0.0
    %3820 = vmatpush1.xpose.msra.mxu0 0.0
    %3821 = vmatprep.subr.mxu0 0.0
    %3822 = vmatpush1.xpose.msra.mxu0 0.0
    %3823 = vmatprep.subr.mxu0 0.0
    %3824 = vmatpush1.xpose.msra.mxu0 0.0
    %3825 = vmatprep.subr.mxu0 0.0
    %3826 = vmatpush1.xpose.msra.mxu0 0.0
    %3827 = vmatprep.subr.mxu0 0.0
    %3828 = vmatpush1.xpose.msra.mxu0 0.0
    %3829 = vmatprep.subr.mxu0 0.0
    %3830 = vmatpush1.xpose.msra.mxu0 0.0
    %3831 = vmatprep.subr.mxu0 0.0
    %3832 = vmatpush1.xpose.msra.mxu0 0.0
    %3833 = vmatprep.subr.mxu0 0.0
    %3834 = vmatpush1.xpose.msra.mxu0 0.0
    %3835 = vmatprep.subr.mxu0 0.0
    %3836 = vmatpush1.xpose.msra.mxu0 0.0
    %3837 = vmatprep.subr.mxu0 0.0
    %3838 = vmatpush1.xpose.msra.mxu0 0.0
    %3839 = vmatprep.subr.mxu0 0.0
    %3840 = vmatpush1.xpose.msra.mxu0 0.0
    %3841 = vmatprep.subr.mxu0 0.0
    %3842 = vmatpush1.xpose.msra.mxu0 0.0
    %3843 = vmatprep.subr.mxu0 0.0
    %3844 = vmatpush1.xpose.msra.mxu0 0.0
    %3845 = vmatprep.subr.mxu0 0.0
    %3846 = vmatpush1.xpose.msra.mxu0 0.0
    %3847 = vmatprep.subr.mxu0 0.0
    %3848 = vmatpush1.xpose.msra.mxu0 0.0
    %3849 = vmatprep.subr.mxu0 0.0
    %3850 = vmatpush1.xpose.msra.mxu0 0.0
    %3851 = vmatprep.subr.mxu0 0.0
    %3852 = vmatpush1.xpose.msra.mxu0 0.0
    %3853 = vmatprep.subr.mxu0 0.0
    %3854 = vmatpush1.xpose.msra.mxu0 0.0
    %3855 = vmatprep.subr.mxu0 0.0
    %3856 = vmatpush1.xpose.msra.mxu0 0.0
    %3857 = vmatprep.subr.mxu0 0.0
    %3858 = vmatpush1.xpose.msra.mxu0 0.0
    %3859 = vmatprep.subr.mxu0 0.0
    %3860 = vmatpush1.xpose.msra.mxu0 0.0
    %3861 = vmatprep.subr.mxu0 0.0
    %3862 = vmatpush1.xpose.msra.mxu0 0.0
    %3863 = vmatprep.subr.mxu0 0.0
    %3864 = vmatpush1.xpose.msra.mxu0 0.0
    %3865 = vmatprep.subr.mxu0 0.0
    %3866 = vmatpush1.xpose.msra.mxu0 0.0
    %3867 = vmatprep.subr.mxu0 0.0
    %3868 = vmatpush1.xpose.msra.mxu0 0.0
    %3869 = vmatprep.subr.mxu0 0.0
    %3870 = vmatpush1.xpose.msra.mxu0 0.0
    %3871 = vmatprep.subr.mxu0 0.0
    %3872 = vmatpush1.xpose.msra.mxu0 0.0
    %3873 = vmatprep.subr.mxu0 0.0
    %3874 = vmatpush1.xpose.msra.mxu0 0.0
    %3875 = vmatprep.subr.mxu0 0.0
    %3876 = vmatpush1.xpose.msra.mxu0 0.0
    %3877 = vmatprep.subr.mxu0 0.0
    %3878 = vmatpush1.xpose.msra.mxu0 0.0
    %3879 = vmatprep.mubr.f32.mxu0 0.0
    %3880 = vmatmul.mubr.f32.gmra.mrb[0].mxu0 %v3810
    %v3881 = vpop.f32.mrb[0].mxu0
    %v3882 = vadd.f32 0.0, %v3881
    %v3883 = vpop.f32.mrb[0].mxu0
    %3884 = vdwg.mxu0
    %3885 = vxpose.xlu0.b32.start [1/16] %v3306, 128
    %3886 = vxpose.xlu0.b32.cont [2/16] 0.0, 128
    %3887 = vxpose.xlu0.b32.cont [3/16] 0.0, 128
    %3888 = vxpose.xlu0.b32.cont [4/16] 0.0, 128
    %3889 = vxpose.xlu0.b32.cont [5/16] 0.0, 128
    %3890 = vxpose.xlu0.b32.cont [6/16] 0.0, 128
    %3891 = vxpose.xlu0.b32.cont [7/16] 0.0, 128
    %3892 = vxpose.xlu0.b32.cont [8/16] 0.0, 128
    %3893 = vxpose.xlu0.b32.cont [9/16] 0.0, 128
    %3894 = vxpose.xlu0.b32.cont [10/16] 0.0, 128
    %3895 = vxpose.xlu0.b32.cont [11/16] 0.0, 128
    %3896 = vxpose.xlu0.b32.cont [12/16] 0.0, 128
    %3897 = vxpose.xlu0.b32.cont [13/16] 0.0, 128
    %3898 = vxpose.xlu0.b32.cont [14/16] 0.0, 128
    %3899 = vxpose.xlu0.b32.cont [15/16] 0.0, 128
    %3900 = vxpose.xlu0.b32.end [16/16] 0.0, 128
    %v3901 = vpop.trf.xlu0
    %v3902 = vpop.trf.xlu0
    %v3903 = vpop.trf.xlu0
    %v3904 = vpop.trf.xlu0
    %v3905 = vpop.trf.xlu0
    %v3906 = vpop.trf.xlu0
    %v3907 = vpop.trf.xlu0
    %v3908 = vpop.trf.xlu0
    %v3909 = vpop.trf.xlu0
    %v3910 = vpop.trf.xlu0
    %v3911 = vpop.trf.xlu0
    %v3912 = vpop.trf.xlu0
    %v3913 = vpop.trf.xlu0
    %v3914 = vpop.trf.xlu0
    %v3915 = vpop.trf.xlu0
    %v3916 = vpop.trf.xlu0
    %v3918 = vsel %vm963, %v3901, 0
    %v3921 = vsel %vm963, %v3774, 0
    %3923 = vmatprep.subr.mxu0 0.0
    %3924 = vmatpush1.xpose.msra.mxu0 %v3921
    %3925 = vmatprep.subr.mxu0 0.0
    %3926 = vmatpush1.xpose.msra.mxu0 0.0
    %3927 = vmatprep.subr.mxu0 0.0
    %3928 = vmatpush1.xpose.msra.mxu0 0.0
    %3929 = vmatprep.subr.mxu0 0.0
    %3930 = vmatpush1.xpose.msra.mxu0 0.0
    %3931 = vmatprep.subr.mxu0 0.0
    %3932 = vmatpush1.xpose.msra.mxu0 0.0
    %3933 = vmatprep.subr.mxu0 0.0
    %3934 = vmatpush1.xpose.msra.mxu0 0.0
    %3935 = vmatprep.subr.mxu0 0.0
    %3936 = vmatpush1.xpose.msra.mxu0 0.0
    %3937 = vmatprep.subr.mxu0 0.0
    %3938 = vmatpush1.xpose.msra.mxu0 0.0
    %3939 = vmatprep.subr.mxu0 0.0
    %3940 = vmatpush1.xpose.msra.mxu0 0.0
    %3941 = vmatprep.subr.mxu0 0.0
    %3942 = vmatpush1.xpose.msra.mxu0 0.0
    %3943 = vmatprep.subr.mxu0 0.0
    %3944 = vmatpush1.xpose.msra.mxu0 0.0
    %3945 = vmatprep.subr.mxu0 0.0
    %3946 = vmatpush1.xpose.msra.mxu0 0.0
    %3947 = vmatprep.subr.mxu0 0.0
    %3948 = vmatpush1.xpose.msra.mxu0 0.0
    %3949 = vmatprep.subr.mxu0 0.0
    %3950 = vmatpush1.xpose.msra.mxu0 0.0
    %3951 = vmatprep.subr.mxu0 0.0
    %3952 = vmatpush1.xpose.msra.mxu0 0.0
    %3953 = vmatprep.subr.mxu0 0.0
    %3954 = vmatpush1.xpose.msra.mxu0 0.0
    %3955 = vmatprep.subr.mxu0 0.0
    %3956 = vmatpush1.xpose.msra.mxu0 0.0
    %3957 = vmatprep.subr.mxu0 0.0
    %3958 = vmatpush1.xpose.msra.mxu0 0.0
    %3959 = vmatprep.subr.mxu0 0.0
    %3960 = vmatpush1.xpose.msra.mxu0 0.0
    %3961 = vmatprep.subr.mxu0 0.0
    %3962 = vmatpush1.xpose.msra.mxu0 0.0
    %3963 = vmatprep.subr.mxu0 0.0
    %3964 = vmatpush1.xpose.msra.mxu0 0.0
    %3965 = vmatprep.subr.mxu0 0.0
    %3966 = vmatpush1.xpose.msra.mxu0 0.0
    %3967 = vmatprep.subr.mxu0 0.0
    %3968 = vmatpush1.xpose.msra.mxu0 0.0
    %3969 = vmatprep.subr.mxu0 0.0
    %3970 = vmatpush1.xpose.msra.mxu0 0.0
    %3971 = vmatprep.subr.mxu0 0.0
    %3972 = vmatpush1.xpose.msra.mxu0 0.0
    %3973 = vmatprep.subr.mxu0 0.0
    %3974 = vmatpush1.xpose.msra.mxu0 0.0
    %3975 = vmatprep.subr.mxu0 0.0
    %3976 = vmatpush1.xpose.msra.mxu0 0.0
    %3977 = vmatprep.subr.mxu0 0.0
    %3978 = vmatpush1.xpose.msra.mxu0 0.0
    %3979 = vmatprep.subr.mxu0 0.0
    %3980 = vmatpush1.xpose.msra.mxu0 0.0
    %3981 = vmatprep.subr.mxu0 0.0
    %3982 = vmatpush1.xpose.msra.mxu0 0.0
    %3983 = vmatprep.subr.mxu0 0.0
    %3984 = vmatpush1.xpose.msra.mxu0 0.0
    %3985 = vmatprep.subr.mxu0 0.0
    %3986 = vmatpush1.xpose.msra.mxu0 0.0
    %3987 = vmatprep.mubr.f32.mxu0 0.0
    %3988 = vmatmul.mubr.f32.gmra.mrb[0].mxu0 %v3918
    %v3989 = vpop.f32.mrb[0].mxu0
    %v3990 = vadd.f32 0.0, %v3989
    %v3991 = vpop.f32.mrb[0].mxu0
    %3992 = vdwg.mxu0
    %3993 = vxpose.xlu0.b32.start [1/16] %v3305, 128
    %3994 = vxpose.xlu0.b32.cont [2/16] 0.0, 128
    %3995 = vxpose.xlu0.b32.cont [3/16] 0.0, 128
    %3996 = vxpose.xlu0.b32.cont [4/16] 0.0, 128
    %3997 = vxpose.xlu0.b32.cont [5/16] 0.0, 128
    %3998 = vxpose.xlu0.b32.cont [6/16] 0.0, 128
    %3999 = vxpose.xlu0.b32.cont [7/16] 0.0, 128
    %4000 = vxpose.xlu0.b32.cont [8/16] 0.0, 128
    %4001 = vxpose.xlu0.b32.cont [9/16] 0.0, 128
    %4002 = vxpose.xlu0.b32.cont [10/16] 0.0, 128
    %4003 = vxpose.xlu0.b32.cont [11/16] 0.0, 128
    %4004 = vxpose.xlu0.b32.cont [12/16] 0.0, 128
    %4005 = vxpose.xlu0.b32.cont [13/16] 0.0, 128
    %4006 = vxpose.xlu0.b32.cont [14/16] 0.0, 128
    %4007 = vxpose.xlu0.b32.cont [15/16] 0.0, 128
    %4008 = vxpose.xlu0.b32.end [16/16] 0.0, 128
    %v4009 = vpop.trf.xlu0
    %v4010 = vpop.trf.xlu0
    %v4011 = vpop.trf.xlu0
    %v4012 = vpop.trf.xlu0
    %v4013 = vpop.trf.xlu0
    %v4014 = vpop.trf.xlu0
    %v4015 = vpop.trf.xlu0
    %v4016 = vpop.trf.xlu0
    %v4017 = vpop.trf.xlu0
    %v4018 = vpop.trf.xlu0
    %v4019 = vpop.trf.xlu0
    %v4020 = vpop.trf.xlu0
    %v4021 = vpop.trf.xlu0
    %v4022 = vpop.trf.xlu0
    %v4023 = vpop.trf.xlu0
    %v4024 = vpop.trf.xlu0
    %v4026 = vsel %vm963, %v4009, 0
    %v4029 = vsel %vm963, %v3775, 0
    %4031 = vmatprep.subr.mxu0 0.0
    %4032 = vmatpush1.xpose.msra.mxu0 %v4029
    %4033 = vmatprep.subr.mxu0 0.0
    %4034 = vmatpush1.xpose.msra.mxu0 0.0
    %4035 = vmatprep.subr.mxu0 0.0
    %4036 = vmatpush1.xpose.msra.mxu0 0.0
    %4037 = vmatprep.subr.mxu0 0.0
    %4038 = vmatpush1.xpose.msra.mxu0 0.0
    %4039 = vmatprep.subr.mxu0 0.0
    %4040 = vmatpush1.xpose.msra.mxu0 0.0
    %4041 = vmatprep.subr.mxu0 0.0
    %4042 = vmatpush1.xpose.msra.mxu0 0.0
    %4043 = vmatprep.subr.mxu0 0.0
    %4044 = vmatpush1.xpose.msra.mxu0 0.0
    %4045 = vmatprep.subr.mxu0 0.0
    %4046 = vmatpush1.xpose.msra.mxu0 0.0
    %4047 = vmatprep.subr.mxu0 0.0
    %4048 = vmatpush1.xpose.msra.mxu0 0.0
    %4049 = vmatprep.subr.mxu0 0.0
    %4050 = vmatpush1.xpose.msra.mxu0 0.0
    %4051 = vmatprep.subr.mxu0 0.0
    %4052 = vmatpush1.xpose.msra.mxu0 0.0
    %4053 = vmatprep.subr.mxu0 0.0
    %4054 = vmatpush1.xpose.msra.mxu0 0.0
    %4055 = vmatprep.subr.mxu0 0.0
    %4056 = vmatpush1.xpose.msra.mxu0 0.0
    %4057 = vmatprep.subr.mxu0 0.0
    %4058 = vmatpush1.xpose.msra.mxu0 0.0
    %4059 = vmatprep.subr.mxu0 0.0
    %4060 = vmatpush1.xpose.msra.mxu0 0.0
    %4061 = vmatprep.subr.mxu0 0.0
    %4062 = vmatpush1.xpose.msra.mxu0 0.0
    %4063 = vmatprep.subr.mxu0 0.0
    %4064 = vmatpush1.xpose.msra.mxu0 0.0
    %4065 = vmatprep.subr.mxu0 0.0
    %4066 = vmatpush1.xpose.msra.mxu0 0.0
    %4067 = vmatprep.subr.mxu0 0.0
    %4068 = vmatpush1.xpose.msra.mxu0 0.0
    %4069 = vmatprep.subr.mxu0 0.0
    %4070 = vmatpush1.xpose.msra.mxu0 0.0
    %4071 = vmatprep.subr.mxu0 0.0
    %4072 = vmatpush1.xpose.msra.mxu0 0.0
    %4073 = vmatprep.subr.mxu0 0.0
    %4074 = vmatpush1.xpose.msra.mxu0 0.0
    %4075 = vmatprep.subr.mxu0 0.0
    %4076 = vmatpush1.xpose.msra.mxu0 0.0
    %4077 = vmatprep.subr.mxu0 0.0
    %4078 = vmatpush1.xpose.msra.mxu0 0.0
    %4079 = vmatprep.subr.mxu0 0.0
    %4080 = vmatpush1.xpose.msra.mxu0 0.0
    %4081 = vmatprep.subr.mxu0 0.0
    %4082 = vmatpush1.xpose.msra.mxu0 0.0
    %4083 = vmatprep.subr.mxu0 0.0
    %4084 = vmatpush1.xpose.msra.mxu0 0.0
    %4085 = vmatprep.subr.mxu0 0.0
    %4086 = vmatpush1.xpose.msra.mxu0 0.0
    %4087 = vmatprep.subr.mxu0 0.0
    %4088 = vmatpush1.xpose.msra.mxu0 0.0
    %4089 = vmatprep.subr.mxu0 0.0
    %4090 = vmatpush1.xpose.msra.mxu0 0.0
    %4091 = vmatprep.subr.mxu0 0.0
    %4092 = vmatpush1.xpose.msra.mxu0 0.0
    %4093 = vmatprep.subr.mxu0 0.0
    %4094 = vmatpush1.xpose.msra.mxu0 0.0
    %4095 = vmatprep.mubr.f32.mxu0 0.0
    %4096 = vmatmul.mubr.f32.gmra.mrb[0].mxu0 %v4026
    %v4097 = vpop.f32.mrb[0].mxu0
    %v4098 = vadd.f32 0.0, %v4097
    %v4099 = vpop.f32.mrb[0].mxu0
    %4100 = vdwg.mxu0
    %4101 = vxpose.xlu0.b32.start [1/16] %v3307, 128
    %4102 = vxpose.xlu0.b32.cont [2/16] 0.0, 128
    %4103 = vxpose.xlu0.b32.cont [3/16] 0.0, 128
    %4104 = vxpose.xlu0.b32.cont [4/16] 0.0, 128
    %4105 = vxpose.xlu0.b32.cont [5/16] 0.0, 128
    %4106 = vxpose.xlu0.b32.cont [6/16] 0.0, 128
    %4107 = vxpose.xlu0.b32.cont [7/16] 0.0, 128
    %4108 = vxpose.xlu0.b32.cont [8/16] 0.0, 128
    %4109 = vxpose.xlu0.b32.cont [9/16] 0.0, 128
    %4110 = vxpose.xlu0.b32.cont [10/16] 0.0, 128
    %4111 = vxpose.xlu0.b32.cont [11/16] 0.0, 128
    %4112 = vxpose.xlu0.b32.cont [12/16] 0.0, 128
    %4113 = vxpose.xlu0.b32.cont [13/16] 0.0, 128
    %4114 = vxpose.xlu0.b32.cont [14/16] 0.0, 128
    %4115 = vxpose.xlu0.b32.cont [15/16] 0.0, 128
    %4116 = vxpose.xlu0.b32.end [16/16] 0.0, 128
    %v4117 = vpop.trf.xlu0
    %v4118 = vpop.trf.xlu0
    %v4119 = vpop.trf.xlu0
    %v4120 = vpop.trf.xlu0
    %v4121 = vpop.trf.xlu0
    %v4122 = vpop.trf.xlu0
    %v4123 = vpop.trf.xlu0
    %v4124 = vpop.trf.xlu0
    %v4125 = vpop.trf.xlu0
    %v4126 = vpop.trf.xlu0
    %v4127 = vpop.trf.xlu0
    %v4128 = vpop.trf.xlu0
    %v4129 = vpop.trf.xlu0
    %v4130 = vpop.trf.xlu0
    %v4131 = vpop.trf.xlu0
    %v4132 = vpop.trf.xlu0
    %v4134 = vsel %vm963, %v4117, 0
    %v4137 = vsel %vm963, %v3776, 0
    %4139 = vmatprep.subr.mxu0 0.0
    %4140 = vmatpush1.xpose.msra.mxu0 %v4137
    %4141 = vmatprep.subr.mxu0 0.0
    %4142 = vmatpush1.xpose.msra.mxu0 0.0
    %4143 = vmatprep.subr.mxu0 0.0
    %4144 = vmatpush1.xpose.msra.mxu0 0.0
    %4145 = vmatprep.subr.mxu0 0.0
    %4146 = vmatpush1.xpose.msra.mxu0 0.0
    %4147 = vmatprep.subr.mxu0 0.0
    %4148 = vmatpush1.xpose.msra.mxu0 0.0
    %4149 = vmatprep.subr.mxu0 0.0
    %4150 = vmatpush1.xpose.msra.mxu0 0.0
    %4151 = vmatprep.subr.mxu0 0.0
    %4152 = vmatpush1.xpose.msra.mxu0 0.0
    %4153 = vmatprep.subr.mxu0 0.0
    %4154 = vmatpush1.xpose.msra.mxu0 0.0
    %4155 = vmatprep.subr.mxu0 0.0
    %4156 = vmatpush1.xpose.msra.mxu0 0.0
    %4157 = vmatprep.subr.mxu0 0.0
    %4158 = vmatpush1.xpose.msra.mxu0 0.0
    %4159 = vmatprep.subr.mxu0 0.0
    %4160 = vmatpush1.xpose.msra.mxu0 0.0
    %4161 = vmatprep.subr.mxu0 0.0
    %4162 = vmatpush1.xpose.msra.mxu0 0.0
    %4163 = vmatprep.subr.mxu0 0.0
    %4164 = vmatpush1.xpose.msra.mxu0 0.0
    %4165 = vmatprep.subr.mxu0 0.0
    %4166 = vmatpush1.xpose.msra.mxu0 0.0
    %4167 = vmatprep.subr.mxu0 0.0
    %4168 = vmatpush1.xpose.msra.mxu0 0.0
    %4169 = vmatprep.subr.mxu0 0.0
    %4170 = vmatpush1.xpose.msra.mxu0 0.0
    %4171 = vmatprep.subr.mxu0 0.0
    %4172 = vmatpush1.xpose.msra.mxu0 0.0
    %4173 = vmatprep.subr.mxu0 0.0
    %4174 = vmatpush1.xpose.msra.mxu0 0.0
    %4175 = vmatprep.subr.mxu0 0.0
    %4176 = vmatpush1.xpose.msra.mxu0 0.0
    %4177 = vmatprep.subr.mxu0 0.0
    %4178 = vmatpush1.xpose.msra.mxu0 0.0
    %4179 = vmatprep.subr.mxu0 0.0
    %4180 = vmatpush1.xpose.msra.mxu0 0.0
    %4181 = vmatprep.subr.mxu0 0.0
    %4182 = vmatpush1.xpose.msra.mxu0 0.0
    %4183 = vmatprep.subr.mxu0 0.0
    %4184 = vmatpush1.xpose.msra.mxu0 0.0
    %4185 = vmatprep.subr.mxu0 0.0
    %4186 = vmatpush1.xpose.msra.mxu0 0.0
    %4187 = vmatprep.subr.mxu0 0.0
    %4188 = vmatpush1.xpose.msra.mxu0 0.0
    %4189 = vmatprep.subr.mxu0 0.0
    %4190 = vmatpush1.xpose.msra.mxu0 0.0
    %4191 = vmatprep.subr.mxu0 0.0
    %4192 = vmatpush1.xpose.msra.mxu0 0.0
    %4193 = vmatprep.subr.mxu0 0.0
    %4194 = vmatpush1.xpose.msra.mxu0 0.0
    %4195 = vmatprep.subr.mxu0 0.0
    %4196 = vmatpush1.xpose.msra.mxu0 0.0
    %4197 = vmatprep.subr.mxu0 0.0
    %4198 = vmatpush1.xpose.msra.mxu0 0.0
    %4199 = vmatprep.subr.mxu0 0.0
    %4200 = vmatpush1.xpose.msra.mxu0 0.0
    %4201 = vmatprep.subr.mxu0 0.0
    %4202 = vmatpush1.xpose.msra.mxu0 0.0
    %4203 = vmatprep.mubr.f32.mxu0 0.0
    %4204 = vmatmul.mubr.f32.gmra.mrb[0].mxu0 %v4134
    %v4205 = vpop.f32.mrb[0].mxu0
    %v4206 = vadd.f32 0.0, %v4205
    %v4207 = vpop.f32.mrb[0].mxu0
    %4208 = vdwg.mxu0
    %4209 = vxpose.xlu0.b32.start [1/16] %v3882, 128
    %4210 = vxpose.xlu0.b32.cont [2/16] 0.0, 128
    %4211 = vxpose.xlu0.b32.cont [3/16] 0.0, 128
    %4212 = vxpose.xlu0.b32.cont [4/16] 0.0, 128
    %4213 = vxpose.xlu0.b32.cont [5/16] 0.0, 128
    %4214 = vxpose.xlu0.b32.cont [6/16] 0.0, 128
    %4215 = vxpose.xlu0.b32.cont [7/16] 0.0, 128
    %4216 = vxpose.xlu0.b32.cont [8/16] 0.0, 128
    %4217 = vxpose.xlu0.b32.cont [9/16] 0.0, 128
    %4218 = vxpose.xlu0.b32.cont [10/16] 0.0, 128
    %4219 = vxpose.xlu0.b32.cont [11/16] 0.0, 128
    %4220 = vxpose.xlu0.b32.cont [12/16] 0.0, 128
    %4221 = vxpose.xlu0.b32.cont [13/16] 0.0, 128
    %4222 = vxpose.xlu0.b32.cont [14/16] 0.0, 128
    %4223 = vxpose.xlu0.b32.cont [15/16] 0.0, 128
    %4224 = vxpose.xlu0.b32.end [16/16] 0.0, 128
    %v4225 = vpop.trf.xlu0
    %v4226 = vpop.trf.xlu0
    %v4227 = vpop.trf.xlu0
    %v4228 = vpop.trf.xlu0
    %v4229 = vpop.trf.xlu0
    %v4230 = vpop.trf.xlu0
    %v4231 = vpop.trf.xlu0
    %v4232 = vpop.trf.xlu0
    %v4233 = vpop.trf.xlu0
    %v4234 = vpop.trf.xlu0
    %v4235 = vpop.trf.xlu0
    %v4236 = vpop.trf.xlu0
    %v4237 = vpop.trf.xlu0
    %v4238 = vpop.trf.xlu0
    %v4239 = vpop.trf.xlu0
    %v4240 = vpop.trf.xlu0
    %4241 = vxpose.xlu0.b32.start [1/16] %v3990, 128
    %4242 = vxpose.xlu0.b32.cont [2/16] 0.0, 128
    %4243 = vxpose.xlu0.b32.cont [3/16] 0.0, 128
    %4244 = vxpose.xlu0.b32.cont [4/16] 0.0, 128
    %4245 = vxpose.xlu0.b32.cont [5/16] 0.0, 128
    %4246 = vxpose.xlu0.b32.cont [6/16] 0.0, 128
    %4247 = vxpose.xlu0.b32.cont [7/16] 0.0, 128
    %4248 = vxpose.xlu0.b32.cont [8/16] 0.0, 128
    %4249 = vxpose.xlu0.b32.cont [9/16] 0.0, 128
    %4250 = vxpose.xlu0.b32.cont [10/16] 0.0, 128
    %4251 = vxpose.xlu0.b32.cont [11/16] 0.0, 128
    %4252 = vxpose.xlu0.b32.cont [12/16] 0.0, 128
    %4253 = vxpose.xlu0.b32.cont [13/16] 0.0, 128
    %4254 = vxpose.xlu0.b32.cont [14/16] 0.0, 128
    %4255 = vxpose.xlu0.b32.cont [15/16] 0.0, 128
    %4256 = vxpose.xlu0.b32.end [16/16] 0.0, 128
    %v4257 = vpop.trf.xlu0
    %v4258 = vpop.trf.xlu0
    %v4259 = vpop.trf.xlu0
    %v4260 = vpop.trf.xlu0
    %v4261 = vpop.trf.xlu0
    %v4262 = vpop.trf.xlu0
    %v4263 = vpop.trf.xlu0
    %v4264 = vpop.trf.xlu0
    %v4265 = vpop.trf.xlu0
    %v4266 = vpop.trf.xlu0
    %v4267 = vpop.trf.xlu0
    %v4268 = vpop.trf.xlu0
    %v4269 = vpop.trf.xlu0
    %v4270 = vpop.trf.xlu0
    %v4271 = vpop.trf.xlu0
    %v4272 = vpop.trf.xlu0
    %4273 = vxpose.xlu0.b32.start [1/16] %v4098, 128
    %4274 = vxpose.xlu0.b32.cont [2/16] 0.0, 128
    %4275 = vxpose.xlu0.b32.cont [3/16] 0.0, 128
    %4276 = vxpose.xlu0.b32.cont [4/16] 0.0, 128
    %4277 = vxpose.xlu0.b32.cont [5/16] 0.0, 128
    %4278 = vxpose.xlu0.b32.cont [6/16] 0.0, 128
    %4279 = vxpose.xlu0.b32.cont [7/16] 0.0, 128
    %4280 = vxpose.xlu0.b32.cont [8/16] 0.0, 128
    %4281 = vxpose.xlu0.b32.cont [9/16] 0.0, 128
    %4282 = vxpose.xlu0.b32.cont [10/16] 0.0, 128
    %4283 = vxpose.xlu0.b32.cont [11/16] 0.0, 128
    %4284 = vxpose.xlu0.b32.cont [12/16] 0.0, 128
    %4285 = vxpose.xlu0.b32.cont [13/16] 0.0, 128
    %4286 = vxpose.xlu0.b32.cont [14/16] 0.0, 128
    %4287 = vxpose.xlu0.b32.cont [15/16] 0.0, 128
    %4288 = vxpose.xlu0.b32.end [16/16] 0.0, 128
    %v4289 = vpop.trf.xlu0
    %v4290 = vpop.trf.xlu0
    %v4291 = vpop.trf.xlu0
    %v4292 = vpop.trf.xlu0
    %v4293 = vpop.trf.xlu0
    %v4294 = vpop.trf.xlu0
    %v4295 = vpop.trf.xlu0
    %v4296 = vpop.trf.xlu0
    %v4297 = vpop.trf.xlu0
    %v4298 = vpop.trf.xlu0
    %v4299 = vpop.trf.xlu0
    %v4300 = vpop.trf.xlu0
    %v4301 = vpop.trf.xlu0
    %v4302 = vpop.trf.xlu0
    %v4303 = vpop.trf.xlu0
    %v4304 = vpop.trf.xlu0
    %4305 = vxpose.xlu0.b32.start [1/16] %v4206, 128
    %4306 = vxpose.xlu0.b32.cont [2/16] 0.0, 128
    %4307 = vxpose.xlu0.b32.cont [3/16] 0.0, 128
    %4308 = vxpose.xlu0.b32.cont [4/16] 0.0, 128
    %4309 = vxpose.xlu0.b32.cont [5/16] 0.0, 128
    %4310 = vxpose.xlu0.b32.cont [6/16] 0.0, 128
    %4311 = vxpose.xlu0.b32.cont [7/16] 0.0, 128
    %4312 = vxpose.xlu0.b32.cont [8/16] 0.0, 128
    %4313 = vxpose.xlu0.b32.cont [9/16] 0.0, 128
    %4314 = vxpose.xlu0.b32.cont [10/16] 0.0, 128
    %4315 = vxpose.xlu0.b32.cont [11/16] 0.0, 128
    %4316 = vxpose.xlu0.b32.cont [12/16] 0.0, 128
    %4317 = vxpose.xlu0.b32.cont [13/16] 0.0, 128
    %4318 = vxpose.xlu0.b32.cont [14/16] 0.0, 128
    %4319 = vxpose.xlu0.b32.cont [15/16] 0.0, 128
    %4320 = vxpose.xlu0.b32.end [16/16] 0.0, 128
    %v4321 = vpop.trf.xlu0
    %v4322 = vpop.trf.xlu0
    %v4323 = vpop.trf.xlu0
    %v4324 = vpop.trf.xlu0
    %v4325 = vpop.trf.xlu0
    %v4326 = vpop.trf.xlu0
    %v4327 = vpop.trf.xlu0
    %v4328 = vpop.trf.xlu0
    %v4329 = vpop.trf.xlu0
    %v4330 = vpop.trf.xlu0
    %v4331 = vpop.trf.xlu0
    %v4332 = vpop.trf.xlu0
    %v4333 = vpop.trf.xlu0
    %v4334 = vpop.trf.xlu0
    %v4335 = vpop.trf.xlu0
    %v4336 = vpop.trf.xlu0
    %v4337 = vcombine.low %v4225, %v4289
    %v4339 = vunpack.c.l.s4 1983009808
    %v4340 = vunpack.c.0.s8 %v4339
    %v4341 = vlaneseq
    %v4342 = vshrl.u32 %v4341, 7
    %v4343 = vsub.s32 %v4340, %v4342
    %v4344 = vrot.slane %v4337, %v4343
    %v4345 = vcombine.low %v4257, %v4321
    %v4347 = vunpack.c.l.s4 1983009808
    %v4348 = vunpack.c.0.s8 %v4347
    %v4349 = vlaneseq
    %v4350 = vshrl.u32 %v4349, 7
    %v4351 = vsub.s32 %v4348, %v4350
    %v4352 = vrot.slane %v4345, %v4351
    %v4353 = vcombine.low %v4344, %v4352
    %v4354 = vcombine.high %v4344, %v4352
    %v4356 = vunpack.c.l.s4 1934713408
    %v4357 = vunpack.c.0.s8 %v4356
    %v4358 = vlaneseq
    %v4359 = vshrl.u32 %v4358, 7
    %v4360 = vsub.s32 %v4357, %v4359
    %v4361 = vrot.slane %v4353, %v4360
    %v4363 = vunpack.c.l.s4 1934713408
    %v4364 = vunpack.c.0.s8 %v4363
    %v4365 = vlaneseq
    %v4366 = vshrl.u32 %v4365, 7
    %v4367 = vsub.s32 %v4364, %v4366
    %v4368 = vrot.slane %v4354, %v4367
    %v4369 = vcombine.high %v4361, 0.0
    %v4370 = vcombine.high %v4368, 0.0
    %v4371 = vcombine.low %v4361, %v4368
    %v4373 = vunpack.c.l.s4 1983009808
    %v4374 = vunpack.c.0.s8 %v4373
    %v4375 = vlaneseq
    %v4376 = vshrl.u32 %v4375, 7
    %v4377 = vsub.s32 %v4374, %v4376
    %v4378 = vrot.slane %v4371, %v4377
    %v4379 = vcombine.low %v4369, %v4370
    %v4381 = vunpack.c.l.s4 1983009808
    %v4382 = vunpack.c.0.s8 %v4381
    %v4383 = vlaneseq
    %v4384 = vshrl.u32 %v4383, 7
    %v4385 = vsub.s32 %v4382, %v4384
    %v4386 = vrot.slane %v4379, %v4385
    %v4387 = vcombine.low %v4378, %v4386
    %v4388 = vcombine.high %v4378, %v4386
    %v4390 = vunpack.c.l.s4 1934713408
    %v4391 = vunpack.c.0.s8 %v4390
    %v4392 = vlaneseq
    %v4393 = vshrl.u32 %v4392, 7
    %v4394 = vsub.s32 %v4391, %v4393
    %v4395 = vrot.slane %v4387, %v4394
    %v4397 = vunpack.c.l.s4 1934713408
    %v4398 = vunpack.c.0.s8 %v4397
    %v4399 = vlaneseq
    %v4400 = vshrl.u32 %v4399, 7
    %v4401 = vsub.s32 %v4398, %v4400
    %v4402 = vrot.slane %v4388, %v4401
    %v4403 = vcombine.high %v4395, 0.0
    %v4404 = vcombine.high %v4402, 0.0
    %4406 = vrot.lane.b32.xlu0 %v4403, 8
    %v4407 = vpop.permute.xlu0 %4406
    %4410 = vrot.lane.b32.xlu0 %v4402, 16
    %v4411 = vpop.permute.xlu0 %4410
    %4414 = vrot.lane.b32.xlu0 %v4404, 24
    %v4415 = vpop.permute.xlu0 %4414
    %v4417 = vsel %vm587, %v4395, %v4407
    %v4418 = vsel %vm1573, %v4417, %v4411
    %v4419 = vsel %vm1575, %v4418, %v4415
    %v4420 = vcombine.low %v3773, %v3775
    %v4422 = vunpack.c.l.s4 1983009808
    %v4423 = vunpack.c.0.s8 %v4422
    %v4424 = vlaneseq
    %v4425 = vshrl.u32 %v4424, 7
    %v4426 = vsub.s32 %v4423, %v4425
    %v4427 = vrot.slane %v4420, %v4426
    %v4428 = vcombine.low %v3774, %v3776
    %v4430 = vunpack.c.l.s4 1983009808
    %v4431 = vunpack.c.0.s8 %v4430
    %v4432 = vlaneseq
    %v4433 = vshrl.u32 %v4432, 7
    %v4434 = vsub.s32 %v4431, %v4433
    %v4435 = vrot.slane %v4428, %v4434
    %v4436 = vcombine.low %v4427, %v4435
    %v4437 = vcombine.high %v4427, %v4435
    %v4439 = vunpack.c.l.s4 1934713408
    %v4440 = vunpack.c.0.s8 %v4439
    %v4441 = vlaneseq
    %v4442 = vshrl.u32 %v4441, 7
    %v4443 = vsub.s32 %v4440, %v4442
    %v4444 = vrot.slane %v4436, %v4443
    %v4446 = vunpack.c.l.s4 1934713408
    %v4447 = vunpack.c.0.s8 %v4446
    %v4448 = vlaneseq
    %v4449 = vshrl.u32 %v4448, 7
    %v4450 = vsub.s32 %v4447, %v4449
    %v4451 = vrot.slane %v4437, %v4450
    %v4452 = vcombine.high %v4444, 0.0
    %v4453 = vcombine.high %v4451, 0.0
    %v4454 = vcombine.low %v4444, %v4451
    %v4456 = vunpack.c.l.s4 1983009808
    %v4457 = vunpack.c.0.s8 %v4456
    %v4458 = vlaneseq
    %v4459 = vshrl.u32 %v4458, 7
    %v4460 = vsub.s32 %v4457, %v4459
    %v4461 = vrot.slane %v4454, %v4460
    %v4462 = vcombine.low %v4452, %v4453
    %v4464 = vunpack.c.l.s4 1983009808
    %v4465 = vunpack.c.0.s8 %v4464
    %v4466 = vlaneseq
    %v4467 = vshrl.u32 %v4466, 7
    %v4468 = vsub.s32 %v4465, %v4467
    %v4469 = vrot.slane %v4462, %v4468
    %v4470 = vcombine.low %v4461, %v4469
    %v4471 = vcombine.high %v4461, %v4469
    %v4473 = vunpack.c.l.s4 1934713408
    %v4474 = vunpack.c.0.s8 %v4473
    %v4475 = vlaneseq
    %v4476 = vshrl.u32 %v4475, 7
    %v4477 = vsub.s32 %v4474, %v4476
    %v4478 = vrot.slane %v4470, %v4477
    %v4480 = vunpack.c.l.s4 1934713408
    %v4481 = vunpack.c.0.s8 %v4480
    %v4482 = vlaneseq
    %v4483 = vshrl.u32 %v4482, 7
    %v4484 = vsub.s32 %v4481, %v4483
    %v4485 = vrot.slane %v4471, %v4484
    %v4486 = vcombine.high %v4478, 0.0
    %v4487 = vcombine.high %v4485, 0.0
    %4489 = vrot.lane.b32.xlu0 %v4486, 4
    %v4490 = vpop.permute.xlu0 %4489
    %4493 = vrot.lane.b32.xlu0 %v4485, 8
    %v4494 = vpop.permute.xlu0 %4493
    %4497 = vrot.lane.b32.xlu0 %v4487, 12
    %v4498 = vpop.permute.xlu0 %4497
    %v4500 = vsel %vm963, %v4478, %v4490
    %v4501 = vsel %vm587, %v4500, %v4494
    %v4502 = vsel %vm1659, %v4501, %v4498
    %v4503 = vrot.slane %v3244, 4
    %v4504 = vrot.slane %v3266, 4
    %v4505 = vrot.slane %v3269, 4
    %v4506 = vrot.slane %v3272, 4
    %v4511 = vcombine.low %v4503, %v4505
    %v4513 = vunpack.c.l.s4 1983009808
    %v4514 = vunpack.c.0.s8 %v4513
    %v4515 = vlaneseq
    %v4516 = vshrl.u32 %v4515, 7
    %v4517 = vsub.s32 %v4514, %v4516
    %v4518 = vrot.slane %v4511, %v4517
    %v4519 = vcombine.low %v4504, %v4506
    %v4521 = vunpack.c.l.s4 1983009808
    %v4522 = vunpack.c.0.s8 %v4521
    %v4523 = vlaneseq
    %v4524 = vshrl.u32 %v4523, 7
    %v4525 = vsub.s32 %v4522, %v4524
    %v4526 = vrot.slane %v4519, %v4525
    %v4527 = vcombine.low %v4518, %v4526
    %v4528 = vcombine.high %v4518, %v4526
    %v4530 = vunpack.c.l.s4 1934713408
    %v4531 = vunpack.c.0.s8 %v4530
    %v4532 = vlaneseq
    %v4533 = vshrl.u32 %v4532, 7
    %v4534 = vsub.s32 %v4531, %v4533
    %v4535 = vrot.slane %v4527, %v4534
    %v4537 = vunpack.c.l.s4 1934713408
    %v4538 = vunpack.c.0.s8 %v4537
    %v4539 = vlaneseq
    %v4540 = vshrl.u32 %v4539, 7
    %v4541 = vsub.s32 %v4538, %v4540
    %v4542 = vrot.slane %v4528, %v4541
    %v4543 = vcombine.high %v4535, 0.0
    %v4544 = vcombine.high %v4542, 0.0
    %v4545 = vrot.slane %v3170, 4
    %v4546 = vrot.slane %v3256, 4
    %v4547 = vrot.slane %v3259, 4
    %v4548 = vrot.slane %v3262, 4
    %4553 = vxpose.xlu0.b32.start [1/16] %v4545, 128
    %4554 = vxpose.xlu0.b32.cont [2/16] 0.0, 128
    %4555 = vxpose.xlu0.b32.cont [3/16] 0.0, 128
    %4556 = vxpose.xlu0.b32.cont [4/16] 0.0, 128
    %4557 = vxpose.xlu0.b32.cont [5/16] 0.0, 128
    %4558 = vxpose.xlu0.b32.cont [6/16] 0.0, 128
    %4559 = vxpose.xlu0.b32.cont [7/16] 0.0, 128
    %4560 = vxpose.xlu0.b32.cont [8/16] 0.0, 128
    %4561 = vxpose.xlu0.b32.cont [9/16] 0.0, 128
    %4562 = vxpose.xlu0.b32.cont [10/16] 0.0, 128
    %4563 = vxpose.xlu0.b32.cont [11/16] 0.0, 128
    %4564 = vxpose.xlu0.b32.cont [12/16] 0.0, 128
    %4565 = vxpose.xlu0.b32.cont [13/16] 0.0, 128
    %4566 = vxpose.xlu0.b32.cont [14/16] 0.0, 128
    %4567 = vxpose.xlu0.b32.cont [15/16] 0.0, 128
    %4568 = vxpose.xlu0.b32.end [16/16] 0.0, 128
    %v4569 = vpop.trf.xlu0
    %v4570 = vpop.trf.xlu0
    %v4571 = vpop.trf.xlu0
    %v4572 = vpop.trf.xlu0
    %v4573 = vpop.trf.xlu0
    %v4574 = vpop.trf.xlu0
    %v4575 = vpop.trf.xlu0
    %v4576 = vpop.trf.xlu0
    %v4577 = vpop.trf.xlu0
    %v4578 = vpop.trf.xlu0
    %v4579 = vpop.trf.xlu0
    %v4580 = vpop.trf.xlu0
    %v4581 = vpop.trf.xlu0
    %v4582 = vpop.trf.xlu0
    %v4583 = vpop.trf.xlu0
    %v4584 = vpop.trf.xlu0
    %4585 = vxpose.xlu0.b32.start [1/16] %v4546, 128
    %4586 = vxpose.xlu0.b32.cont [2/16] 0.0, 128
    %4587 = vxpose.xlu0.b32.cont [3/16] 0.0, 128
    %4588 = vxpose.xlu0.b32.cont [4/16] 0.0, 128
    %4589 = vxpose.xlu0.b32.cont [5/16] 0.0, 128
    %4590 = vxpose.xlu0.b32.cont [6/16] 0.0, 128
    %4591 = vxpose.xlu0.b32.cont [7/16] 0.0, 128
    %4592 = vxpose.xlu0.b32.cont [8/16] 0.0, 128
    %4593 = vxpose.xlu0.b32.cont [9/16] 0.0, 128
    %4594 = vxpose.xlu0.b32.cont [10/16] 0.0, 128
    %4595 = vxpose.xlu0.b32.cont [11/16] 0.0, 128
    %4596 = vxpose.xlu0.b32.cont [12/16] 0.0, 128
    %4597 = vxpose.xlu0.b32.cont [13/16] 0.0, 128
    %4598 = vxpose.xlu0.b32.cont [14/16] 0.0, 128
    %4599 = vxpose.xlu0.b32.cont [15/16] 0.0, 128
    %4600 = vxpose.xlu0.b32.end [16/16] 0.0, 128
    %v4601 = vpop.trf.xlu0
    %v4602 = vpop.trf.xlu0
    %v4603 = vpop.trf.xlu0
    %v4604 = vpop.trf.xlu0
    %v4605 = vpop.trf.xlu0
    %v4606 = vpop.trf.xlu0
    %v4607 = vpop.trf.xlu0
    %v4608 = vpop.trf.xlu0
    %v4609 = vpop.trf.xlu0
    %v4610 = vpop.trf.xlu0
    %v4611 = vpop.trf.xlu0
    %v4612 = vpop.trf.xlu0
    %v4613 = vpop.trf.xlu0
    %v4614 = vpop.trf.xlu0
    %v4615 = vpop.trf.xlu0
    %v4616 = vpop.trf.xlu0
    %4617 = vxpose.xlu0.b32.start [1/16] %v4547, 128
    %4618 = vxpose.xlu0.b32.cont [2/16] 0.0, 128
    %4619 = vxpose.xlu0.b32.cont [3/16] 0.0, 128
    %4620 = vxpose.xlu0.b32.cont [4/16] 0.0, 128
    %4621 = vxpose.xlu0.b32.cont [5/16] 0.0, 128
    %4622 = vxpose.xlu0.b32.cont [6/16] 0.0, 128
    %4623 = vxpose.xlu0.b32.cont [7/16] 0.0, 128
    %4624 = vxpose.xlu0.b32.cont [8/16] 0.0, 128
    %4625 = vxpose.xlu0.b32.cont [9/16] 0.0, 128
    %4626 = vxpose.xlu0.b32.cont [10/16] 0.0, 128
    %4627 = vxpose.xlu0.b32.cont [11/16] 0.0, 128
    %4628 = vxpose.xlu0.b32.cont [12/16] 0.0, 128
    %4629 = vxpose.xlu0.b32.cont [13/16] 0.0, 128
    %4630 = vxpose.xlu0.b32.cont [14/16] 0.0, 128
    %4631 = vxpose.xlu0.b32.cont [15/16] 0.0, 128
    %4632 = vxpose.xlu0.b32.end [16/16] 0.0, 128
    %v4633 = vpop.trf.xlu0
    %v4634 = vpop.trf.xlu0
    %v4635 = vpop.trf.xlu0
    %v4636 = vpop.trf.xlu0
    %v4637 = vpop.trf.xlu0
    %v4638 = vpop.trf.xlu0
    %v4639 = vpop.trf.xlu0
    %v4640 = vpop.trf.xlu0
    %v4641 = vpop.trf.xlu0
    %v4642 = vpop.trf.xlu0
    %v4643 = vpop.trf.xlu0
    %v4644 = vpop.trf.xlu0
    %v4645 = vpop.trf.xlu0
    %v4646 = vpop.trf.xlu0
    %v4647 = vpop.trf.xlu0
    %v4648 = vpop.trf.xlu0
    %4649 = vxpose.xlu0.b32.start [1/16] %v4548, 128
    %4650 = vxpose.xlu0.b32.cont [2/16] 0.0, 128
    %4651 = vxpose.xlu0.b32.cont [3/16] 0.0, 128
    %4652 = vxpose.xlu0.b32.cont [4/16] 0.0, 128
    %4653 = vxpose.xlu0.b32.cont [5/16] 0.0, 128
    %4654 = vxpose.xlu0.b32.cont [6/16] 0.0, 128
    %4655 = vxpose.xlu0.b32.cont [7/16] 0.0, 128
    %4656 = vxpose.xlu0.b32.cont [8/16] 0.0, 128
    %4657 = vxpose.xlu0.b32.cont [9/16] 0.0, 128
    %4658 = vxpose.xlu0.b32.cont [10/16] 0.0, 128
    %4659 = vxpose.xlu0.b32.cont [11/16] 0.0, 128
    %4660 = vxpose.xlu0.b32.cont [12/16] 0.0, 128
    %4661 = vxpose.xlu0.b32.cont [13/16] 0.0, 128
    %4662 = vxpose.xlu0.b32.cont [14/16] 0.0, 128
    %4663 = vxpose.xlu0.b32.cont [15/16] 0.0, 128
    %4664 = vxpose.xlu0.b32.end [16/16] 0.0, 128
    %v4665 = vpop.trf.xlu0
    %v4666 = vpop.trf.xlu0
    %v4667 = vpop.trf.xlu0
    %v4668 = vpop.trf.xlu0
    %v4669 = vpop.trf.xlu0
    %v4670 = vpop.trf.xlu0
    %v4671 = vpop.trf.xlu0
    %v4672 = vpop.trf.xlu0
    %v4673 = vpop.trf.xlu0
    %v4674 = vpop.trf.xlu0
    %v4675 = vpop.trf.xlu0
    %v4676 = vpop.trf.xlu0
    %v4677 = vpop.trf.xlu0
    %v4678 = vpop.trf.xlu0
    %v4679 = vpop.trf.xlu0
    %v4680 = vpop.trf.xlu0
    %v4681 = vrot.slane %v3093, 4
    %v4682 = vsel %vm587, %v4681, 0
    %4684 = vmatprep.subr.mxu0 0.0
    %4685 = vmatpush1.msra.mxu0 %v4569
    %4686 = vmatprep.subr.mxu0 0.0
    %4687 = vmatpush1.msra.mxu0 0.0
    %4688 = vmatprep.subr.mxu0 0.0
    %4689 = vmatpush1.msra.mxu0 0.0
    %4690 = vmatprep.subr.mxu0 0.0
    %4691 = vmatpush1.msra.mxu0 0.0
    %4692 = vmatprep.subr.mxu0 0.0
    %4693 = vmatpush1.msra.mxu0 0.0
    %4694 = vmatprep.subr.mxu0 0.0
    %4695 = vmatpush1.msra.mxu0 0.0
    %4696 = vmatprep.subr.mxu0 0.0
    %4697 = vmatpush1.msra.mxu0 0.0
    %4698 = vmatprep.subr.mxu0 0.0
    %4699 = vmatpush1.msra.mxu0 0.0
    %4700 = vmatprep.subr.mxu0 0.0
    %4701 = vmatpush1.msra.mxu0 0.0
    %4702 = vmatprep.subr.mxu0 0.0
    %4703 = vmatpush1.msra.mxu0 0.0
    %4704 = vmatprep.subr.mxu0 0.0
    %4705 = vmatpush1.msra.mxu0 0.0
    %4706 = vmatprep.subr.mxu0 0.0
    %4707 = vmatpush1.msra.mxu0 0.0
    %4708 = vmatprep.subr.mxu0 0.0
    %4709 = vmatpush1.msra.mxu0 0.0
    %4710 = vmatprep.subr.mxu0 0.0
    %4711 = vmatpush1.msra.mxu0 0.0
    %4712 = vmatprep.subr.mxu0 0.0
    %4713 = vmatpush1.msra.mxu0 0.0
    %4714 = vmatprep.subr.mxu0 0.0
    %4715 = vmatpush1.msra.mxu0 0.0
    %4716 = vmatprep.subr.mxu0 0.0
    %4717 = vmatpush1.msra.mxu0 0.0
    %4718 = vmatprep.subr.mxu0 0.0
    %4719 = vmatpush1.msra.mxu0 0.0
    %4720 = vmatprep.subr.mxu0 0.0
    %4721 = vmatpush1.msra.mxu0 0.0
    %4722 = vmatprep.subr.mxu0 0.0
    %4723 = vmatpush1.msra.mxu0 0.0
    %4724 = vmatprep.subr.mxu0 0.0
    %4725 = vmatpush1.msra.mxu0 0.0
    %4726 = vmatprep.subr.mxu0 0.0
    %4727 = vmatpush1.msra.mxu0 0.0
    %4728 = vmatprep.subr.mxu0 0.0
    %4729 = vmatpush1.msra.mxu0 0.0
    %4730 = vmatprep.subr.mxu0 0.0
    %4731 = vmatpush1.msra.mxu0 0.0
    %4732 = vmatprep.subr.mxu0 0.0
    %4733 = vmatpush1.msra.mxu0 0.0
    %4734 = vmatprep.subr.mxu0 0.0
    %4735 = vmatpush1.msra.mxu0 0.0
    %4736 = vmatprep.subr.mxu0 0.0
    %4737 = vmatpush1.msra.mxu0 0.0
    %4738 = vmatprep.subr.mxu0 0.0
    %4739 = vmatpush1.msra.mxu0 0.0
    %4740 = vmatprep.subr.mxu0 0.0
    %4741 = vmatpush1.msra.mxu0 0.0
    %4742 = vmatprep.subr.mxu0 0.0
    %4743 = vmatpush1.msra.mxu0 0.0
    %4744 = vmatprep.subr.mxu0 0.0
    %4745 = vmatpush1.msra.mxu0 0.0
    %4746 = vmatprep.subr.mxu0 0.0
    %4747 = vmatpush1.msra.mxu0 0.0
    %4748 = vmatprep.mubr.f32.mxu0 0.0
    %4749 = vmatmul.mubr.f32.gmra.mrb[0].mxu0 %v4682
    %v4750 = vpop.f32.mrb[0].mxu0
    %v4751 = vadd.f32 0.0, %v4750
    %v4752 = vpop.f32.mrb[0].mxu0
    %4753 = vdwg.mxu0
    %v4754 = vrot.slane %v3249, 4
    %v4755 = vsel %vm587, %v4754, 0
    %4757 = vmatprep.subr.mxu0 0.0
    %4758 = vmatpush1.msra.mxu0 %v4601
    %4759 = vmatprep.subr.mxu0 0.0
    %4760 = vmatpush1.msra.mxu0 0.0
    %4761 = vmatprep.subr.mxu0 0.0
    %4762 = vmatpush1.msra.mxu0 0.0
    %4763 = vmatprep.subr.mxu0 0.0
    %4764 = vmatpush1.msra.mxu0 0.0
    %4765 = vmatprep.subr.mxu0 0.0
    %4766 = vmatpush1.msra.mxu0 0.0
    %4767 = vmatprep.subr.mxu0 0.0
    %4768 = vmatpush1.msra.mxu0 0.0
    %4769 = vmatprep.subr.mxu0 0.0
    %4770 = vmatpush1.msra.mxu0 0.0
    %4771 = vmatprep.subr.mxu0 0.0
    %4772 = vmatpush1.msra.mxu0 0.0
    %4773 = vmatprep.subr.mxu0 0.0
    %4774 = vmatpush1.msra.mxu0 0.0
    %4775 = vmatprep.subr.mxu0 0.0
    %4776 = vmatpush1.msra.mxu0 0.0
    %4777 = vmatprep.subr.mxu0 0.0
    %4778 = vmatpush1.msra.mxu0 0.0
    %4779 = vmatprep.subr.mxu0 0.0
    %4780 = vmatpush1.msra.mxu0 0.0
    %4781 = vmatprep.subr.mxu0 0.0
    %4782 = vmatpush1.msra.mxu0 0.0
    %4783 = vmatprep.subr.mxu0 0.0
    %4784 = vmatpush1.msra.mxu0 0.0
    %4785 = vmatprep.subr.mxu0 0.0
    %4786 = vmatpush1.msra.mxu0 0.0
    %4787 = vmatprep.subr.mxu0 0.0
    %4788 = vmatpush1.msra.mxu0 0.0
    %4789 = vmatprep.subr.mxu0 0.0
    %4790 = vmatpush1.msra.mxu0 0.0
    %4791 = vmatprep.subr.mxu0 0.0
    %4792 = vmatpush1.msra.mxu0 0.0
    %4793 = vmatprep.subr.mxu0 0.0
    %4794 = vmatpush1.msra.mxu0 0.0
    %4795 = vmatprep.subr.mxu0 0.0
    %4796 = vmatpush1.msra.mxu0 0.0
    %4797 = vmatprep.subr.mxu0 0.0
    %4798 = vmatpush1.msra.mxu0 0.0
    %4799 = vmatprep.subr.mxu0 0.0
    %4800 = vmatpush1.msra.mxu0 0.0
    %4801 = vmatprep.subr.mxu0 0.0
    %4802 = vmatpush1.msra.mxu0 0.0
    %4803 = vmatprep.subr.mxu0 0.0
    %4804 = vmatpush1.msra.mxu0 0.0
    %4805 = vmatprep.subr.mxu0 0.0
    %4806 = vmatpush1.msra.mxu0 0.0
    %4807 = vmatprep.subr.mxu0 0.0
    %4808 = vmatpush1.msra.mxu0 0.0
    %4809 = vmatprep.subr.mxu0 0.0
    %4810 = vmatpush1.msra.mxu0 0.0
    %4811 = vmatprep.subr.mxu0 0.0
    %4812 = vmatpush1.msra.mxu0 0.0
    %4813 = vmatprep.subr.mxu0 0.0
    %4814 = vmatpush1.msra.mxu0 0.0
    %4815 = vmatprep.subr.mxu0 0.0
    %4816 = vmatpush1.msra.mxu0 0.0
    %4817 = vmatprep.subr.mxu0 0.0
    %4818 = vmatpush1.msra.mxu0 0.0
    %4819 = vmatprep.subr.mxu0 0.0
    %4820 = vmatpush1.msra.mxu0 0.0
    %4821 = vmatprep.mubr.f32.mxu0 0.0
    %4822 = vmatmul.mubr.f32.gmra.mrb[0].mxu0 %v4755
    %v4823 = vpop.f32.mrb[0].mxu0
    %v4824 = vadd.f32 0.0, %v4823
    %v4825 = vpop.f32.mrb[0].mxu0
    %4826 = vdwg.mxu0
    %v4827 = vrot.slane %v3251, 4
    %v4828 = vsel %vm587, %v4827, 0
    %4830 = vmatprep.subr.mxu0 0.0
    %4831 = vmatpush1.msra.mxu0 %v4633
    %4832 = vmatprep.subr.mxu0 0.0
    %4833 = vmatpush1.msra.mxu0 0.0
    %4834 = vmatprep.subr.mxu0 0.0
    %4835 = vmatpush1.msra.mxu0 0.0
    %4836 = vmatprep.subr.mxu0 0.0
    %4837 = vmatpush1.msra.mxu0 0.0
    %4838 = vmatprep.subr.mxu0 0.0
    %4839 = vmatpush1.msra.mxu0 0.0
    %4840 = vmatprep.subr.mxu0 0.0
    %4841 = vmatpush1.msra.mxu0 0.0
    %4842 = vmatprep.subr.mxu0 0.0
    %4843 = vmatpush1.msra.mxu0 0.0
    %4844 = vmatprep.subr.mxu0 0.0
    %4845 = vmatpush1.msra.mxu0 0.0
    %4846 = vmatprep.subr.mxu0 0.0
    %4847 = vmatpush1.msra.mxu0 0.0
    %4848 = vmatprep.subr.mxu0 0.0
    %4849 = vmatpush1.msra.mxu0 0.0
    %4850 = vmatprep.subr.mxu0 0.0
    %4851 = vmatpush1.msra.mxu0 0.0
    %4852 = vmatprep.subr.mxu0 0.0
    %4853 = vmatpush1.msra.mxu0 0.0
    %4854 = vmatprep.subr.mxu0 0.0
    %4855 = vmatpush1.msra.mxu0 0.0
    %4856 = vmatprep.subr.mxu0 0.0
    %4857 = vmatpush1.msra.mxu0 0.0
    %4858 = vmatprep.subr.mxu0 0.0
    %4859 = vmatpush1.msra.mxu0 0.0
    %4860 = vmatprep.subr.mxu0 0.0
    %4861 = vmatpush1.msra.mxu0 0.0
    %4862 = vmatprep.subr.mxu0 0.0
    %4863 = vmatpush1.msra.mxu0 0.0
    %4864 = vmatprep.subr.mxu0 0.0
    %4865 = vmatpush1.msra.mxu0 0.0
    %4866 = vmatprep.subr.mxu0 0.0
    %4867 = vmatpush1.msra.mxu0 0.0
    %4868 = vmatprep.subr.mxu0 0.0
    %4869 = vmatpush1.msra.mxu0 0.0
    %4870 = vmatprep.subr.mxu0 0.0
    %4871 = vmatpush1.msra.mxu0 0.0
    %4872 = vmatprep.subr.mxu0 0.0
    %4873 = vmatpush1.msra.mxu0 0.0
    %4874 = vmatprep.subr.mxu0 0.0
    %4875 = vmatpush1.msra.mxu0 0.0
    %4876 = vmatprep.subr.mxu0 0.0
    %4877 = vmatpush1.msra.mxu0 0.0
    %4878 = vmatprep.subr.mxu0 0.0
    %4879 = vmatpush1.msra.mxu0 0.0
    %4880 = vmatprep.subr.mxu0 0.0
    %4881 = vmatpush1.msra.mxu0 0.0
    %4882 = vmatprep.subr.mxu0 0.0
    %4883 = vmatpush1.msra.mxu0 0.0
    %4884 = vmatprep.subr.mxu0 0.0
    %4885 = vmatpush1.msra.mxu0 0.0
    %4886 = vmatprep.subr.mxu0 0.0
    %4887 = vmatpush1.msra.mxu0 0.0
    %4888 = vmatprep.subr.mxu0 0.0
    %4889 = vmatpush1.msra.mxu0 0.0
    %4890 = vmatprep.subr.mxu0 0.0
    %4891 = vmatpush1.msra.mxu0 0.0
    %4892 = vmatprep.subr.mxu0 0.0
    %4893 = vmatpush1.msra.mxu0 0.0
    %4894 = vmatprep.mubr.f32.mxu0 0.0
    %4895 = vmatmul.mubr.f32.gmra.mrb[0].mxu0 %v4828
    %v4896 = vpop.f32.mrb[0].mxu0
    %v4897 = vadd.f32 0.0, %v4896
    %v4898 = vpop.f32.mrb[0].mxu0
    %4899 = vdwg.mxu0
    %v4900 = vrot.slane %v3253, 4
    %v4901 = vsel %vm587, %v4900, 0
    %4903 = vmatprep.subr.mxu0 0.0
    %4904 = vmatpush1.msra.mxu0 %v4665
    %4905 = vmatprep.subr.mxu0 0.0
    %4906 = vmatpush1.msra.mxu0 0.0
    %4907 = vmatprep.subr.mxu0 0.0
    %4908 = vmatpush1.msra.mxu0 0.0
    %4909 = vmatprep.subr.mxu0 0.0
    %4910 = vmatpush1.msra.mxu0 0.0
    %4911 = vmatprep.subr.mxu0 0.0
    %4912 = vmatpush1.msra.mxu0 0.0
    %4913 = vmatprep.subr.mxu0 0.0
    %4914 = vmatpush1.msra.mxu0 0.0
    %4915 = vmatprep.subr.mxu0 0.0
    %4916 = vmatpush1.msra.mxu0 0.0
    %4917 = vmatprep.subr.mxu0 0.0
    %4918 = vmatpush1.msra.mxu0 0.0
    %4919 = vmatprep.subr.mxu0 0.0
    %4920 = vmatpush1.msra.mxu0 0.0
    %4921 = vmatprep.subr.mxu0 0.0
    %4922 = vmatpush1.msra.mxu0 0.0
    %4923 = vmatprep.subr.mxu0 0.0
    %4924 = vmatpush1.msra.mxu0 0.0
    %4925 = vmatprep.subr.mxu0 0.0
    %4926 = vmatpush1.msra.mxu0 0.0
    %4927 = vmatprep.subr.mxu0 0.0
    %4928 = vmatpush1.msra.mxu0 0.0
    %4929 = vmatprep.subr.mxu0 0.0
    %4930 = vmatpush1.msra.mxu0 0.0
    %4931 = vmatprep.subr.mxu0 0.0
    %4932 = vmatpush1.msra.mxu0 0.0
    %4933 = vmatprep.subr.mxu0 0.0
    %4934 = vmatpush1.msra.mxu0 0.0
    %4935 = vmatprep.subr.mxu0 0.0
    %4936 = vmatpush1.msra.mxu0 0.0
    %4937 = vmatprep.subr.mxu0 0.0
    %4938 = vmatpush1.msra.mxu0 0.0
    %4939 = vmatprep.subr.mxu0 0.0
    %4940 = vmatpush1.msra.mxu0 0.0
    %4941 = vmatprep.subr.mxu0 0.0
    %4942 = vmatpush1.msra.mxu0 0.0
    %4943 = vmatprep.subr.mxu0 0.0
    %4944 = vmatpush1.msra.mxu0 0.0
    %4945 = vmatprep.subr.mxu0 0.0
    %4946 = vmatpush1.msra.mxu0 0.0
    %4947 = vmatprep.subr.mxu0 0.0
    %4948 = vmatpush1.msra.mxu0 0.0
    %4949 = vmatprep.subr.mxu0 0.0
    %4950 = vmatpush1.msra.mxu0 0.0
    %4951 = vmatprep.subr.mxu0 0.0
    %4952 = vmatpush1.msra.mxu0 0.0
    %4953 = vmatprep.subr.mxu0 0.0
    %4954 = vmatpush1.msra.mxu0 0.0
    %4955 = vmatprep.subr.mxu0 0.0
    %4956 = vmatpush1.msra.mxu0 0.0
    %4957 = vmatprep.subr.mxu0 0.0
    %4958 = vmatpush1.msra.mxu0 0.0
    %4959 = vmatprep.subr.mxu0 0.0
    %4960 = vmatpush1.msra.mxu0 0.0
    %4961 = vmatprep.subr.mxu0 0.0
    %4962 = vmatpush1.msra.mxu0 0.0
    %4963 = vmatprep.subr.mxu0 0.0
    %4964 = vmatpush1.msra.mxu0 0.0
    %4965 = vmatprep.subr.mxu0 0.0
    %4966 = vmatpush1.msra.mxu0 0.0
    %4967 = vmatprep.mubr.f32.mxu0 0.0
    %4968 = vmatmul.mubr.f32.gmra.mrb[0].mxu0 %v4901
    %v4969 = vpop.f32.mrb[0].mxu0
    %v4970 = vadd.f32 0.0, %v4969
    %v4971 = vpop.f32.mrb[0].mxu0
    %4972 = vdwg.mxu0
    %v4973 = vmul.f32 %v4751, %v876
    %v4974 = vmul.f32 %v4824, %v876
    %v4975 = vmul.f32 %v4897, %v876
    %v4976 = vmul.f32 %v4970, %v876
    %s4977 = scalar_lea.vmem %s3, 4
    %v4978 = vld [vmem:[%s4977] sm:$0xf]
    %v4979 = vadd.f32 %v4973, %v4978
    %v4980 = vadd.f32 %v4974, %v4978
    %v4981 = vadd.f32 %v4975, %v4978
    %v4982 = vadd.f32 %v4976, %v4978
    %v4983 = vsel %vm886, %v4979, -inf
    %4984 = vmax.xlane.f32.xlu0 %v4983
    %v4985 = vpop.xlane.xlu0 %4984
    %v4986 = vsel %vm886, %v4980, -inf
    %4987 = vmax.xlane.f32.xlu0 %v4986
    %v4988 = vpop.xlane.xlu0 %4987
    %v4989 = vsel %vm886, %v4981, -inf
    %4990 = vmax.xlane.f32.xlu0 %v4989
    %v4991 = vpop.xlane.xlu0 %4990
    %v4992 = vsel %vm886, %v4982, -inf
    %4993 = vmax.xlane.f32.xlu0 %v4992
    %v4994 = vpop.xlane.xlu0 %4993
    %v4995 = vsub.f32 %v4979, %v4985
    %v4996 = vsub.f32 %v4980, %v4988
    %v4997 = vsub.f32 %v4981, %v4991
    %v4998 = vsub.f32 %v4982, %v4994
    %v4999 = vmul.f32 %v4995, 1.442695
    %v5000 = vpow.pop %v4999
    %v5001 = vmul.f32 %v4996, 1.442695
    %v5002 = vpow.pop %v5001
    %v5003 = vmul.f32 %v4997, 1.442695
    %v5004 = vpow.pop %v5003
    %v5005 = vmul.f32 %v4998, 1.442695
    %v5006 = vpow.pop %v5005
    %v5007 = vsel %vm886, %v5000, 0.0
    %5008 = vadd.xlane.f32.xlu0 %v5007
    %v5009 = vpop.xlane.xlu0 %5008
    %v5010 = vsel %vm886, %v5002, 0.0
    %5011 = vadd.xlane.f32.xlu0 %v5010
    %v5012 = vpop.xlane.xlu0 %5011
    %v5013 = vsel %vm886, %v5004, 0.0
    %5014 = vadd.xlane.f32.xlu0 %v5013
    %v5015 = vpop.xlane.xlu0 %5014
    %v5016 = vsel %vm886, %v5006, 0.0
    %5017 = vadd.xlane.f32.xlu0 %v5016
    %v5018 = vpop.xlane.xlu0 %5017
    %v5019 = vrcp.pop %v5009
    %v5020 = vrcp.pop %v5012
    %v5021 = vrcp.pop %v5015
    %v5022 = vrcp.pop %v5018
    %v5023 = vmul.f32 %v5000, %v5019
    %v5024 = vmul.f32 %v5002, %v5020
    %v5025 = vmul.f32 %v5004, %v5021
    %v5026 = vmul.f32 %v5006, %v5022
    %5027 = vxpose.xlu0.b32.start [1/16] %v4535, 128
    %5028 = vxpose.xlu0.b32.cont [2/16] 0.0, 128
    %5029 = vxpose.xlu0.b32.cont [3/16] 0.0, 128
    %5030 = vxpose.xlu0.b32.cont [4/16] 0.0, 128
    %5031 = vxpose.xlu0.b32.cont [5/16] 0.0, 128
    %5032 = vxpose.xlu0.b32.cont [6/16] 0.0, 128
    %5033 = vxpose.xlu0.b32.cont [7/16] 0.0, 128
    %5034 = vxpose.xlu0.b32.cont [8/16] 0.0, 128
    %5035 = vxpose.xlu0.b32.cont [9/16] 0.0, 128
    %5036 = vxpose.xlu0.b32.cont [10/16] 0.0, 128
    %5037 = vxpose.xlu0.b32.cont [11/16] 0.0, 128
    %5038 = vxpose.xlu0.b32.cont [12/16] 0.0, 128
    %5039 = vxpose.xlu0.b32.cont [13/16] 0.0, 128
    %5040 = vxpose.xlu0.b32.cont [14/16] 0.0, 128
    %5041 = vxpose.xlu0.b32.cont [15/16] 0.0, 128
    %5042 = vxpose.xlu0.b32.end [16/16] 0.0, 128
    %v5043 = vpop.trf.xlu0
    %v5044 = vpop.trf.xlu0
    %v5045 = vpop.trf.xlu0
    %v5046 = vpop.trf.xlu0
    %v5047 = vpop.trf.xlu0
    %v5048 = vpop.trf.xlu0
    %v5049 = vpop.trf.xlu0
    %v5050 = vpop.trf.xlu0
    %v5051 = vpop.trf.xlu0
    %v5052 = vpop.trf.xlu0
    %v5053 = vpop.trf.xlu0
    %v5054 = vpop.trf.xlu0
    %v5055 = vpop.trf.xlu0
    %v5056 = vpop.trf.xlu0
    %v5057 = vpop.trf.xlu0
    %v5058 = vpop.trf.xlu0
    %v5060 = vsel %vm963, %v5043, 0
    %v5063 = vsel %vm963, %v5023, 0
    %5065 = vmatprep.subr.mxu0 0.0
    %5066 = vmatpush1.xpose.msra.mxu0 %v5063
    %5067 = vmatprep.subr.mxu0 0.0
    %5068 = vmatpush1.xpose.msra.mxu0 0.0
    %5069 = vmatprep.subr.mxu0 0.0
    %5070 = vmatpush1.xpose.msra.mxu0 0.0
    %5071 = vmatprep.subr.mxu0 0.0
    %5072 = vmatpush1.xpose.msra.mxu0 0.0
    %5073 = vmatprep.subr.mxu0 0.0
    %5074 = vmatpush1.xpose.msra.mxu0 0.0
    %5075 = vmatprep.subr.mxu0 0.0
    %5076 = vmatpush1.xpose.msra.mxu0 0.0
    %5077 = vmatprep.subr.mxu0 0.0
    %5078 = vmatpush1.xpose.msra.mxu0 0.0
    %5079 = vmatprep.subr.mxu0 0.0
    %5080 = vmatpush1.xpose.msra.mxu0 0.0
    %5081 = vmatprep.subr.mxu0 0.0
    %5082 = vmatpush1.xpose.msra.mxu0 0.0
    %5083 = vmatprep.subr.mxu0 0.0
    %5084 = vmatpush1.xpose.msra.mxu0 0.0
    %5085 = vmatprep.subr.mxu0 0.0
    %5086 = vmatpush1.xpose.msra.mxu0 0.0
    %5087 = vmatprep.subr.mxu0 0.0
    %5088 = vmatpush1.xpose.msra.mxu0 0.0
    %5089 = vmatprep.subr.mxu0 0.0
    %5090 = vmatpush1.xpose.msra.mxu0 0.0
    %5091 = vmatprep.subr.mxu0 0.0
    %5092 = vmatpush1.xpose.msra.mxu0 0.0
    %5093 = vmatprep.subr.mxu0 0.0
    %5094 = vmatpush1.xpose.msra.mxu0 0.0
    %5095 = vmatprep.subr.mxu0 0.0
    %5096 = vmatpush1.xpose.msra.mxu0 0.0
    %5097 = vmatprep.subr.mxu0 0.0
    %5098 = vmatpush1.xpose.msra.mxu0 0.0
    %5099 = vmatprep.subr.mxu0 0.0
    %5100 = vmatpush1.xpose.msra.mxu0 0.0
    %5101 = vmatprep.subr.mxu0 0.0
    %5102 = vmatpush1.xpose.msra.mxu0 0.0
    %5103 = vmatprep.subr.mxu0 0.0
    %5104 = vmatpush1.xpose.msra.mxu0 0.0
    %5105 = vmatprep.subr.mxu0 0.0
    %5106 = vmatpush1.xpose.msra.mxu0 0.0
    %5107 = vmatprep.subr.mxu0 0.0
    %5108 = vmatpush1.xpose.msra.mxu0 0.0
    %5109 = vmatprep.subr.mxu0 0.0
    %5110 = vmatpush1.xpose.msra.mxu0 0.0
    %5111 = vmatprep.subr.mxu0 0.0
    %5112 = vmatpush1.xpose.msra.mxu0 0.0
    %5113 = vmatprep.subr.mxu0 0.0
    %5114 = vmatpush1.xpose.msra.mxu0 0.0
    %5115 = vmatprep.subr.mxu0 0.0
    %5116 = vmatpush1.xpose.msra.mxu0 0.0
    %5117 = vmatprep.subr.mxu0 0.0
    %5118 = vmatpush1.xpose.msra.mxu0 0.0
    %5119 = vmatprep.subr.mxu0 0.0
    %5120 = vmatpush1.xpose.msra.mxu0 0.0
    %5121 = vmatprep.subr.mxu0 0.0
    %5122 = vmatpush1.xpose.msra.mxu0 0.0
    %5123 = vmatprep.subr.mxu0 0.0
    %5124 = vmatpush1.xpose.msra.mxu0 0.0
    %5125 = vmatprep.subr.mxu0 0.0
    %5126 = vmatpush1.xpose.msra.mxu0 0.0
    %5127 = vmatprep.subr.mxu0 0.0
    %5128 = vmatpush1.xpose.msra.mxu0 0.0
    %5129 = vmatprep.mubr.f32.mxu0 0.0
    %5130 = vmatmul.mubr.f32.gmra.mrb[0].mxu0 %v5060
    %v5131 = vpop.f32.mrb[0].mxu0
    %v5132 = vadd.f32 0.0, %v5131
    %v5133 = vpop.f32.mrb[0].mxu0
    %5134 = vdwg.mxu0
    %5135 = vxpose.xlu0.b32.start [1/16] %v4543, 128
    %5136 = vxpose.xlu0.b32.cont [2/16] 0.0, 128
    %5137 = vxpose.xlu0.b32.cont [3/16] 0.0, 128
    %5138 = vxpose.xlu0.b32.cont [4/16] 0.0, 128
    %5139 = vxpose.xlu0.b32.cont [5/16] 0.0, 128
    %5140 = vxpose.xlu0.b32.cont [6/16] 0.0, 128
    %5141 = vxpose.xlu0.b32.cont [7/16] 0.0, 128
    %5142 = vxpose.xlu0.b32.cont [8/16] 0.0, 128
    %5143 = vxpose.xlu0.b32.cont [9/16] 0.0, 128
    %5144 = vxpose.xlu0.b32.cont [10/16] 0.0, 128
    %5145 = vxpose.xlu0.b32.cont [11/16] 0.0, 128
    %5146 = vxpose.xlu0.b32.cont [12/16] 0.0, 128
    %5147 = vxpose.xlu0.b32.cont [13/16] 0.0, 128
    %5148 = vxpose.xlu0.b32.cont [14/16] 0.0, 128
    %5149 = vxpose.xlu0.b32.cont [15/16] 0.0, 128
    %5150 = vxpose.xlu0.b32.end [16/16] 0.0, 128
    %v5151 = vpop.trf.xlu0
    %v5152 = vpop.trf.xlu0
    %v5153 = vpop.trf.xlu0
    %v5154 = vpop.trf.xlu0
    %v5155 = vpop.trf.xlu0
    %v5156 = vpop.trf.xlu0
    %v5157 = vpop.trf.xlu0
    %v5158 = vpop.trf.xlu0
    %v5159 = vpop.trf.xlu0
    %v5160 = vpop.trf.xlu0
    %v5161 = vpop.trf.xlu0
    %v5162 = vpop.trf.xlu0
    %v5163 = vpop.trf.xlu0
    %v5164 = vpop.trf.xlu0
    %v5165 = vpop.trf.xlu0
    %v5166 = vpop.trf.xlu0
    %v5168 = vsel %vm963, %v5151, 0
    %v5171 = vsel %vm963, %v5024, 0
    %5173 = vmatprep.subr.mxu0 0.0
    %5174 = vmatpush1.xpose.msra.mxu0 %v5171
    %5175 = vmatprep.subr.mxu0 0.0
    %5176 = vmatpush1.xpose.msra.mxu0 0.0
    %5177 = vmatprep.subr.mxu0 0.0
    %5178 = vmatpush1.xpose.msra.mxu0 0.0
    %5179 = vmatprep.subr.mxu0 0.0
    %5180 = vmatpush1.xpose.msra.mxu0 0.0
    %5181 = vmatprep.subr.mxu0 0.0
    %5182 = vmatpush1.xpose.msra.mxu0 0.0
    %5183 = vmatprep.subr.mxu0 0.0
    %5184 = vmatpush1.xpose.msra.mxu0 0.0
    %5185 = vmatprep.subr.mxu0 0.0
    %5186 = vmatpush1.xpose.msra.mxu0 0.0
    %5187 = vmatprep.subr.mxu0 0.0
    %5188 = vmatpush1.xpose.msra.mxu0 0.0
    %5189 = vmatprep.subr.mxu0 0.0
    %5190 = vmatpush1.xpose.msra.mxu0 0.0
    %5191 = vmatprep.subr.mxu0 0.0
    %5192 = vmatpush1.xpose.msra.mxu0 0.0
    %5193 = vmatprep.subr.mxu0 0.0
    %5194 = vmatpush1.xpose.msra.mxu0 0.0
    %5195 = vmatprep.subr.mxu0 0.0
    %5196 = vmatpush1.xpose.msra.mxu0 0.0
    %5197 = vmatprep.subr.mxu0 0.0
    %5198 = vmatpush1.xpose.msra.mxu0 0.0
    %5199 = vmatprep.subr.mxu0 0.0
    %5200 = vmatpush1.xpose.msra.mxu0 0.0
    %5201 = vmatprep.subr.mxu0 0.0
    %5202 = vmatpush1.xpose.msra.mxu0 0.0
    %5203 = vmatprep.subr.mxu0 0.0
    %5204 = vmatpush1.xpose.msra.mxu0 0.0
    %5205 = vmatprep.subr.mxu0 0.0
    %5206 = vmatpush1.xpose.msra.mxu0 0.0
    %5207 = vmatprep.subr.mxu0 0.0
    %5208 = vmatpush1.xpose.msra.mxu0 0.0
    %5209 = vmatprep.subr.mxu0 0.0
    %5210 = vmatpush1.xpose.msra.mxu0 0.0
    %5211 = vmatprep.subr.mxu0 0.0
    %5212 = vmatpush1.xpose.msra.mxu0 0.0
    %5213 = vmatprep.subr.mxu0 0.0
    %5214 = vmatpush1.xpose.msra.mxu0 0.0
    %5215 = vmatprep.subr.mxu0 0.0
    %5216 = vmatpush1.xpose.msra.mxu0 0.0
    %5217 = vmatprep.subr.mxu0 0.0
    %5218 = vmatpush1.xpose.msra.mxu0 0.0
    %5219 = vmatprep.subr.mxu0 0.0
    %5220 = vmatpush1.xpose.msra.mxu0 0.0
    %5221 = vmatprep.subr.mxu0 0.0
    %5222 = vmatpush1.xpose.msra.mxu0 0.0
    %5223 = vmatprep.subr.mxu0 0.0
    %5224 = vmatpush1.xpose.msra.mxu0 0.0
    %5225 = vmatprep.subr.mxu0 0.0
    %5226 = vmatpush1.xpose.msra.mxu0 0.0
    %5227 = vmatprep.subr.mxu0 0.0
    %5228 = vmatpush1.xpose.msra.mxu0 0.0
    %5229 = vmatprep.subr.mxu0 0.0
    %5230 = vmatpush1.xpose.msra.mxu0 0.0
    %5231 = vmatprep.subr.mxu0 0.0
    %5232 = vmatpush1.xpose.msra.mxu0 0.0
    %5233 = vmatprep.subr.mxu0 0.0
    %5234 = vmatpush1.xpose.msra.mxu0 0.0
    %5235 = vmatprep.subr.mxu0 0.0
    %5236 = vmatpush1.xpose.msra.mxu0 0.0
    %5237 = vmatprep.mubr.f32.mxu0 0.0
    %5238 = vmatmul.mubr.f32.gmra.mrb[0].mxu0 %v5168
    %v5239 = vpop.f32.mrb[0].mxu0
    %v5240 = vadd.f32 0.0, %v5239
    %v5241 = vpop.f32.mrb[0].mxu0
    %5242 = vdwg.mxu0
    %5243 = vxpose.xlu0.b32.start [1/16] %v4542, 128
    %5244 = vxpose.xlu0.b32.cont [2/16] 0.0, 128
    %5245 = vxpose.xlu0.b32.cont [3/16] 0.0, 128
    %5246 = vxpose.xlu0.b32.cont [4/16] 0.0, 128
    %5247 = vxpose.xlu0.b32.cont [5/16] 0.0, 128
    %5248 = vxpose.xlu0.b32.cont [6/16] 0.0, 128
    %5249 = vxpose.xlu0.b32.cont [7/16] 0.0, 128
    %5250 = vxpose.xlu0.b32.cont [8/16] 0.0, 128
    %5251 = vxpose.xlu0.b32.cont [9/16] 0.0, 128
    %5252 = vxpose.xlu0.b32.cont [10/16] 0.0, 128
    %5253 = vxpose.xlu0.b32.cont [11/16] 0.0, 128
    %5254 = vxpose.xlu0.b32.cont [12/16] 0.0, 128
    %5255 = vxpose.xlu0.b32.cont [13/16] 0.0, 128
    %5256 = vxpose.xlu0.b32.cont [14/16] 0.0, 128
    %5257 = vxpose.xlu0.b32.cont [15/16] 0.0, 128
    %5258 = vxpose.xlu0.b32.end [16/16] 0.0, 128
    %v5259 = vpop.trf.xlu0
    %v5260 = vpop.trf.xlu0
    %v5261 = vpop.trf.xlu0
    %v5262 = vpop.trf.xlu0
    %v5263 = vpop.trf.xlu0
    %v5264 = vpop.trf.xlu0
    %v5265 = vpop.trf.xlu0
    %v5266 = vpop.trf.xlu0
    %v5267 = vpop.trf.xlu0
    %v5268 = vpop.trf.xlu0
    %v5269 = vpop.trf.xlu0
    %v5270 = vpop.trf.xlu0
    %v5271 = vpop.trf.xlu0
    %v5272 = vpop.trf.xlu0
    %v5273 = vpop.trf.xlu0
    %v5274 = vpop.trf.xlu0
    %v5276 = vsel %vm963, %v5259, 0
    %v5279 = vsel %vm963, %v5025, 0
    %5281 = vmatprep.subr.mxu0 0.0
    %5282 = vmatpush1.xpose.msra.mxu0 %v5279
    %5283 = vmatprep.subr.mxu0 0.0
    %5284 = vmatpush1.xpose.msra.mxu0 0.0
    %5285 = vmatprep.subr.mxu0 0.0
    %5286 = vmatpush1.xpose.msra.mxu0 0.0
    %5287 = vmatprep.subr.mxu0 0.0
    %5288 = vmatpush1.xpose.msra.mxu0 0.0
    %5289 = vmatprep.subr.mxu0 0.0
    %5290 = vmatpush1.xpose.msra.mxu0 0.0
    %5291 = vmatprep.subr.mxu0 0.0
    %5292 = vmatpush1.xpose.msra.mxu0 0.0
    %5293 = vmatprep.subr.mxu0 0.0
    %5294 = vmatpush1.xpose.msra.mxu0 0.0
    %5295 = vmatprep.subr.mxu0 0.0
    %5296 = vmatpush1.xpose.msra.mxu0 0.0
    %5297 = vmatprep.subr.mxu0 0.0
    %5298 = vmatpush1.xpose.msra.mxu0 0.0
    %5299 = vmatprep.subr.mxu0 0.0
    %5300 = vmatpush1.xpose.msra.mxu0 0.0
    %5301 = vmatprep.subr.mxu0 0.0
    %5302 = vmatpush1.xpose.msra.mxu0 0.0
    %5303 = vmatprep.subr.mxu0 0.0
    %5304 = vmatpush1.xpose.msra.mxu0 0.0
    %5305 = vmatprep.subr.mxu0 0.0
    %5306 = vmatpush1.xpose.msra.mxu0 0.0
    %5307 = vmatprep.subr.mxu0 0.0
    %5308 = vmatpush1.xpose.msra.mxu0 0.0
    %5309 = vmatprep.subr.mxu0 0.0
    %5310 = vmatpush1.xpose.msra.mxu0 0.0
    %5311 = vmatprep.subr.mxu0 0.0
    %5312 = vmatpush1.xpose.msra.mxu0 0.0
    %5313 = vmatprep.subr.mxu0 0.0
    %5314 = vmatpush1.xpose.msra.mxu0 0.0
    %5315 = vmatprep.subr.mxu0 0.0
    %5316 = vmatpush1.xpose.msra.mxu0 0.0
    %5317 = vmatprep.subr.mxu0 0.0
    %5318 = vmatpush1.xpose.msra.mxu0 0.0
    %5319 = vmatprep.subr.mxu0 0.0
    %5320 = vmatpush1.xpose.msra.mxu0 0.0
    %5321 = vmatprep.subr.mxu0 0.0
    %5322 = vmatpush1.xpose.msra.mxu0 0.0
    %5323 = vmatprep.subr.mxu0 0.0
    %5324 = vmatpush1.xpose.msra.mxu0 0.0
    %5325 = vmatprep.subr.mxu0 0.0
    %5326 = vmatpush1.xpose.msra.mxu0 0.0
    %5327 = vmatprep.subr.mxu0 0.0
    %5328 = vmatpush1.xpose.msra.mxu0 0.0
    %5329 = vmatprep.subr.mxu0 0.0
    %5330 = vmatpush1.xpose.msra.mxu0 0.0
    %5331 = vmatprep.subr.mxu0 0.0
    %5332 = vmatpush1.xpose.msra.mxu0 0.0
    %5333 = vmatprep.subr.mxu0 0.0
    %5334 = vmatpush1.xpose.msra.mxu0 0.0
    %5335 = vmatprep.subr.mxu0 0.0
    %5336 = vmatpush1.xpose.msra.mxu0 0.0
    %5337 = vmatprep.subr.mxu0 0.0
    %5338 = vmatpush1.xpose.msra.mxu0 0.0
    %5339 = vmatprep.subr.mxu0 0.0
    %5340 = vmatpush1.xpose.msra.mxu0 0.0
    %5341 = vmatprep.subr.mxu0 0.0
    %5342 = vmatpush1.xpose.msra.mxu0 0.0
    %5343 = vmatprep.subr.mxu0 0.0
    %5344 = vmatpush1.xpose.msra.mxu0 0.0
    %5345 = vmatprep.mubr.f32.mxu0 0.0
    %5346 = vmatmul.mubr.f32.gmra.mrb[0].mxu0 %v5276
    %v5347 = vpop.f32.mrb[0].mxu0
    %v5348 = vadd.f32 0.0, %v5347
    %v5349 = vpop.f32.mrb[0].mxu0
    %5350 = vdwg.mxu0
    %5351 = vxpose.xlu0.b32.start [1/16] %v4544, 128
    %5352 = vxpose.xlu0.b32.cont [2/16] 0.0, 128
    %5353 = vxpose.xlu0.b32.cont [3/16] 0.0, 128
    %5354 = vxpose.xlu0.b32.cont [4/16] 0.0, 128
    %5355 = vxpose.xlu0.b32.cont [5/16] 0.0, 128
    %5356 = vxpose.xlu0.b32.cont [6/16] 0.0, 128
    %5357 = vxpose.xlu0.b32.cont [7/16] 0.0, 128
    %5358 = vxpose.xlu0.b32.cont [8/16] 0.0, 128
    %5359 = vxpose.xlu0.b32.cont [9/16] 0.0, 128
    %5360 = vxpose.xlu0.b32.cont [10/16] 0.0, 128
    %5361 = vxpose.xlu0.b32.cont [11/16] 0.0, 128
    %5362 = vxpose.xlu0.b32.cont [12/16] 0.0, 128
    %5363 = vxpose.xlu0.b32.cont [13/16] 0.0, 128
    %5364 = vxpose.xlu0.b32.cont [14/16] 0.0, 128
    %5365 = vxpose.xlu0.b32.cont [15/16] 0.0, 128
    %5366 = vxpose.xlu0.b32.end [16/16] 0.0, 128
    %v5367 = vpop.trf.xlu0
    %v5368 = vpop.trf.xlu0
    %v5369 = vpop.trf.xlu0
    %v5370 = vpop.trf.xlu0
    %v5371 = vpop.trf.xlu0
    %v5372 = vpop.trf.xlu0
    %v5373 = vpop.trf.xlu0
    %v5374 = vpop.trf.xlu0
    %v5375 = vpop.trf.xlu0
    %v5376 = vpop.trf.xlu0
    %v5377 = vpop.trf.xlu0
    %v5378 = vpop.trf.xlu0
    %v5379 = vpop.trf.xlu0
    %v5380 = vpop.trf.xlu0
    %v5381 = vpop.trf.xlu0
    %v5382 = vpop.trf.xlu0
    %v5384 = vsel %vm963, %v5367, 0
    %v5387 = vsel %vm963, %v5026, 0
    %5389 = vmatprep.subr.mxu0 0.0
    %5390 = vmatpush1.xpose.msra.mxu0 %v5387
    %5391 = vmatprep.subr.mxu0 0.0
    %5392 = vmatpush1.xpose.msra.mxu0 0.0
    %5393 = vmatprep.subr.mxu0 0.0
    %5394 = vmatpush1.xpose.msra.mxu0 0.0
    %5395 = vmatprep.subr.mxu0 0.0
    %5396 = vmatpush1.xpose.msra.mxu0 0.0
    %5397 = vmatprep.subr.mxu0 0.0
    %5398 = vmatpush1.xpose.msra.mxu0 0.0
    %5399 = vmatprep.subr.mxu0 0.0
    %5400 = vmatpush1.xpose.msra.mxu0 0.0
    %5401 = vmatprep.subr.mxu0 0.0
    %5402 = vmatpush1.xpose.msra.mxu0 0.0
    %5403 = vmatprep.subr.mxu0 0.0
    %5404 = vmatpush1.xpose.msra.mxu0 0.0
    %5405 = vmatprep.subr.mxu0 0.0
    %5406 = vmatpush1.xpose.msra.mxu0 0.0
    %5407 = vmatprep.subr.mxu0 0.0
    %5408 = vmatpush1.xpose.msra.mxu0 0.0
    %5409 = vmatprep.subr.mxu0 0.0
    %5410 = vmatpush1.xpose.msra.mxu0 0.0
    %5411 = vmatprep.subr.mxu0 0.0
    %5412 = vmatpush1.xpose.msra.mxu0 0.0
    %5413 = vmatprep.subr.mxu0 0.0
    %5414 = vmatpush1.xpose.msra.mxu0 0.0
    %5415 = vmatprep.subr.mxu0 0.0
    %5416 = vmatpush1.xpose.msra.mxu0 0.0
    %5417 = vmatprep.subr.mxu0 0.0
    %5418 = vmatpush1.xpose.msra.mxu0 0.0
    %5419 = vmatprep.subr.mxu0 0.0
    %5420 = vmatpush1.xpose.msra.mxu0 0.0
    %5421 = vmatprep.subr.mxu0 0.0
    %5422 = vmatpush1.xpose.msra.mxu0 0.0
    %5423 = vmatprep.subr.mxu0 0.0
    %5424 = vmatpush1.xpose.msra.mxu0 0.0
    %5425 = vmatprep.subr.mxu0 0.0
    %5426 = vmatpush1.xpose.msra.mxu0 0.0
    %5427 = vmatprep.subr.mxu0 0.0
    %5428 = vmatpush1.xpose.msra.mxu0 0.0
    %5429 = vmatprep.subr.mxu0 0.0
    %5430 = vmatpush1.xpose.msra.mxu0 0.0
    %5431 = vmatprep.subr.mxu0 0.0
    %5432 = vmatpush1.xpose.msra.mxu0 0.0
    %5433 = vmatprep.subr.mxu0 0.0
    %5434 = vmatpush1.xpose.msra.mxu0 0.0
    %5435 = vmatprep.subr.mxu0 0.0
    %5436 = vmatpush1.xpose.msra.mxu0 0.0
    %5437 = vmatprep.subr.mxu0 0.0
    %5438 = vmatpush1.xpose.msra.mxu0 0.0
    %5439 = vmatprep.subr.mxu0 0.0
    %5440 = vmatpush1.xpose.msra.mxu0 0.0
    %5441 = vmatprep.subr.mxu0 0.0
    %5442 = vmatpush1.xpose.msra.mxu0 0.0
    %5443 = vmatprep.subr.mxu0 0.0
    %5444 = vmatpush1.xpose.msra.mxu0 0.0
    %5445 = vmatprep.subr.mxu0 0.0
    %5446 = vmatpush1.xpose.msra.mxu0 0.0
    %5447 = vmatprep.subr.mxu0 0.0
    %5448 = vmatpush1.xpose.msra.mxu0 0.0
    %5449 = vmatprep.subr.mxu0 0.0
    %5450 = vmatpush1.xpose.msra.mxu0 0.0
    %5451 = vmatprep.subr.mxu0 0.0
    %5452 = vmatpush1.xpose.msra.mxu0 0.0
    %5453 = vmatprep.mubr.f32.mxu0 0.0
    %5454 = vmatmul.mubr.f32.gmra.mrb[0].mxu0 %v5384
    %v5455 = vpop.f32.mrb[0].mxu0
    %v5456 = vadd.f32 0.0, %v5455
    %v5457 = vpop.f32.mrb[0].mxu0
    %5458 = vdwg.mxu0
    %5459 = vxpose.xlu0.b32.start [1/16] %v5132, 128
    %5460 = vxpose.xlu0.b32.cont [2/16] 0.0, 128
    %5461 = vxpose.xlu0.b32.cont [3/16] 0.0, 128
    %5462 = vxpose.xlu0.b32.cont [4/16] 0.0, 128
    %5463 = vxpose.xlu0.b32.cont [5/16] 0.0, 128
    %5464 = vxpose.xlu0.b32.cont [6/16] 0.0, 128
    %5465 = vxpose.xlu0.b32.cont [7/16] 0.0, 128
    %5466 = vxpose.xlu0.b32.cont [8/16] 0.0, 128
    %5467 = vxpose.xlu0.b32.cont [9/16] 0.0, 128
    %5468 = vxpose.xlu0.b32.cont [10/16] 0.0, 128
    %5469 = vxpose.xlu0.b32.cont [11/16] 0.0, 128
    %5470 = vxpose.xlu0.b32.cont [12/16] 0.0, 128
    %5471 = vxpose.xlu0.b32.cont [13/16] 0.0, 128
    %5472 = vxpose.xlu0.b32.cont [14/16] 0.0, 128
    %5473 = vxpose.xlu0.b32.cont [15/16] 0.0, 128
    %5474 = vxpose.xlu0.b32.end [16/16] 0.0, 128
    %v5475 = vpop.trf.xlu0
    %v5476 = vpop.trf.xlu0
    %v5477 = vpop.trf.xlu0
    %v5478 = vpop.trf.xlu0
    %v5479 = vpop.trf.xlu0
    %v5480 = vpop.trf.xlu0
    %v5481 = vpop.trf.xlu0
    %v5482 = vpop.trf.xlu0
    %v5483 = vpop.trf.xlu0
    %v5484 = vpop.trf.xlu0
    %v5485 = vpop.trf.xlu0
    %v5486 = vpop.trf.xlu0
    %v5487 = vpop.trf.xlu0
    %v5488 = vpop.trf.xlu0
    %v5489 = vpop.trf.xlu0
    %v5490 = vpop.trf.xlu0
    %5491 = vxpose.xlu0.b32.start [1/16] %v5240, 128
    %5492 = vxpose.xlu0.b32.cont [2/16] 0.0, 128
    %5493 = vxpose.xlu0.b32.cont [3/16] 0.0, 128
    %5494 = vxpose.xlu0.b32.cont [4/16] 0.0, 128
    %5495 = vxpose.xlu0.b32.cont [5/16] 0.0, 128
    %5496 = vxpose.xlu0.b32.cont [6/16] 0.0, 128
    %5497 = vxpose.xlu0.b32.cont [7/16] 0.0, 128
    %5498 = vxpose.xlu0.b32.cont [8/16] 0.0, 128
    %5499 = vxpose.xlu0.b32.cont [9/16] 0.0, 128
    %5500 = vxpose.xlu0.b32.cont [10/16] 0.0, 128
    %5501 = vxpose.xlu0.b32.cont [11/16] 0.0, 128
    %5502 = vxpose.xlu0.b32.cont [12/16] 0.0, 128
    %5503 = vxpose.xlu0.b32.cont [13/16] 0.0, 128
    %5504 = vxpose.xlu0.b32.cont [14/16] 0.0, 128
    %5505 = vxpose.xlu0.b32.cont [15/16] 0.0, 128
    %5506 = vxpose.xlu0.b32.end [16/16] 0.0, 128
    %v5507 = vpop.trf.xlu0
    %v5508 = vpop.trf.xlu0
    %v5509 = vpop.trf.xlu0
    %v5510 = vpop.trf.xlu0
    %v5511 = vpop.trf.xlu0
    %v5512 = vpop.trf.xlu0
    %v5513 = vpop.trf.xlu0
    %v5514 = vpop.trf.xlu0
    %v5515 = vpop.trf.xlu0
    %v5516 = vpop.trf.xlu0
    %v5517 = vpop.trf.xlu0
    %v5518 = vpop.trf.xlu0
    %v5519 = vpop.trf.xlu0
    %v5520 = vpop.trf.xlu0
    %v5521 = vpop.trf.xlu0
    %v5522 = vpop.trf.xlu0
    %5523 = vxpose.xlu0.b32.start [1/16] %v5348, 128
    %5524 = vxpose.xlu0.b32.cont [2/16] 0.0, 128
    %5525 = vxpose.xlu0.b32.cont [3/16] 0.0, 128
    %5526 = vxpose.xlu0.b32.cont [4/16] 0.0, 128
    %5527 = vxpose.xlu0.b32.cont [5/16] 0.0, 128
    %5528 = vxpose.xlu0.b32.cont [6/16] 0.0, 128
    %5529 = vxpose.xlu0.b32.cont [7/16] 0.0, 128
    %5530 = vxpose.xlu0.b32.cont [8/16] 0.0, 128
    %5531 = vxpose.xlu0.b32.cont [9/16] 0.0, 128
    %5532 = vxpose.xlu0.b32.cont [10/16] 0.0, 128
    %5533 = vxpose.xlu0.b32.cont [11/16] 0.0, 128
    %5534 = vxpose.xlu0.b32.cont [12/16] 0.0, 128
    %5535 = vxpose.xlu0.b32.cont [13/16] 0.0, 128
    %5536 = vxpose.xlu0.b32.cont [14/16] 0.0, 128
    %5537 = vxpose.xlu0.b32.cont [15/16] 0.0, 128
    %5538 = vxpose.xlu0.b32.end [16/16] 0.0, 128
    %v5539 = vpop.trf.xlu0
    %v5540 = vpop.trf.xlu0
    %v5541 = vpop.trf.xlu0
    %v5542 = vpop.trf.xlu0
    %v5543 = vpop.trf.xlu0
    %v5544 = vpop.trf.xlu0
    %v5545 = vpop.trf.xlu0
    %v5546 = vpop.trf.xlu0
    %v5547 = vpop.trf.xlu0
    %v5548 = vpop.trf.xlu0
    %v5549 = vpop.trf.xlu0
    %v5550 = vpop.trf.xlu0
    %v5551 = vpop.trf.xlu0
    %v5552 = vpop.trf.xlu0
    %v5553 = vpop.trf.xlu0
    %v5554 = vpop.trf.xlu0
    %5555 = vxpose.xlu0.b32.start [1/16] %v5456, 128
    %5556 = vxpose.xlu0.b32.cont [2/16] 0.0, 128
    %5557 = vxpose.xlu0.b32.cont [3/16] 0.0, 128
    %5558 = vxpose.xlu0.b32.cont [4/16] 0.0, 128
    %5559 = vxpose.xlu0.b32.cont [5/16] 0.0, 128
    %5560 = vxpose.xlu0.b32.cont [6/16] 0.0, 128
    %5561 = vxpose.xlu0.b32.cont [7/16] 0.0, 128
    %5562 = vxpose.xlu0.b32.cont [8/16] 0.0, 128
    %5563 = vxpose.xlu0.b32.cont [9/16] 0.0, 128
    %5564 = vxpose.xlu0.b32.cont [10/16] 0.0, 128
    %5565 = vxpose.xlu0.b32.cont [11/16] 0.0, 128
    %5566 = vxpose.xlu0.b32.cont [12/16] 0.0, 128
    %5567 = vxpose.xlu0.b32.cont [13/16] 0.0, 128
    %5568 = vxpose.xlu0.b32.cont [14/16] 0.0, 128
    %5569 = vxpose.xlu0.b32.cont [15/16] 0.0, 128
    %5570 = vxpose.xlu0.b32.end [16/16] 0.0, 128
    %v5571 = vpop.trf.xlu0
    %v5572 = vpop.trf.xlu0
    %v5573 = vpop.trf.xlu0
    %v5574 = vpop.trf.xlu0
    %v5575 = vpop.trf.xlu0
    %v5576 = vpop.trf.xlu0
    %v5577 = vpop.trf.xlu0
    %v5578 = vpop.trf.xlu0
    %v5579 = vpop.trf.xlu0
    %v5580 = vpop.trf.xlu0
    %v5581 = vpop.trf.xlu0
    %v5582 = vpop.trf.xlu0
    %v5583 = vpop.trf.xlu0
    %v5584 = vpop.trf.xlu0
    %v5585 = vpop.trf.xlu0
    %v5586 = vpop.trf.xlu0
    %v5587 = vcombine.low %v5475, %v5539
    %v5589 = vunpack.c.l.s4 1983009808
    %v5590 = vunpack.c.0.s8 %v5589
    %v5591 = vlaneseq
    %v5592 = vshrl.u32 %v5591, 7
    %v5593 = vsub.s32 %v5590, %v5592
    %v5594 = vrot.slane %v5587, %v5593
    %v5595 = vcombine.low %v5507, %v5571
    %v5597 = vunpack.c.l.s4 1983009808
    %v5598 = vunpack.c.0.s8 %v5597
    %v5599 = vlaneseq
    %v5600 = vshrl.u32 %v5599, 7
    %v5601 = vsub.s32 %v5598, %v5600
    %v5602 = vrot.slane %v5595, %v5601
    %v5603 = vcombine.low %v5594, %v5602
    %v5604 = vcombine.high %v5594, %v5602
    %v5606 = vunpack.c.l.s4 1934713408
    %v5607 = vunpack.c.0.s8 %v5606
    %v5608 = vlaneseq
    %v5609 = vshrl.u32 %v5608, 7
    %v5610 = vsub.s32 %v5607, %v5609
    %v5611 = vrot.slane %v5603, %v5610
    %v5613 = vunpack.c.l.s4 1934713408
    %v5614 = vunpack.c.0.s8 %v5613
    %v5615 = vlaneseq
    %v5616 = vshrl.u32 %v5615, 7
    %v5617 = vsub.s32 %v5614, %v5616
    %v5618 = vrot.slane %v5604, %v5617
    %v5619 = vcombine.high %v5611, 0.0
    %v5620 = vcombine.high %v5618, 0.0
    %v5621 = vcombine.low %v5611, %v5618
    %v5623 = vunpack.c.l.s4 1983009808
    %v5624 = vunpack.c.0.s8 %v5623
    %v5625 = vlaneseq
    %v5626 = vshrl.u32 %v5625, 7
    %v5627 = vsub.s32 %v5624, %v5626
    %v5628 = vrot.slane %v5621, %v5627
    %v5629 = vcombine.low %v5619, %v5620
    %v5631 = vunpack.c.l.s4 1983009808
    %v5632 = vunpack.c.0.s8 %v5631
    %v5633 = vlaneseq
    %v5634 = vshrl.u32 %v5633, 7
    %v5635 = vsub.s32 %v5632, %v5634
    %v5636 = vrot.slane %v5629, %v5635
    %v5637 = vcombine.low %v5628, %v5636
    %v5638 = vcombine.high %v5628, %v5636
    %v5640 = vunpack.c.l.s4 1934713408
    %v5641 = vunpack.c.0.s8 %v5640
    %v5642 = vlaneseq
    %v5643 = vshrl.u32 %v5642, 7
    %v5644 = vsub.s32 %v5641, %v5643
    %v5645 = vrot.slane %v5637, %v5644
    %v5647 = vunpack.c.l.s4 1934713408
    %v5648 = vunpack.c.0.s8 %v5647
    %v5649 = vlaneseq
    %v5650 = vshrl.u32 %v5649, 7
    %v5651 = vsub.s32 %v5648, %v5650
    %v5652 = vrot.slane %v5638, %v5651
    %v5653 = vcombine.high %v5645, 0.0
    %v5654 = vcombine.high %v5652, 0.0
    %5656 = vrot.lane.b32.xlu0 %v5653, 8
    %v5657 = vpop.permute.xlu0 %5656
    %5660 = vrot.lane.b32.xlu0 %v5652, 16
    %v5661 = vpop.permute.xlu0 %5660
    %5664 = vrot.lane.b32.xlu0 %v5654, 24
    %v5665 = vpop.permute.xlu0 %5664
    %v5667 = vsel %vm587, %v5645, %v5657
    %v5668 = vsel %vm1573, %v5667, %v5661
    %v5669 = vsel %vm1575, %v5668, %v5665
    %v5670 = vcombine.low %v5023, %v5025
    %v5672 = vunpack.c.l.s4 1983009808
    %v5673 = vunpack.c.0.s8 %v5672
    %v5674 = vlaneseq
    %v5675 = vshrl.u32 %v5674, 7
    %v5676 = vsub.s32 %v5673, %v5675
    %v5677 = vrot.slane %v5670, %v5676
    %v5678 = vcombine.low %v5024, %v5026
    %v5680 = vunpack.c.l.s4 1983009808
    %v5681 = vunpack.c.0.s8 %v5680
    %v5682 = vlaneseq
    %v5683 = vshrl.u32 %v5682, 7
    %v5684 = vsub.s32 %v5681, %v5683
    %v5685 = vrot.slane %v5678, %v5684
    %v5686 = vcombine.low %v5677, %v5685
    %v5687 = vcombine.high %v5677, %v5685
    %v5689 = vunpack.c.l.s4 1934713408
    %v5690 = vunpack.c.0.s8 %v5689
    %v5691 = vlaneseq
    %v5692 = vshrl.u32 %v5691, 7
    %v5693 = vsub.s32 %v5690, %v5692
    %v5694 = vrot.slane %v5686, %v5693
    %v5696 = vunpack.c.l.s4 1934713408
    %v5697 = vunpack.c.0.s8 %v5696
    %v5698 = vlaneseq
    %v5699 = vshrl.u32 %v5698, 7
    %v5700 = vsub.s32 %v5697, %v5699
    %v5701 = vrot.slane %v5687, %v5700
    %v5702 = vcombine.high %v5694, 0.0
    %v5703 = vcombine.high %v5701, 0.0
    %v5704 = vcombine.low %v5694, %v5701
    %v5706 = vunpack.c.l.s4 1983009808
    %v5707 = vunpack.c.0.s8 %v5706
    %v5708 = vlaneseq
    %v5709 = vshrl.u32 %v5708, 7
    %v5710 = vsub.s32 %v5707, %v5709
    %v5711 = vrot.slane %v5704, %v5710
    %v5712 = vcombine.low %v5702, %v5703
    %v5714 = vunpack.c.l.s4 1983009808
    %v5715 = vunpack.c.0.s8 %v5714
    %v5716 = vlaneseq
    %v5717 = vshrl.u32 %v5716, 7
    %v5718 = vsub.s32 %v5715, %v5717
    %v5719 = vrot.slane %v5712, %v5718
    %v5720 = vcombine.low %v5711, %v5719
    %v5721 = vcombine.high %v5711, %v5719
    %v5723 = vunpack.c.l.s4 1934713408
    %v5724 = vunpack.c.0.s8 %v5723
    %v5725 = vlaneseq
    %v5726 = vshrl.u32 %v5725, 7
    %v5727 = vsub.s32 %v5724, %v5726
    %v5728 = vrot.slane %v5720, %v5727
    %v5730 = vunpack.c.l.s4 1934713408
    %v5731 = vunpack.c.0.s8 %v5730
    %v5732 = vlaneseq
    %v5733 = vshrl.u32 %v5732, 7
    %v5734 = vsub.s32 %v5731, %v5733
    %v5735 = vrot.slane %v5721, %v5734
    %v5736 = vcombine.high %v5728, 0.0
    %v5737 = vcombine.high %v5735, 0.0
    %5739 = vrot.lane.b32.xlu0 %v5736, 4
    %v5740 = vpop.permute.xlu0 %5739
    %5743 = vrot.lane.b32.xlu0 %v5735, 8
    %v5744 = vpop.permute.xlu0 %5743
    %5747 = vrot.lane.b32.xlu0 %v5737, 12
    %v5748 = vpop.permute.xlu0 %5747
    %v5750 = vsel %vm963, %v5728, %v5740
    %v5751 = vsel %vm587, %v5750, %v5744
    %v5752 = vsel %vm1659, %v5751, %v5748
    %v5754 = vrot.slane %v5669, 4
    %v5756 = vsel %vm2914, %v4419, %v5754
    %v5758 = vrot.slane %v5752, 4
    %v5760 = vsel %vm2914, %v4502, %v5758
    %5761 = vst.msk [vmem:[#allocation20] sm:$0xff] %vm1573, %v5760
    %v5762 = vld [vmem:[#allocation14] sm:$0xff]
    %v5763 = vld [vmem:[#allocation14 + $0x8] sm:$0xff]
    %v5764 = vld [vmem:[#allocation14 + $0x10] sm:$0xff]
    %v5765 = vld [vmem:[#allocation14 + $0x18] sm:$0xff]
    %v5767 = vsel %vm176, %v5756, 0
    %5769 = vmatprep.subr.mxu0 0.0
    %5770 = vmatpush1.msra.mxu0 %v5762
    %5771 = vmatprep.subr.mxu0 0.0
    %5772 = vmatpush1.msra.mxu0 %v5763
    %5773 = vmatprep.subr.mxu0 0.0
    %5774 = vmatpush1.msra.mxu0 %v5764
    %5775 = vmatprep.subr.mxu0 0.0
    %5776 = vmatpush1.msra.mxu0 %v5765
    %5777 = vmatprep.subr.mxu0 0.0
    %5778 = vmatpush1.msra.mxu0 0.0
    %5779 = vmatprep.subr.mxu0 0.0
    %5780 = vmatpush1.msra.mxu0 0.0
    %5781 = vmatprep.subr.mxu0 0.0
    %5782 = vmatpush1.msra.mxu0 0.0
    %5783 = vmatprep.subr.mxu0 0.0
    %5784 = vmatpush1.msra.mxu0 0.0
    %5785 = vmatprep.subr.mxu0 0.0
    %5786 = vmatpush1.msra.mxu0 0.0
    %5787 = vmatprep.subr.mxu0 0.0
    %5788 = vmatpush1.msra.mxu0 0.0
    %5789 = vmatprep.subr.mxu0 0.0
    %5790 = vmatpush1.msra.mxu0 0.0
    %5791 = vmatprep.subr.mxu0 0.0
    %5792 = vmatpush1.msra.mxu0 0.0
    %5793 = vmatprep.subr.mxu0 0.0
    %5794 = vmatpush1.msra.mxu0 0.0
    %5795 = vmatprep.subr.mxu0 0.0
    %5796 = vmatpush1.msra.mxu0 0.0
    %5797 = vmatprep.subr.mxu0 0.0
    %5798 = vmatpush1.msra.mxu0 0.0
    %5799 = vmatprep.subr.mxu0 0.0
    %5800 = vmatpush1.msra.mxu0 0.0
    %5801 = vmatprep.subr.mxu0 0.0
    %5802 = vmatpush1.msra.mxu0 0.0
    %5803 = vmatprep.subr.mxu0 0.0
    %5804 = vmatpush1.msra.mxu0 0.0
    %5805 = vmatprep.subr.mxu0 0.0
    %5806 = vmatpush1.msra.mxu0 0.0
    %5807 = vmatprep.subr.mxu0 0.0
    %5808 = vmatpush1.msra.mxu0 0.0
    %5809 = vmatprep.subr.mxu0 0.0
    %5810 = vmatpush1.msra.mxu0 0.0
    %5811 = vmatprep.subr.mxu0 0.0
    %5812 = vmatpush1.msra.mxu0 0.0
    %5813 = vmatprep.subr.mxu0 0.0
    %5814 = vmatpush1.msra.mxu0 0.0
    %5815 = vmatprep.subr.mxu0 0.0
    %5816 = vmatpush1.msra.mxu0 0.0
    %5817 = vmatprep.subr.mxu0 0.0
    %5818 = vmatpush1.msra.mxu0 0.0
    %5819 = vmatprep.subr.mxu0 0.0
    %5820 = vmatpush1.msra.mxu0 0.0
    %5821 = vmatprep.subr.mxu0 0.0
    %5822 = vmatpush1.msra.mxu0 0.0
    %5823 = vmatprep.subr.mxu0 0.0
    %5824 = vmatpush1.msra.mxu0 0.0
    %5825 = vmatprep.subr.mxu0 0.0
    %5826 = vmatpush1.msra.mxu0 0.0
    %5827 = vmatprep.subr.mxu0 0.0
    %5828 = vmatpush1.msra.mxu0 0.0
    %5829 = vmatprep.subr.mxu0 0.0
    %5830 = vmatpush1.msra.mxu0 0.0
    %5831 = vmatprep.subr.mxu0 0.0
    %5832 = vmatpush1.msra.mxu0 0.0
    %5833 = vmatprep.mubr.f32.mxu0 0.0
    %5834 = vmatmul.mubr.f32.gmra.mrb[0].mxu0 %v5767
    %v5835 = vpop.f32.mrb[0].mxu0
    %v5836 = vadd.f32 %v3018, %v5835
    %v5837 = vpop.f32.mrb[0].mxu0
    %5838 = vdwg.mxu0
    %v5839 = vsel %vm176, %v5836, 0.0
    %5840 = vadd.xlane.f32.xlu0 %v5839
    %v5841 = vpop.xlane.xlu0 %5840
    %v5842 = vmul.f32 %v5841, %v3001
    %v5843 = vsub.f32 %v5836, %v5842
    %v5844 = vmul.f32 %v5843, %v5843
    %v5845 = vsel %vm176, %v5844, 0.0
    %5846 = vadd.xlane.f32.xlu0 %v5845
    %v5847 = vpop.xlane.xlu0 %5846
    %v5848 = vmul.f32 %v5847, %v3001
    %v5849 = vadd.f32 %v5848, 1e-05
    %v5850 = vrsqrt.pop %v5849
    %v5851 = vmul.f32 %v5849, %v5850
    %vm5852 = vcmp.eq.f32.partialorder %v5849, inf
    %v5853 = vsel %vm5852, %v5849, %v5851
    %vm5854 = vcmp.eq.f32.partialorder %v5849, 0.0
    %v5855 = vand.u32 %v5849, 2147483648
    %v5856 = vsel %vm5854, %v5855, %v5853
    %v5857 = vrcp.pop %v5856
    %v5858 = vmul.f32 %v5843, %v5857
    %v5859 = vld [vmem:[#allocation16] sm:$0xff]
    %v5860 = vld [vmem:[#allocation16 + $0x8] sm:$0xff]
    %v5861 = vld [vmem:[#allocation16 + $0x10] sm:$0xff]
    %v5862 = vld [vmem:[#allocation16 + $0x18] sm:$0xff]
    %v5864 = vsel %vm176, %v5858, 0
    %5866 = vmatprep.subr.mxu0 0.0
    %5867 = vmatpush1.msra.mxu0 %v5859
    %5868 = vmatprep.subr.mxu0 0.0
    %5869 = vmatpush1.msra.mxu0 %v5860
    %5870 = vmatprep.subr.mxu0 0.0
    %5871 = vmatpush1.msra.mxu0 %v5861
    %5872 = vmatprep.subr.mxu0 0.0
    %5873 = vmatpush1.msra.mxu0 %v5862
    %5874 = vmatprep.subr.mxu0 0.0
    %5875 = vmatpush1.msra.mxu0 0.0
    %5876 = vmatprep.subr.mxu0 0.0
    %5877 = vmatpush1.msra.mxu0 0.0
    %5878 = vmatprep.subr.mxu0 0.0
    %5879 = vmatpush1.msra.mxu0 0.0
    %5880 = vmatprep.subr.mxu0 0.0
    %5881 = vmatpush1.msra.mxu0 0.0
    %5882 = vmatprep.subr.mxu0 0.0
    %5883 = vmatpush1.msra.mxu0 0.0
    %5884 = vmatprep.subr.mxu0 0.0
    %5885 = vmatpush1.msra.mxu0 0.0
    %5886 = vmatprep.subr.mxu0 0.0
    %5887 = vmatpush1.msra.mxu0 0.0
    %5888 = vmatprep.subr.mxu0 0.0
    %5889 = vmatpush1.msra.mxu0 0.0
    %5890 = vmatprep.subr.mxu0 0.0
    %5891 = vmatpush1.msra.mxu0 0.0
    %5892 = vmatprep.subr.mxu0 0.0
    %5893 = vmatpush1.msra.mxu0 0.0
    %5894 = vmatprep.subr.mxu0 0.0
    %5895 = vmatpush1.msra.mxu0 0.0
    %5896 = vmatprep.subr.mxu0 0.0
    %5897 = vmatpush1.msra.mxu0 0.0
    %5898 = vmatprep.subr.mxu0 0.0
    %5899 = vmatpush1.msra.mxu0 0.0
    %5900 = vmatprep.subr.mxu0 0.0
    %5901 = vmatpush1.msra.mxu0 0.0
    %5902 = vmatprep.subr.mxu0 0.0
    %5903 = vmatpush1.msra.mxu0 0.0
    %5904 = vmatprep.subr.mxu0 0.0
    %5905 = vmatpush1.msra.mxu0 0.0
    %5906 = vmatprep.subr.mxu0 0.0
    %5907 = vmatpush1.msra.mxu0 0.0
    %5908 = vmatprep.subr.mxu0 0.0
    %5909 = vmatpush1.msra.mxu0 0.0
    %5910 = vmatprep.subr.mxu0 0.0
    %5911 = vmatpush1.msra.mxu0 0.0
    %5912 = vmatprep.subr.mxu0 0.0
    %5913 = vmatpush1.msra.mxu0 0.0
    %5914 = vmatprep.subr.mxu0 0.0
    %5915 = vmatpush1.msra.mxu0 0.0
    %5916 = vmatprep.subr.mxu0 0.0
    %5917 = vmatpush1.msra.mxu0 0.0
    %5918 = vmatprep.subr.mxu0 0.0
    %5919 = vmatpush1.msra.mxu0 0.0
    %5920 = vmatprep.subr.mxu0 0.0
    %5921 = vmatpush1.msra.mxu0 0.0
    %5922 = vmatprep.subr.mxu0 0.0
    %5923 = vmatpush1.msra.mxu0 0.0
    %5924 = vmatprep.subr.mxu0 0.0
    %5925 = vmatpush1.msra.mxu0 0.0
    %5926 = vmatprep.subr.mxu0 0.0
    %5927 = vmatpush1.msra.mxu0 0.0
    %5928 = vmatprep.subr.mxu0 0.0
    %5929 = vmatpush1.msra.mxu0 0.0
    %5930 = vmatprep.mubr.f32.mxu0 0.0
    %5931 = vmatmul.mubr.f32.gmra.mrb[0].mxu0 %v5864
    %v5932 = vpop.f32.mrb[0].mxu0
    %v5933 = vadd.f32 0.0, %v5932
    %v5934 = vpop.f32.mrb[0].mxu0
    %5935 = vdwg.mxu0
    %v5936 = vmax.f32 %v5933, 0.0
    %v5937 = vld [vmem:[%s13] sm:$0xff]
    %v5938 = vld [vmem:[%s13 + $0x8] sm:$0xff]
    %v5939 = vld [vmem:[%s13 + $0x10] sm:$0xff]
    %v5940 = vld [vmem:[%s13 + $0x18] sm:$0xff]
    %v5941 = vld [vmem:[%s13 + $0x20] sm:$0xff]
    %v5942 = vld [vmem:[%s13 + $0x28] sm:$0xff]
    %v5943 = vld [vmem:[%s13 + $0x30] sm:$0xff]
    %v5944 = vld [vmem:[%s13 + $0x38] sm:$0xff]
    %vm5945 = vcmask 523264
    %v5947 = vsel %vm5945, %v5936, 0
    %5949 = vmatprep.subr.mxu0 0.0
    %5950 = vmatpush1.msra.mxu0 %v5937
    %5951 = vmatprep.subr.mxu0 0.0
    %5952 = vmatpush1.msra.mxu0 %v5938
    %5953 = vmatprep.subr.mxu0 0.0
    %5954 = vmatpush1.msra.mxu0 %v5939
    %5955 = vmatprep.subr.mxu0 0.0
    %5956 = vmatpush1.msra.mxu0 %v5940
    %5957 = vmatprep.subr.mxu0 0.0
    %5958 = vmatpush1.msra.mxu0 %v5941
    %5959 = vmatprep.subr.mxu0 0.0
    %5960 = vmatpush1.msra.mxu0 %v5942
    %5961 = vmatprep.subr.mxu0 0.0
    %5962 = vmatpush1.msra.mxu0 %v5943
    %5963 = vmatprep.subr.mxu0 0.0
    %5964 = vmatpush1.msra.mxu0 %v5944
    %5965 = vmatprep.subr.mxu0 0.0
    %5966 = vmatpush1.msra.mxu0 0.0
    %5967 = vmatprep.subr.mxu0 0.0
    %5968 = vmatpush1.msra.mxu0 0.0
    %5969 = vmatprep.subr.mxu0 0.0
    %5970 = vmatpush1.msra.mxu0 0.0
    %5971 = vmatprep.subr.mxu0 0.0
    %5972 = vmatpush1.msra.mxu0 0.0
    %5973 = vmatprep.subr.mxu0 0.0
    %5974 = vmatpush1.msra.mxu0 0.0
    %5975 = vmatprep.subr.mxu0 0.0
    %5976 = vmatpush1.msra.mxu0 0.0
    %5977 = vmatprep.subr.mxu0 0.0
    %5978 = vmatpush1.msra.mxu0 0.0
    %5979 = vmatprep.subr.mxu0 0.0
    %5980 = vmatpush1.msra.mxu0 0.0
    %5981 = vmatprep.subr.mxu0 0.0
    %5982 = vmatpush1.msra.mxu0 0.0
    %5983 = vmatprep.subr.mxu0 0.0
    %5984 = vmatpush1.msra.mxu0 0.0
    %5985 = vmatprep.subr.mxu0 0.0
    %5986 = vmatpush1.msra.mxu0 0.0
    %5987 = vmatprep.subr.mxu0 0.0
    %5988 = vmatpush1.msra.mxu0 0.0
    %5989 = vmatprep.subr.mxu0 0.0
    %5990 = vmatpush1.msra.mxu0 0.0
    %5991 = vmatprep.subr.mxu0 0.0
    %5992 = vmatpush1.msra.mxu0 0.0
    %5993 = vmatprep.subr.mxu0 0.0
    %5994 = vmatpush1.msra.mxu0 0.0
    %5995 = vmatprep.subr.mxu0 0.0
    %5996 = vmatpush1.msra.mxu0 0.0
    %5997 = vmatprep.subr.mxu0 0.0
    %5998 = vmatpush1.msra.mxu0 0.0
    %5999 = vmatprep.subr.mxu0 0.0
    %6000 = vmatpush1.msra.mxu0 0.0
    %6001 = vmatprep.subr.mxu0 0.0
    %6002 = vmatpush1.msra.mxu0 0.0
    %6003 = vmatprep.subr.mxu0 0.0
    %6004 = vmatpush1.msra.mxu0 0.0
    %6005 = vmatprep.subr.mxu0 0.0
    %6006 = vmatpush1.msra.mxu0 0.0
    %6007 = vmatprep.subr.mxu0 0.0
    %6008 = vmatpush1.msra.mxu0 0.0
    %6009 = vmatprep.subr.mxu0 0.0
    %6010 = vmatpush1.msra.mxu0 0.0
    %6011 = vmatprep.subr.mxu0 0.0
    %6012 = vmatpush1.msra.mxu0 0.0
    %6013 = vmatprep.mubr.f32.mxu0 0.0
    %6014 = vmatmul.mubr.f32.gmra.mrb[0].mxu0 %v5947
    %v6015 = vpop.f32.mrb[0].mxu0
    %v6016 = vadd.f32 %v5858, %v6015
    %v6017 = vpop.f32.mrb[0].mxu0
    %6018 = vdwg.mxu0
    %v6019 = vsel %vm176, %v6016, 0.0
    %6020 = vadd.xlane.f32.xlu0 %v6019
    %v6021 = vpop.xlane.xlu0 %6020
    %v6022 = vmul.f32 %v6021, %v3001
    %v6023 = vsub.f32 %v6016, %v6022
    %v6024 = vmul.f32 %v6023, %v6023
    %v6025 = vsel %vm176, %v6024, 0.0
    %6026 = vadd.xlane.f32.xlu0 %v6025
    %v6027 = vpop.xlane.xlu0 %6026
    %v6028 = vmul.f32 %v6027, %v3001
    %v6029 = vadd.f32 %v6028, 1e-05
    %v6030 = vrsqrt.pop %v6029
    %v6031 = vmul.f32 %v6029, %v6030
    %vm6032 = vcmp.eq.f32.partialorder %v6029, inf
    %v6033 = vsel %vm6032, %v6029, %v6031
    %vm6034 = vcmp.eq.f32.partialorder %v6029, 0.0
    %v6035 = vand.u32 %v6029, 2147483648
    %v6036 = vsel %vm6034, %v6035, %v6033
    %v6037 = vrcp.pop %v6036
    %v6038 = vmul.f32 %v6023, %v6037
    %6039 = vst.msk [vmem:[#allocation17] sm:$0xff] %vm176, %v6038
    // Predicated region
    $region94: #{tpu_custom_call.1} parent=1 // pred_check
      _
    $region95: #{tpu_custom_call.1} parent=1 // pred_check_branch
      %6041 = sbr.rel (0) target = $region97
    $region96: #{tpu_custom_call.1} parent=1 // pred_region
      %s6043 = ssub.s32 128, 128
      %6044 = vsyncadd [#allocation4], %s6043
      %s6046 = sshll.u32 [#allocation17], 4
      %s6047 = int_to_ptr.vmem [resolvable:$true] %s6046
      %6049 = dma.vmem_to_hbm [thread:$0]  %s6047, 128, %s14, [#allocation4]
    $region97: #{tpu_custom_call.1} parent=1 // pred_fallthru
      _
    // Predicated region
    $region98: #{tpu_custom_call.1} parent=1 // pred_check
      _
    $region99: #{tpu_custom_call.1} parent=1 // pred_check_branch
      %6051 = sbr.rel (0) target = $region101
    $region100: #{tpu_custom_call.1} parent=1 // pred_region
      %s6053 = ssub.s32 128, 128
      %6054 = vsyncadd [#allocation19], %s6053
      %s6056 = sshll.u32 [#allocation18], 4
      %s6057 = int_to_ptr.vmem [resolvable:$true] %s6056
      %6059 = dma.vmem_to_hbm [thread:$0]  %s6057, 128, %s15, [#allocation19]
    $region101: #{tpu_custom_call.1} parent=1 // pred_fallthru
      _
    // Predicated region
    $region102: #{tpu_custom_call.1} parent=1 // pred_check
      _
    $region103: #{tpu_custom_call.1} parent=1 // pred_check_branch
      %6061 = sbr.rel (0) target = $region105
    $region104: #{tpu_custom_call.1} parent=1 // pred_region
      %s6063 = ssub.s32 128, 128
      %6064 = vsyncadd [#allocation19], %s6063
      %s6066 = sshll.u32 [#allocation20], 4
      %s6067 = int_to_ptr.vmem [resolvable:$true] %s6066
      %6069 = dma.vmem_to_hbm [thread:$0]  %s6067, 128, %s16, [#allocation19]
    $region105: #{tpu_custom_call.1} parent=1 // pred_fallthru
      _
    // Predicated region
    $region106: #{tpu_custom_call.1} parent=1 // pred_check
      _
    $region107: #{tpu_custom_call.1} parent=1 // pred_check_branch
      %6071 = sbr.rel (0) target = $region109
    $region108: #{tpu_custom_call.1} parent=1 // pred_region
      %6072 = dma.done [#allocation4], 128
    $region109: #{tpu_custom_call.1} parent=1 // pred_fallthru
      _
    // Predicated region
    $region110: #{tpu_custom_call.1} parent=1 // pred_check
      _
    $region111: #{tpu_custom_call.1} parent=1 // pred_check_branch
      %6074 = sbr.rel (0) target = $region113
    $region112: #{tpu_custom_call.1} parent=1 // pred_region
      %6075 = dma.done [#allocation19], 128
    $region113: #{tpu_custom_call.1} parent=1 // pred_fallthru
      _
    // Predicated region
    $region114: #{tpu_custom_call.1} parent=1 // pred_check
      _
    $region115: #{tpu_custom_call.1} parent=1 // pred_check_branch
      %6077 = sbr.rel (0) target = $region117
    $region116: #{tpu_custom_call.1} parent=1 // pred_region
      %6078 = dma.done [#allocation19], 128
    $region117: #{tpu_custom_call.1} parent=1 // pred_fallthru
      _
    %6079 = vsyncpa [#allocation3], 1
    %6080 = vsyncpa [#allocation6], 1
    %6081 = vsyncpa [#allocation9], 1
    %6082 = vsyncpa [#allocation12], 1
    %6083 = vsyncpa [#allocation15], 1
    %6084 = vsyncpa [#allocation4], 1
    %6085 = vsyncpa [#allocation19], 1

</llo_original>
